<compile_context>
chip_gen: v7x
topology: tpu7x:2x2x1
jax: 0.10.0
libtpu: 0.0.40
codegen_flags: <defaults>
</compile_context>

<pallas_src>
import math
from functools import partial

import jax
import jax.numpy as jnp
from jax import lax
from jax.experimental import pallas as pl
from jax.experimental.pallas import tpu as pltpu


# MXU operand dtype (accumulation is always float32).
MXU_DTYPE = jnp.bfloat16

# When True, constant-index weight/bias BlockSpecs request a single buffer
# (pl.Buffered(1)) instead of the default double buffer.  Off by default for
# maximal lowering portability; flip on at production dmodel/dimff.
SINGLE_BUFFER_WEIGHTS = False


# ----------------------------------------------------------------------------
# Tiling / sizing helpers
# ----------------------------------------------------------------------------
def _choose_seqs_per_tile(n_seq, seq_len, target_rows=512, min_grid_steps=2):
    """Whole sequences per grid step.

    Constraints: seqs-per-tile divides n_seq and the row count is a multiple of
    8 (or the tile covers the whole array).  Prefers tiles <= target_rows and,
    among those, the largest tile that still yields >= min_grid_steps grid
    steps (so v7x's two TensorCores both get work via the 'parallel' axis).
    """
    def valid(spt):
        rows = spt * seq_len
        return n_seq % spt == 0 and (rows % 8 == 0 or spt == n_seq)

    cands = [s for s in range(1, n_seq + 1) if valid(s)]
    small = [s for s in cands if s * seq_len <= target_rows]
    pool = small if small else cands
    multi = [s for s in pool if n_seq // s >= min_grid_steps]
    return max(multi) if multi else max(pool)


def _encoder_vmem_limit(mt, din, dm, dff, dout, nheads, seq_len):
    """Explicit scoped-VMEM request sized from the tile + weight footprint.

    The x/out tiles are double-buffered by the pipeline; the constant-index
    weight specs are conservatively counted twice as well (default buffering).
    Generous 2x headroom; capped at 32 MiB (safe on v5e/v6e/v7x).
    """
    f32, bf16 = 4, 2
    spt = mt // seq_len
    io = 2 * mt * (din + dout) * f32
    wbytes = bf16 * (din * dm + 3 * dm * dm + dm * dm + 2 * dm * dff + dm * dout)
    bbytes = f32 * (8 * dm + 3 * dm + dff + dout)
    weights = 2 * (wbytes + bbytes)
    acts = f32 * (mt * (6 * dm + dff) + nheads * spt * seq_len * seq_len)
    return int(min(2 * (io + weights + acts) + (8 << 20), 32 << 20))


# ----------------------------------------------------------------------------
# Fused sub-transformer path kernel
#   linear_in -> pre-LN TransformerEncoderLayer -> linear_out
# ----------------------------------------------------------------------------
def _fused_path_kernel(x_ref, win_ref, bin_ref,
                       ln1w_ref, ln1b_ref,
                       wqkv_ref, bqkv_ref,
                       wo_ref, bo_ref,
                       ln2w_ref, ln2b_ref,
                       w1_ref, b1_ref, w2_ref, b2_ref,
                       wout_ref, bout_ref,
                       o_ref, *, nheads, seq_len):
    f32 = jnp.float32
    cdt = MXU_DTYPE

    x = x_ref[...].astype(cdt)                      # [mt, din]
    mt = x.shape[0]
    spt = mt // seq_len                             # whole sequences in this tile
    dm = wo_ref.shape[0]
    hd = dm // nheads
    scale = 1.0 / math.sqrt(hd)

    def layernorm(v, w_ref, b_ref):                 # f32 statistics (v5e-safe)
        mu = jnp.mean(v, axis=-1, keepdims=True)
        var = jnp.mean(jnp.square(v - mu), axis=-1, keepdims=True)
        return (v - mu) * lax.rsqrt(var + 1e-5) * w_ref[...] + b_ref[...]

    # ---- fused input linear: [mt, din] @ [din, dm] ----
    h0 = jnp.dot(x, win_ref[...], preferred_element_type=f32) + bin_ref[...]

    # ---- pre-LN multi-head self-attention ----
    hn = layernorm(h0, ln1w_ref, ln1b_ref).astype(cdt)
    # One lane-dense fused QKV matmul: [mt, dm] @ [dm, 3*dm].
    qkv = jnp.dot(hn, wqkv_ref[...], preferred_element_type=f32) + bqkv_ref[...]

    heads = []
    for h in range(nheads):                         # static unroll over heads
        qh = qkv[:, h * hd:(h + 1) * hd].reshape(spt, seq_len, hd).astype(cdt)
        kh = qkv[:, dm + h * hd:dm + (h + 1) * hd].reshape(spt, seq_len, hd).astype(cdt)
        vh = qkv[:, 2 * dm + h * hd:2 * dm + (h + 1) * hd].reshape(spt, seq_len, hd).astype(cdt)
        # Per-sequence batched attention: no cross-sequence score waste, no mask.
        s = jnp.einsum("bqd,bkd->bqk", qh, kh,
                       preferred_element_type=f32) * scale      # [spt, L, L]
        s = s - jnp.max(s, axis=-1, keepdims=True)
        p = jnp.exp(s)
        p = p * pl.reciprocal(jnp.sum(p, axis=-1, keepdims=True), approx=True)
        oh = jnp.einsum("bqk,bkd->bqd", p.astype(cdt), vh,
                        preferred_element_type=f32)             # [spt, L, hd]
        heads.append(oh.reshape(mt, hd))
    # Lane-concat head outputs, then ONE [mt, dm] @ [dm, dm] out-projection.
    attn = jnp.concatenate(heads, axis=-1)                      # [mt, dm]
    attn = jnp.dot(attn.astype(cdt), wo_ref[...],
                   preferred_element_type=f32) + bo_ref[...]
    h1 = h0 + attn

    # ---- pre-LN feed-forward ----
    h2 = layernorm(h1, ln2w_ref, ln2b_ref)
    ff = jnp.dot(h2.astype(cdt), w1_ref[...], preferred_element_type=f32) + b1_ref[...]
    # TODO(synk): PyTorch uses exact (erf) GELU; tanh approximation kept for
    # robust Mosaic lowering (max abs deviation ~1e-3).
    ff = jax.nn.gelu(ff, approximate=True)
    ff = jnp.dot(ff.astype(cdt), w2_ref[...], preferred_element_type=f32) + b2_ref[...]
    h3 = h1 + ff

    # ---- fused output linear: [mt, dm] @ [dm, dout] ----
    o_ref[...] = (jnp.dot(h3.astype(cdt), wout_ref[...], preferred_element_type=f32)
                  + bout_ref[...])


def encoder_path(x2d, p, *, seq_len, nheads):
    """Fused sub-transformer path.  x2d: [n_seq*seq_len, din] -> [n_seq*seq_len, dout]."""
    M, din = x2d.shape
    dm = p["wo"].shape[0]
    dff = p["w1"].shape[1]
    dout = p["wout"].shape[1]
    assert dm % nheads == 0

    n_seq = M // seq_len
    spt = _choose_seqs_per_tile(n_seq, seq_len)
    mt = spt * seq_len

    def xmap(i):
        return (i, 0)

    def cmap(i):
        return (0, 0)

    def wspec(shape):
        if SINGLE_BUFFER_WEIGHTS:
            return pl.BlockSpec(shape, cmap, pipeline_mode=pl.Buffered(1))
        return pl.BlockSpec(shape, cmap)

    kern = partial(_fused_path_kernel, nheads=nheads, seq_len=seq_len)
    vmem_limit = _encoder_vmem_limit(mt, din, dm, dff, dout, nheads, seq_len)

    return pl.pallas_call(
        kern,
        grid=(M // mt,),
        in_specs=[
            pl.BlockSpec((mt, din), xmap),                  # activations
            wspec((din, dm)), wspec((1, dm)),               # linear_in
            wspec((1, dm)), wspec((1, dm)),                 # ln1
            wspec((dm, 3 * dm)), wspec((1, 3 * dm)),        # fused qkv
            wspec((dm, dm)), wspec((1, dm)),                # attn out proj
            wspec((1, dm)), wspec((1, dm)),                 # ln2
            wspec((dm, dff)), wspec((1, dff)),              # ffn linear1
            wspec((dff, dm)), wspec((1, dm)),               # ffn linear2
            wspec((dm, dout)), wspec((1, dout)),            # linear_out
        ],
        out_specs=pl.BlockSpec((mt, dout), xmap),
        out_shape=jax.ShapeDtypeStruct((M, dout), jnp.float32),
        compiler_params=pltpu.CompilerParams(
            dimension_semantics=("parallel",),
            vmem_limit_bytes=vmem_limit),
    )(x2d, p["win"], p["bin"], p["ln1w"], p["ln1b"],
      p["wqkv"], p["bqkv"], p["wo"], p["bo"],
      p["ln2w"], p["ln2b"], p["w1"], p["b1"], p["w2"], p["b2"],
      p["wout"], p["bout"])


# ----------------------------------------------------------------------------
# Parameter init (deterministic, synthetic)
# ----------------------------------------------------------------------------
def _init_linear(key, din, dout):
    k1, k2 = jax.random.split(key)
    bound = 1.0 / math.sqrt(din)
    w = jax.random.uniform(k1, (din, dout), jnp.float32, -bound, bound)
    b = jax.random.uniform(k2, (1, dout), jnp.float32, -bound, bound)
    return w, b


def init_encoder_path(key, din, dm, dff, dout, nheads):
    keys = jax.random.split(key, 8)
    win, bin_ = _init_linear(keys[0], din, dm)
    wq, bq = _init_linear(keys[1], dm, dm)
    wk, bk = _init_linear(keys[2], dm, dm)
    wv, bv = _init_linear(keys[3], dm, dm)
    wo, bo = _init_linear(keys[4], dm, dm)
    w1, b1 = _init_linear(keys[5], dm, dff)
    w2, b2 = _init_linear(keys[6], dff, dm)
    wout, bout = _init_linear(keys[7], dm, dout)
    # Fused lane-dense QKV weight [dm, 3*dm] / bias [1, 3*dm].
    wqkv = jnp.concatenate([wq, wk, wv], axis=1)
    bqkv = jnp.concatenate([bq, bk, bv], axis=1)
    c = lambda a: a.astype(MXU_DTYPE)          # matmul weights -> MXU dtype
    return {
        "win": c(win), "bin": bin_,
        "ln1w": jnp.ones((1, dm), jnp.float32), "ln1b": jnp.zeros((1, dm), jnp.float32),
        "wqkv": c(wqkv), "bqkv": bqkv,
        "wo": c(wo), "bo": bo,
        "ln2w": jnp.ones((1, dm), jnp.float32), "ln2b": jnp.zeros((1, dm), jnp.float32),
        "w1": c(w1), "b1": b1, "w2": c(w2), "b2": b2,
        "wout": c(wout), "bout": bout,
    }


def init_block(key, K, F, T, D, sd, s_heads, sff, td, t_heads, tff):
    keys = jax.random.split(key, 4)
    wdk, bdk = _init_linear(keys[0], D, K)
    wkd, bkd = _init_linear(keys[1], K, D)
    return {
        "wdk": wdk, "bdk": bdk,            # D_to_K (wrapper glue)
        "wkd": wkd, "bkd": bkd,            # K_to_D (wrapper glue)
        "spec": init_encoder_path(keys[2], F + 1, sd, sff, F + 1, s_heads),
        "temp": init_encoder_path(keys[3], T, td, tff, T, t_heads),
    }


def init_module(key, T, F, K, D, sd, s_heads, sff, td, t_heads, tff, n_blocks, use_tct):
    keys = jax.random.split(key, n_blocks + 1)
    Tb = T + 1 if use_tct else T
    return {
        "fct": jnp.zeros((1, T, 1, K), jnp.float32),
        "fpe": jnp.zeros((1, 1, F + 1, K), jnp.float32),
        "te": jax.random.uniform(keys[0], (1, T, 1, D), jnp.float32),
        "tct": jnp.zeros((1, 1, 1, D), jnp.float32) if use_tct else None,
        "blocks": [
            init_block(keys[i + 1], K, F, Tb, D, sd, s_heads, sff, td, t_heads, tff)
            for i in range(n_blocks)
        ],
    }


# ----------------------------------------------------------------------------
# Forward pass (glue in JAX, compute in Pallas)
# ----------------------------------------------------------------------------
def block_forward(p, spec_in, temp_in, *, s_heads, t_heads):
    B, T, Fp1, K = spec_in.shape
    D = temp_in.shape[-1]
    temp2d = temp_in.reshape(B * T, D)

    # D_to_K: tiny [D -> K] projection added at frequency row 0.  Done as
    # wrapper glue so it fuses into the layout transpose below (no lane-sparse
    # pallas_call round-trip / extra launch).
    dk = jnp.dot(temp2d, p["wdk"]) + p["bdk"]                    # [B*T, K]
    spec = spec_in.at[:, :, 0, :].add(dk.reshape(B, T, K))

    # Spectral sub-transformer: B*T sequences of K tokens, features F+1.
    xs = spec.reshape(B * T, Fp1, K).transpose(0, 2, 1).reshape(B * T * K, Fp1)
    ys = encoder_path(xs, p["spec"], seq_len=K, nheads=s_heads)  # [B*T*K, F+1]
    spec_out = ys.reshape(B, T, K, Fp1).transpose(0, 1, 3, 2)    # [B, T, F+1, K]

    # K_to_D residual (wrapper glue, fused with the temporal layout transpose).
    kd = jnp.dot(spec_out[:, :, 0, :].reshape(B * T, K), p["wkd"]) + p["bkd"]
    temp_new = temp2d + kd                                       # [B*T, D]

    # Temporal sub-transformer: B sequences of D tokens, features T.
    xt = temp_new.reshape(B, T, D).transpose(0, 2, 1).reshape(B * D, T)
    yt = encoder_path(xt, p["temp"], seq_len=D, nheads=t_heads)  # [B*D, T]
    temp_out = yt.reshape(B, D, T).transpose(0, 2, 1).reshape(B, T, 1, D)
    return spec_out, temp_out


def spectnt_forward(params, x, *, s_heads, t_heads):
    B, T, F, K = x.shape
    D = params["te"].shape[-1]
    spec_emb = jnp.concatenate(
        [jnp.broadcast_to(params["fct"], (B, T, 1, K)), x], axis=2)
    spec_emb = spec_emb + params["fpe"]
    temp_emb = jnp.broadcast_to(params["te"], (B, T, 1, D))
    if params["tct"] is not None:
        spec_emb = jnp.pad(spec_emb, ((0, 0), (1, 0), (0, 0), (0, 0)))
        tct = jnp.broadcast_to(params["tct"], (B, 1, 1, D))
        temp_emb = jnp.concatenate([tct, temp_emb], axis=1)
    for bp in params["blocks"]:
        spec_emb, temp_emb = block_forward(bp, spec_emb, temp_emb,
                                           s_heads=s_heads, t_heads=t_heads)
    return spec_emb, temp_emb


# ----------------------------------------------------------------------------
if __name__ == "__main__":
    B, T, F, K = 2, 4, 8, 4          # batch, n_times, n_frequencies, n_channels
    D = 32                           # embed_dim
    sd, s_heads, sff = 32, 4, 64     # spectral dmodel / heads / dimff
    td, t_heads, tff = 32, 4, 64     # temporal dmodel / heads / dimff
    n_blocks = 2
    use_tct = False                  # dropout=0.0 (inference)

    key = jax.random.PRNGKey(0)
    kp, kx = jax.random.split(key)
    params = init_module(kp, T, F, K, D, sd, s_heads, sff, td, t_heads, tff,
                         n_blocks, use_tct)
    x = jax.random.normal(kx, (B, T, F, K), jnp.float32)

    forward = jax.jit(partial(spectnt_forward, s_heads=s_heads, t_heads=t_heads))
    spec_emb, temp_emb = forward(params, x)
    jax.block_until_ready((spec_emb, temp_emb))

    Tout = T + 1 if use_tct else T
    assert spec_emb.shape == (B, Tout, F + 1, K), spec_emb.shape
    assert temp_emb.shape == (B, Tout, 1, D), temp_emb.shape
    assert bool(jnp.all(jnp.isfinite(spec_emb)))
    assert bool(jnp.all(jnp.isfinite(temp_emb)))
    print("KERNEL_OK")
</pallas_src>

<mosaic_0001>
module attributes {stable_mosaic.version = 11 : i64} {
  func.func @_fused_path_kernel(%arg0: i32, %arg1: memref<16x9xf32, #tpu.memory_space<vmem>>, %arg2: memref<9x32xbf16, #tpu.memory_space<vmem>>, %arg3: memref<1x32xf32, #tpu.memory_space<vmem>>, %arg4: memref<1x32xf32, #tpu.memory_space<vmem>>, %arg5: memref<1x32xf32, #tpu.memory_space<vmem>>, %arg6: memref<32x96xbf16, #tpu.memory_space<vmem>>, %arg7: memref<1x96xf32, #tpu.memory_space<vmem>>, %arg8: memref<32x32xbf16, #tpu.memory_space<vmem>>, %arg9: memref<1x32xf32, #tpu.memory_space<vmem>>, %arg10: memref<1x32xf32, #tpu.memory_space<vmem>>, %arg11: memref<1x32xf32, #tpu.memory_space<vmem>>, %arg12: memref<32x64xbf16, #tpu.memory_space<vmem>>, %arg13: memref<1x64xf32, #tpu.memory_space<vmem>>, %arg14: memref<64x32xbf16, #tpu.memory_space<vmem>>, %arg15: memref<1x32xf32, #tpu.memory_space<vmem>>, %arg16: memref<32x9xbf16, #tpu.memory_space<vmem>>, %arg17: memref<1x9xf32, #tpu.memory_space<vmem>>, %arg18: memref<16x9xf32, #tpu.memory_space<vmem>>) attributes {dimension_semantics = [#tpu.dimension_semantics<parallel>], iteration_bounds = array<i64: 2>, scalar_prefetch = 0 : i64, scratch_operands = 0 : i64, tpu.core_type = #tpu.core_type<tc>, window_params = [{transform_indices = @transform_0, window_bounds = array<i64: 16, 9>}, {pipeline_mode = #tpu.pipeline_mode<synchronous>, transform_indices = @transform_1, window_bounds = array<i64: 9, 32>}, {pipeline_mode = #tpu.pipeline_mode<synchronous>, transform_indices = @transform_2, window_bounds = array<i64: 1, 32>}, {pipeline_mode = #tpu.pipeline_mode<synchronous>, transform_indices = @transform_3, window_bounds = array<i64: 1, 32>}, {pipeline_mode = #tpu.pipeline_mode<synchronous>, transform_indices = @transform_4, window_bounds = array<i64: 1, 32>}, {pipeline_mode = #tpu.pipeline_mode<synchronous>, transform_indices = @transform_5, window_bounds = array<i64: 32, 96>}, {pipeline_mode = #tpu.pipeline_mode<synchronous>, transform_indices = @transform_6, window_bounds = array<i64: 1, 96>}, {pipeline_mode = #tpu.pipeline_mode<synchronous>, transform_indices = @transform_7, window_bounds = array<i64: 32, 32>}, {pipeline_mode = #tpu.pipeline_mode<synchronous>, transform_indices = @transform_8, window_bounds = array<i64: 1, 32>}, {pipeline_mode = #tpu.pipeline_mode<synchronous>, transform_indices = @transform_9, window_bounds = array<i64: 1, 32>}, {pipeline_mode = #tpu.pipeline_mode<synchronous>, transform_indices = @transform_10, window_bounds = array<i64: 1, 32>}, {pipeline_mode = #tpu.pipeline_mode<synchronous>, transform_indices = @transform_11, window_bounds = array<i64: 32, 64>}, {pipeline_mode = #tpu.pipeline_mode<synchronous>, transform_indices = @transform_12, window_bounds = array<i64: 1, 64>}, {pipeline_mode = #tpu.pipeline_mode<synchronous>, transform_indices = @transform_13, window_bounds = array<i64: 64, 32>}, {pipeline_mode = #tpu.pipeline_mode<synchronous>, transform_indices = @transform_14, window_bounds = array<i64: 1, 32>}, {pipeline_mode = #tpu.pipeline_mode<synchronous>, transform_indices = @transform_15, window_bounds = array<i64: 32, 9>}, {pipeline_mode = #tpu.pipeline_mode<synchronous>, transform_indices = @transform_16, window_bounds = array<i64: 1, 9>}, {transform_indices = @transform_17, window_bounds = array<i64: 16, 9>}]} {
    %c0 = arith.constant 0 : index
    %c0_0 = arith.constant 0 : index
    %0 = vector.load %arg1[%c0, %c0_0] : memref<16x9xf32, #tpu.memory_space<vmem>>, vector<16x9xf32>
    %1 = arith.truncf %0 : vector<16x9xf32> to vector<16x9xbf16>
    %c0_1 = arith.constant 0 : index
    %c0_2 = arith.constant 0 : index
    %2 = vector.load %arg2[%c0_1, %c0_2] : memref<9x32xbf16, #tpu.memory_space<vmem>>, vector<9x32xbf16>
    %cst = arith.constant dense<0.000000e+00> : vector<16x32xf32>
    %3 = tpu.matmul %1, %2, %cst {dimension_numbers = #tpu.dot_dimension_numbers<[1], [0], [0], [1], [0, 0, 1, 1], [], []>} : vector<16x9xbf16>, vector<9x32xbf16>, vector<16x32xf32> -> vector<16x32xf32>
    %c0_3 = arith.constant 0 : index
    %c0_4 = arith.constant 0 : index
    %4 = vector.load %arg3[%c0_3, %c0_4] : memref<1x32xf32, #tpu.memory_space<vmem>>, vector<1x32xf32>
    %5 = vector.broadcast %4 : vector<1x32xf32> to vector<16x32xf32>
    %6 = arith.addf %3, %5 : vector<16x32xf32>
    %cst_5 = arith.constant dense<0.000000e+00> : vector<16xf32>
    %7 = vector.multi_reduction <add>, %6, %cst_5 [1] : vector<16x32xf32> to vector<16xf32>
    %8 = vector.shape_cast %7 : vector<16xf32> to vector<16x1xf32>
    %cst_6 = arith.constant 3.200000e+01 : f32
    %9 = vector.broadcast %cst_6 : f32 to vector<16x1xf32>
    %10 = arith.divf %8, %9 : vector<16x1xf32>
    %11 = vector.broadcast %10 : vector<16x1xf32> to vector<16x32xf32>
    %12 = arith.subf %6, %11 : vector<16x32xf32>
    %13 = arith.mulf %12, %12 : vector<16x32xf32>
    %cst_7 = arith.constant dense<0.000000e+00> : vector<16xf32>
    %14 = vector.multi_reduction <add>, %13, %cst_7 [1] : vector<16x32xf32> to vector<16xf32>
    %15 = vector.shape_cast %14 : vector<16xf32> to vector<16x1xf32>
    %cst_8 = arith.constant 3.200000e+01 : f32
    %16 = vector.broadcast %cst_8 : f32 to vector<16x1xf32>
    %17 = arith.divf %15, %16 : vector<16x1xf32>
    %18 = vector.broadcast %10 : vector<16x1xf32> to vector<16x32xf32>
    %19 = arith.subf %6, %18 : vector<16x32xf32>
    %cst_9 = arith.constant 9.99999974E-6 : f32
    %20 = vector.broadcast %cst_9 : f32 to vector<16x1xf32>
    %21 = arith.addf %17, %20 : vector<16x1xf32>
    %22 = math.rsqrt %21 : vector<16x1xf32>
    %23 = vector.broadcast %22 : vector<16x1xf32> to vector<16x32xf32>
    %24 = arith.mulf %19, %23 : vector<16x32xf32>
    %c0_10 = arith.constant 0 : index
    %c0_11 = arith.constant 0 : index
    %25 = vector.load %arg4[%c0_10, %c0_11] : memref<1x32xf32, #tpu.memory_space<vmem>>, vector<1x32xf32>
    %26 = vector.broadcast %25 : vector<1x32xf32> to vector<16x32xf32>
    %27 = arith.mulf %24, %26 : vector<16x32xf32>
    %c0_12 = arith.constant 0 : index
    %c0_13 = arith.constant 0 : index
    %28 = vector.load %arg5[%c0_12, %c0_13] : memref<1x32xf32, #tpu.memory_space<vmem>>, vector<1x32xf32>
    %29 = vector.broadcast %28 : vector<1x32xf32> to vector<16x32xf32>
    %30 = arith.addf %27, %29 : vector<16x32xf32>
    %31 = arith.truncf %30 : vector<16x32xf32> to vector<16x32xbf16>
    %c0_14 = arith.constant 0 : index
    %c0_15 = arith.constant 0 : index
    %32 = vector.load %arg6[%c0_14, %c0_15] : memref<32x96xbf16, #tpu.memory_space<vmem>>, vector<32x96xbf16>
    %cst_16 = arith.constant dense<0.000000e+00> : vector<16x96xf32>
    %33 = tpu.matmul %31, %32, %cst_16 {dimension_numbers = #tpu.dot_dimension_numbers<[1], [0], [0], [1], [0, 0, 1, 1], [], []>} : vector<16x32xbf16>, vector<32x96xbf16>, vector<16x96xf32> -> vector<16x96xf32>
    %c0_17 = arith.constant 0 : index
    %c0_18 = arith.constant 0 : index
    %34 = vector.load %arg7[%c0_17, %c0_18] : memref<1x96xf32, #tpu.memory_space<vmem>>, vector<1x96xf32>
    %35 = vector.broadcast %34 : vector<1x96xf32> to vector<16x96xf32>
    %36 = arith.addf %33, %35 : vector<16x96xf32>
    %37 = vector.extract_strided_slice %36 {offsets = [0, 0], sizes = [16, 8], strides = [1, 1]} : vector<16x96xf32> to vector<16x8xf32>
    %38 = vector.shape_cast %37 : vector<16x8xf32> to vector<4x4x8xf32>
    %39 = arith.truncf %38 : vector<4x4x8xf32> to vector<4x4x8xbf16>
    %40 = vector.extract_strided_slice %36 {offsets = [0, 32], sizes = [16, 8], strides = [1, 1]} : vector<16x96xf32> to vector<16x8xf32>
    %41 = vector.shape_cast %40 : vector<16x8xf32> to vector<4x4x8xf32>
    %42 = arith.truncf %41 : vector<4x4x8xf32> to vector<4x4x8xbf16>
    %43 = vector.extract_strided_slice %36 {offsets = [0, 64], sizes = [16, 8], strides = [1, 1]} : vector<16x96xf32> to vector<16x8xf32>
    %44 = vector.shape_cast %43 : vector<16x8xf32> to vector<4x4x8xf32>
    %45 = arith.truncf %44 : vector<4x4x8xf32> to vector<4x4x8xbf16>
    "tpu.trace_start"() <{level = 10 : i32, message = "bqd,bkd->bqk"}> : () -> ()
    %cst_19 = arith.constant dense<0.000000e+00> : vector<4x4x4xf32>
    %46 = tpu.matmul %39, %42, %cst_19 {dimension_numbers = #tpu.dot_dimension_numbers<[2], [2], [1], [1], [0, 0, 0, 1, 1, 1], [0], [0]>} : vector<4x4x8xbf16>, vector<4x4x8xbf16>, vector<4x4x4xf32> -> vector<4x4x4xf32>
    "tpu.trace_stop"() : () -> ()
    %cst_20 = arith.constant 0.353553385 : f32
    %47 = vector.broadcast %cst_20 : f32 to vector<4x4x4xf32>
    %48 = arith.mulf %46, %47 : vector<4x4x4xf32>
    %cst_21 = arith.constant dense<0xFF800000> : vector<4x4xf32>
    %49 = vector.multi_reduction <maximumf>, %48, %cst_21 [2] : vector<4x4x4xf32> to vector<4x4xf32>
    %50 = vector.shape_cast %49 : vector<4x4xf32> to vector<4x4x1xf32>
    %51 = vector.broadcast %50 : vector<4x4x1xf32> to vector<4x4x4xf32>
    %52 = arith.subf %48, %51 : vector<4x4x4xf32>
    %53 = math.exp %52 : vector<4x4x4xf32>
    %cst_22 = arith.constant dense<0.000000e+00> : vector<4x4xf32>
    %54 = vector.multi_reduction <add>, %53, %cst_22 [2] : vector<4x4x4xf32> to vector<4x4xf32>
    %55 = vector.shape_cast %54 : vector<4x4xf32> to vector<4x4x1xf32>
    %56 = tpu.reciprocal %55 {approx = true} : vector<4x4x1xf32> -> vector<4x4x1xf32>
    %57 = vector.broadcast %56 : vector<4x4x1xf32> to vector<4x4x4xf32>
    %58 = arith.mulf %53, %57 : vector<4x4x4xf32>
    %59 = arith.truncf %58 : vector<4x4x4xf32> to vector<4x4x4xbf16>
    "tpu.trace_start"() <{level = 10 : i32, message = "bqk,bkd->bqd"}> : () -> ()
    %cst_23 = arith.constant dense<0.000000e+00> : vector<4x4x8xf32>
    %60 = tpu.matmul %59, %45, %cst_23 {dimension_numbers = #tpu.dot_dimension_numbers<[2], [1], [1], [2], [0, 0, 0, 1, 1, 2], [0], [0]>} : vector<4x4x4xbf16>, vector<4x4x8xbf16>, vector<4x4x8xf32> -> vector<4x4x8xf32>
    "tpu.trace_stop"() : () -> ()
    %61 = vector.shape_cast %60 : vector<4x4x8xf32> to vector<16x8xf32>
    %62 = vector.extract_strided_slice %36 {offsets = [0, 8], sizes = [16, 8], strides = [1, 1]} : vector<16x96xf32> to vector<16x8xf32>
    %63 = vector.shape_cast %62 : vector<16x8xf32> to vector<4x4x8xf32>
    %64 = arith.truncf %63 : vector<4x4x8xf32> to vector<4x4x8xbf16>
    %65 = vector.extract_strided_slice %36 {offsets = [0, 40], sizes = [16, 8], strides = [1, 1]} : vector<16x96xf32> to vector<16x8xf32>
    %66 = vector.shape_cast %65 : vector<16x8xf32> to vector<4x4x8xf32>
    %67 = arith.truncf %66 : vector<4x4x8xf32> to vector<4x4x8xbf16>
    %68 = vector.extract_strided_slice %36 {offsets = [0, 72], sizes = [16, 8], strides = [1, 1]} : vector<16x96xf32> to vector<16x8xf32>
    %69 = vector.shape_cast %68 : vector<16x8xf32> to vector<4x4x8xf32>
    %70 = arith.truncf %69 : vector<4x4x8xf32> to vector<4x4x8xbf16>
    "tpu.trace_start"() <{level = 10 : i32, message = "bqd,bkd->bqk"}> : () -> ()
    %cst_24 = arith.constant dense<0.000000e+00> : vector<4x4x4xf32>
    %71 = tpu.matmul %64, %67, %cst_24 {dimension_numbers = #tpu.dot_dimension_numbers<[2], [2], [1], [1], [0, 0, 0, 1, 1, 1], [0], [0]>} : vector<4x4x8xbf16>, vector<4x4x8xbf16>, vector<4x4x4xf32> -> vector<4x4x4xf32>
    "tpu.trace_stop"() : () -> ()
    %cst_25 = arith.constant 0.353553385 : f32
    %72 = vector.broadcast %cst_25 : f32 to vector<4x4x4xf32>
    %73 = arith.mulf %71, %72 : vector<4x4x4xf32>
    %cst_26 = arith.constant dense<0xFF800000> : vector<4x4xf32>
    %74 = vector.multi_reduction <maximumf>, %73, %cst_26 [2] : vector<4x4x4xf32> to vector<4x4xf32>
    %75 = vector.shape_cast %74 : vector<4x4xf32> to vector<4x4x1xf32>
    %76 = vector.broadcast %75 : vector<4x4x1xf32> to vector<4x4x4xf32>
    %77 = arith.subf %73, %76 : vector<4x4x4xf32>
    %78 = math.exp %77 : vector<4x4x4xf32>
    %cst_27 = arith.constant dense<0.000000e+00> : vector<4x4xf32>
    %79 = vector.multi_reduction <add>, %78, %cst_27 [2] : vector<4x4x4xf32> to vector<4x4xf32>
    %80 = vector.shape_cast %79 : vector<4x4xf32> to vector<4x4x1xf32>
    %81 = tpu.reciprocal %80 {approx = true} : vector<4x4x1xf32> -> vector<4x4x1xf32>
    %82 = vector.broadcast %81 : vector<4x4x1xf32> to vector<4x4x4xf32>
    %83 = arith.mulf %78, %82 : vector<4x4x4xf32>
    %84 = arith.truncf %83 : vector<4x4x4xf32> to vector<4x4x4xbf16>
    "tpu.trace_start"() <{level = 10 : i32, message = "bqk,bkd->bqd"}> : () -> ()
    %cst_28 = arith.constant dense<0.000000e+00> : vector<4x4x8xf32>
    %85 = tpu.matmul %84, %70, %cst_28 {dimension_numbers = #tpu.dot_dimension_numbers<[2], [1], [1], [2], [0, 0, 0, 1, 1, 2], [0], [0]>} : vector<4x4x4xbf16>, vector<4x4x8xbf16>, vector<4x4x8xf32> -> vector<4x4x8xf32>
    "tpu.trace_stop"() : () -> ()
    %86 = vector.shape_cast %85 : vector<4x4x8xf32> to vector<16x8xf32>
    %87 = vector.extract_strided_slice %36 {offsets = [0, 16], sizes = [16, 8], strides = [1, 1]} : vector<16x96xf32> to vector<16x8xf32>
    %88 = vector.shape_cast %87 : vector<16x8xf32> to vector<4x4x8xf32>
    %89 = arith.truncf %88 : vector<4x4x8xf32> to vector<4x4x8xbf16>
    %90 = vector.extract_strided_slice %36 {offsets = [0, 48], sizes = [16, 8], strides = [1, 1]} : vector<16x96xf32> to vector<16x8xf32>
    %91 = vector.shape_cast %90 : vector<16x8xf32> to vector<4x4x8xf32>
    %92 = arith.truncf %91 : vector<4x4x8xf32> to vector<4x4x8xbf16>
    %93 = vector.extract_strided_slice %36 {offsets = [0, 80], sizes = [16, 8], strides = [1, 1]} : vector<16x96xf32> to vector<16x8xf32>
    %94 = vector.shape_cast %93 : vector<16x8xf32> to vector<4x4x8xf32>
    %95 = arith.truncf %94 : vector<4x4x8xf32> to vector<4x4x8xbf16>
    "tpu.trace_start"() <{level = 10 : i32, message = "bqd,bkd->bqk"}> : () -> ()
    %cst_29 = arith.constant dense<0.000000e+00> : vector<4x4x4xf32>
    %96 = tpu.matmul %89, %92, %cst_29 {dimension_numbers = #tpu.dot_dimension_numbers<[2], [2], [1], [1], [0, 0, 0, 1, 1, 1], [0], [0]>} : vector<4x4x8xbf16>, vector<4x4x8xbf16>, vector<4x4x4xf32> -> vector<4x4x4xf32>
    "tpu.trace_stop"() : () -> ()
    %cst_30 = arith.constant 0.353553385 : f32
    %97 = vector.broadcast %cst_30 : f32 to vector<4x4x4xf32>
    %98 = arith.mulf %96, %97 : vector<4x4x4xf32>
    %cst_31 = arith.constant dense<0xFF800000> : vector<4x4xf32>
    %99 = vector.multi_reduction <maximumf>, %98, %cst_31 [2] : vector<4x4x4xf32> to vector<4x4xf32>
    %100 = vector.shape_cast %99 : vector<4x4xf32> to vector<4x4x1xf32>
    %101 = vector.broadcast %100 : vector<4x4x1xf32> to vector<4x4x4xf32>
    %102 = arith.subf %98, %101 : vector<4x4x4xf32>
    %103 = math.exp %102 : vector<4x4x4xf32>
    %cst_32 = arith.constant dense<0.000000e+00> : vector<4x4xf32>
    %104 = vector.multi_reduction <add>, %103, %cst_32 [2] : vector<4x4x4xf32> to vector<4x4xf32>
    %105 = vector.shape_cast %104 : vector<4x4xf32> to vector<4x4x1xf32>
    %106 = tpu.reciprocal %105 {approx = true} : vector<4x4x1xf32> -> vector<4x4x1xf32>
    %107 = vector.broadcast %106 : vector<4x4x1xf32> to vector<4x4x4xf32>
    %108 = arith.mulf %103, %107 : vector<4x4x4xf32>
    %109 = arith.truncf %108 : vector<4x4x4xf32> to vector<4x4x4xbf16>
    "tpu.trace_start"() <{level = 10 : i32, message = "bqk,bkd->bqd"}> : () -> ()
    %cst_33 = arith.constant dense<0.000000e+00> : vector<4x4x8xf32>
    %110 = tpu.matmul %109, %95, %cst_33 {dimension_numbers = #tpu.dot_dimension_numbers<[2], [1], [1], [2], [0, 0, 0, 1, 1, 2], [0], [0]>} : vector<4x4x4xbf16>, vector<4x4x8xbf16>, vector<4x4x8xf32> -> vector<4x4x8xf32>
    "tpu.trace_stop"() : () -> ()
    %111 = vector.shape_cast %110 : vector<4x4x8xf32> to vector<16x8xf32>
    %112 = vector.extract_strided_slice %36 {offsets = [0, 24], sizes = [16, 8], strides = [1, 1]} : vector<16x96xf32> to vector<16x8xf32>
    %113 = vector.shape_cast %112 : vector<16x8xf32> to vector<4x4x8xf32>
    %114 = arith.truncf %113 : vector<4x4x8xf32> to vector<4x4x8xbf16>
    %115 = vector.extract_strided_slice %36 {offsets = [0, 56], sizes = [16, 8], strides = [1, 1]} : vector<16x96xf32> to vector<16x8xf32>
    %116 = vector.shape_cast %115 : vector<16x8xf32> to vector<4x4x8xf32>
    %117 = arith.truncf %116 : vector<4x4x8xf32> to vector<4x4x8xbf16>
    %118 = vector.extract_strided_slice %36 {offsets = [0, 88], sizes = [16, 8], strides = [1, 1]} : vector<16x96xf32> to vector<16x8xf32>
    %119 = vector.shape_cast %118 : vector<16x8xf32> to vector<4x4x8xf32>
    %120 = arith.truncf %119 : vector<4x4x8xf32> to vector<4x4x8xbf16>
    "tpu.trace_start"() <{level = 10 : i32, message = "bqd,bkd->bqk"}> : () -> ()
    %cst_34 = arith.constant dense<0.000000e+00> : vector<4x4x4xf32>
    %121 = tpu.matmul %114, %117, %cst_34 {dimension_numbers = #tpu.dot_dimension_numbers<[2], [2], [1], [1], [0, 0, 0, 1, 1, 1], [0], [0]>} : vector<4x4x8xbf16>, vector<4x4x8xbf16>, vector<4x4x4xf32> -> vector<4x4x4xf32>
    "tpu.trace_stop"() : () -> ()
    %cst_35 = arith.constant 0.353553385 : f32
    %122 = vector.broadcast %cst_35 : f32 to vector<4x4x4xf32>
    %123 = arith.mulf %121, %122 : vector<4x4x4xf32>
    %cst_36 = arith.constant dense<0xFF800000> : vector<4x4xf32>
    %124 = vector.multi_reduction <maximumf>, %123, %cst_36 [2] : vector<4x4x4xf32> to vector<4x4xf32>
    %125 = vector.shape_cast %124 : vector<4x4xf32> to vector<4x4x1xf32>
    %126 = vector.broadcast %125 : vector<4x4x1xf32> to vector<4x4x4xf32>
    %127 = arith.subf %123, %126 : vector<4x4x4xf32>
    %128 = math.exp %127 : vector<4x4x4xf32>
    %cst_37 = arith.constant dense<0.000000e+00> : vector<4x4xf32>
    %129 = vector.multi_reduction <add>, %128, %cst_37 [2] : vector<4x4x4xf32> to vector<4x4xf32>
    %130 = vector.shape_cast %129 : vector<4x4xf32> to vector<4x4x1xf32>
    %131 = tpu.reciprocal %130 {approx = true} : vector<4x4x1xf32> -> vector<4x4x1xf32>
    %132 = vector.broadcast %131 : vector<4x4x1xf32> to vector<4x4x4xf32>
    %133 = arith.mulf %128, %132 : vector<4x4x4xf32>
    %134 = arith.truncf %133 : vector<4x4x4xf32> to vector<4x4x4xbf16>
    "tpu.trace_start"() <{level = 10 : i32, message = "bqk,bkd->bqd"}> : () -> ()
    %cst_38 = arith.constant dense<0.000000e+00> : vector<4x4x8xf32>
    %135 = tpu.matmul %134, %120, %cst_38 {dimension_numbers = #tpu.dot_dimension_numbers<[2], [1], [1], [2], [0, 0, 0, 1, 1, 2], [0], [0]>} : vector<4x4x4xbf16>, vector<4x4x8xbf16>, vector<4x4x8xf32> -> vector<4x4x8xf32>
    "tpu.trace_stop"() : () -> ()
    %136 = vector.shape_cast %135 : vector<4x4x8xf32> to vector<16x8xf32>
    %137 = tpu.concatenate %61, %86, %111, %136 in 1 : vector<16x8xf32>, vector<16x8xf32>, vector<16x8xf32>, vector<16x8xf32> -> vector<16x32xf32>
    %138 = arith.truncf %137 : vector<16x32xf32> to vector<16x32xbf16>
    %c0_39 = arith.constant 0 : index
    %c0_40 = arith.constant 0 : index
    %139 = vector.load %arg8[%c0_39, %c0_40] : memref<32x32xbf16, #tpu.memory_space<vmem>>, vector<32x32xbf16>
    %cst_41 = arith.constant dense<0.000000e+00> : vector<16x32xf32>
    %140 = tpu.matmul %138, %139, %cst_41 {dimension_numbers = #tpu.dot_dimension_numbers<[1], [0], [0], [1], [0, 0, 1, 1], [], []>} : vector<16x32xbf16>, vector<32x32xbf16>, vector<16x32xf32> -> vector<16x32xf32>
    %c0_42 = arith.constant 0 : index
    %c0_43 = arith.constant 0 : index
    %141 = vector.load %arg9[%c0_42, %c0_43] : memref<1x32xf32, #tpu.memory_space<vmem>>, vector<1x32xf32>
    %142 = vector.broadcast %141 : vector<1x32xf32> to vector<16x32xf32>
    %143 = arith.addf %140, %142 : vector<16x32xf32>
    %144 = arith.addf %6, %143 : vector<16x32xf32>
    %cst_44 = arith.constant dense<0.000000e+00> : vector<16xf32>
    %145 = vector.multi_reduction <add>, %144, %cst_44 [1] : vector<16x32xf32> to vector<16xf32>
    %146 = vector.shape_cast %145 : vector<16xf32> to vector<16x1xf32>
    %cst_45 = arith.constant 3.200000e+01 : f32
    %147 = vector.broadcast %cst_45 : f32 to vector<16x1xf32>
    %148 = arith.divf %146, %147 : vector<16x1xf32>
    %149 = vector.broadcast %148 : vector<16x1xf32> to vector<16x32xf32>
    %150 = arith.subf %144, %149 : vector<16x32xf32>
    %151 = arith.mulf %150, %150 : vector<16x32xf32>
    %cst_46 = arith.constant dense<0.000000e+00> : vector<16xf32>
    %152 = vector.multi_reduction <add>, %151, %cst_46 [1] : vector<16x32xf32> to vector<16xf32>
    %153 = vector.shape_cast %152 : vector<16xf32> to vector<16x1xf32>
    %cst_47 = arith.constant 3.200000e+01 : f32
    %154 = vector.broadcast %cst_47 : f32 to vector<16x1xf32>
    %155 = arith.divf %153, %154 : vector<16x1xf32>
    %156 = vector.broadcast %148 : vector<16x1xf32> to vector<16x32xf32>
    %157 = arith.subf %144, %156 : vector<16x32xf32>
    %cst_48 = arith.constant 9.99999974E-6 : f32
    %158 = vector.broadcast %cst_48 : f32 to vector<16x1xf32>
    %159 = arith.addf %155, %158 : vector<16x1xf32>
    %160 = math.rsqrt %159 : vector<16x1xf32>
    %161 = vector.broadcast %160 : vector<16x1xf32> to vector<16x32xf32>
    %162 = arith.mulf %157, %161 : vector<16x32xf32>
    %c0_49 = arith.constant 0 : index
    %c0_50 = arith.constant 0 : index
    %163 = vector.load %arg10[%c0_49, %c0_50] : memref<1x32xf32, #tpu.memory_space<vmem>>, vector<1x32xf32>
    %164 = vector.broadcast %163 : vector<1x32xf32> to vector<16x32xf32>
    %165 = arith.mulf %162, %164 : vector<16x32xf32>
    %c0_51 = arith.constant 0 : index
    %c0_52 = arith.constant 0 : index
    %166 = vector.load %arg11[%c0_51, %c0_52] : memref<1x32xf32, #tpu.memory_space<vmem>>, vector<1x32xf32>
    %167 = vector.broadcast %166 : vector<1x32xf32> to vector<16x32xf32>
    %168 = arith.addf %165, %167 : vector<16x32xf32>
    %169 = arith.truncf %168 : vector<16x32xf32> to vector<16x32xbf16>
    %c0_53 = arith.constant 0 : index
    %c0_54 = arith.constant 0 : index
    %170 = vector.load %arg12[%c0_53, %c0_54] : memref<32x64xbf16, #tpu.memory_space<vmem>>, vector<32x64xbf16>
    %cst_55 = arith.constant dense<0.000000e+00> : vector<16x64xf32>
    %171 = tpu.matmul %169, %170, %cst_55 {dimension_numbers = #tpu.dot_dimension_numbers<[1], [0], [0], [1], [0, 0, 1, 1], [], []>} : vector<16x32xbf16>, vector<32x64xbf16>, vector<16x64xf32> -> vector<16x64xf32>
    %c0_56 = arith.constant 0 : index
    %c0_57 = arith.constant 0 : index
    %172 = vector.load %arg13[%c0_56, %c0_57] : memref<1x64xf32, #tpu.memory_space<vmem>>, vector<1x64xf32>
    %173 = vector.broadcast %172 : vector<1x64xf32> to vector<16x64xf32>
    %174 = arith.addf %171, %173 : vector<16x64xf32>
    %175 = arith.mulf %174, %174 : vector<16x64xf32>
    %176 = arith.mulf %174, %175 : vector<16x64xf32>
    %cst_58 = arith.constant 4.471500e-02 : f32
    %177 = vector.broadcast %cst_58 : f32 to vector<16x64xf32>
    %178 = arith.mulf %177, %176 : vector<16x64xf32>
    %179 = arith.addf %174, %178 : vector<16x64xf32>
    %cst_59 = arith.constant 0.797884583 : f32
    %180 = vector.broadcast %cst_59 : f32 to vector<16x64xf32>
    %181 = arith.mulf %180, %179 : vector<16x64xf32>
    %182 = math.tanh %181 : vector<16x64xf32>
    %cst_60 = arith.constant 1.000000e+00 : f32
    %183 = vector.broadcast %cst_60 : f32 to vector<16x64xf32>
    %184 = arith.addf %183, %182 : vector<16x64xf32>
    %cst_61 = arith.constant 5.000000e-01 : f32
    %185 = vector.broadcast %cst_61 : f32 to vector<16x64xf32>
    %186 = arith.mulf %185, %184 : vector<16x64xf32>
    %187 = arith.mulf %174, %186 : vector<16x64xf32>
    %188 = arith.truncf %187 : vector<16x64xf32> to vector<16x64xbf16>
    %c0_62 = arith.constant 0 : index
    %c0_63 = arith.constant 0 : index
    %189 = vector.load %arg14[%c0_62, %c0_63] : memref<64x32xbf16, #tpu.memory_space<vmem>>, vector<64x32xbf16>
    %cst_64 = arith.constant dense<0.000000e+00> : vector<16x32xf32>
    %190 = tpu.matmul %188, %189, %cst_64 {dimension_numbers = #tpu.dot_dimension_numbers<[1], [0], [0], [1], [0, 0, 1, 1], [], []>} : vector<16x64xbf16>, vector<64x32xbf16>, vector<16x32xf32> -> vector<16x32xf32>
    %c0_65 = arith.constant 0 : index
    %c0_66 = arith.constant 0 : index
    %191 = vector.load %arg15[%c0_65, %c0_66] : memref<1x32xf32, #tpu.memory_space<vmem>>, vector<1x32xf32>
    %192 = vector.broadcast %191 : vector<1x32xf32> to vector<16x32xf32>
    %193 = arith.addf %190, %192 : vector<16x32xf32>
    %194 = arith.addf %144, %193 : vector<16x32xf32>
    %195 = arith.truncf %194 : vector<16x32xf32> to vector<16x32xbf16>
    %c0_67 = arith.constant 0 : index
    %c0_68 = arith.constant 0 : index
    %196 = vector.load %arg16[%c0_67, %c0_68] : memref<32x9xbf16, #tpu.memory_space<vmem>>, vector<32x9xbf16>
    %cst_69 = arith.constant dense<0.000000e+00> : vector<16x9xf32>
    %197 = tpu.matmul %195, %196, %cst_69 {dimension_numbers = #tpu.dot_dimension_numbers<[1], [0], [0], [1], [0, 0, 1, 1], [], []>} : vector<16x32xbf16>, vector<32x9xbf16>, vector<16x9xf32> -> vector<16x9xf32>
    %c0_70 = arith.constant 0 : index
    %c0_71 = arith.constant 0 : index
    %198 = vector.load %arg17[%c0_70, %c0_71] : memref<1x9xf32, #tpu.memory_space<vmem>>, vector<1x9xf32>
    %199 = vector.broadcast %198 : vector<1x9xf32> to vector<16x9xf32>
    %200 = arith.addf %197, %199 : vector<16x9xf32>
    %c0_72 = arith.constant 0 : index
    %c0_73 = arith.constant 0 : index
    %201 = vector.load %arg18[%c0_72, %c0_73] : memref<16x9xf32, #tpu.memory_space<vmem>>, vector<16x9xf32>
    tpu.vector_store %arg18[%c0_72, %c0_73], %200 {strides = array<i32>} : memref<16x9xf32, #tpu.memory_space<vmem>>, vector<16x9xf32>,
    return
  }
  func.func @transform_0(%arg0: i32) -> (i32, i32) {
    %c0_i32 = arith.constant 0 : i32
    %c0_i32_0 = arith.constant 0 : i32
    return %arg0, %c0_i32 : i32, i32
  }
  func.func @transform_1(%arg0: i32) -> (i32, i32) {
    %c0_i32 = arith.constant 0 : i32
    %c0_i32_0 = arith.constant 0 : i32
    %c0_i32_1 = arith.constant 0 : i32
    return %c0_i32, %c0_i32_0 : i32, i32
  }
  func.func @transform_2(%arg0: i32) -> (i32, i32) {
    %c0_i32 = arith.constant 0 : i32
    %c0_i32_0 = arith.constant 0 : i32
    %c0_i32_1 = arith.constant 0 : i32
    return %c0_i32, %c0_i32_0 : i32, i32
  }
  func.func @transform_3(%arg0: i32) -> (i32, i32) {
    %c0_i32 = arith.constant 0 : i32
    %c0_i32_0 = arith.constant 0 : i32
    %c0_i32_1 = arith.constant 0 : i32
    return %c0_i32, %c0_i32_0 : i32, i32
  }
  func.func @transform_4(%arg0: i32) -> (i32, i32) {
    %c0_i32 = arith.constant 0 : i32
    %c0_i32_0 = arith.constant 0 : i32
    %c0_i32_1 = arith.constant 0 : i32
    return %c0_i32, %c0_i32_0 : i32, i32
  }
  func.func @transform_5(%arg0: i32) -> (i32, i32) {
    %c0_i32 = arith.constant 0 : i32
    %c0_i32_0 = arith.constant 0 : i32
    %c0_i32_1 = arith.constant 0 : i32
    return %c0_i32, %c0_i32_0 : i32, i32
  }
  func.func @transform_6(%arg0: i32) -> (i32, i32) {
    %c0_i32 = arith.constant 0 : i32
    %c0_i32_0 = arith.constant 0 : i32
    %c0_i32_1 = arith.constant 0 : i32
    return %c0_i32, %c0_i32_0 : i32, i32
  }
  func.func @transform_7(%arg0: i32) -> (i32, i32) {
    %c0_i32 = arith.constant 0 : i32
    %c0_i32_0 = arith.constant 0 : i32
    %c0_i32_1 = arith.constant 0 : i32
    return %c0_i32, %c0_i32_0 : i32, i32
  }
  func.func @transform_8(%arg0: i32) -> (i32, i32) {
    %c0_i32 = arith.constant 0 : i32
    %c0_i32_0 = arith.constant 0 : i32
    %c0_i32_1 = arith.constant 0 : i32
    return %c0_i32, %c0_i32_0 : i32, i32
  }
  func.func @transform_9(%arg0: i32) -> (i32, i32) {
    %c0_i32 = arith.constant 0 : i32
    %c0_i32_0 = arith.constant 0 : i32
    %c0_i32_1 = arith.constant 0 : i32
    return %c0_i32, %c0_i32_0 : i32, i32
  }
  func.func @transform_10(%arg0: i32) -> (i32, i32) {
    %c0_i32 = arith.constant 0 : i32
    %c0_i32_0 = arith.constant 0 : i32
    %c0_i32_1 = arith.constant 0 : i32
    return %c0_i32, %c0_i32_0 : i32, i32
  }
  func.func @transform_11(%arg0: i32) -> (i32, i32) {
    %c0_i32 = arith.constant 0 : i32
    %c0_i32_0 = arith.constant 0 : i32
    %c0_i32_1 = arith.constant 0 : i32
    return %c0_i32, %c0_i32_0 : i32, i32
  }
  func.func @transform_12(%arg0: i32) -> (i32, i32) {
    %c0_i32 = arith.constant 0 : i32
    %c0_i32_0 = arith.constant 0 : i32
    %c0_i32_1 = arith.constant 0 : i32
    return %c0_i32, %c0_i32_0 : i32, i32
  }
  func.func @transform_13(%arg0: i32) -> (i32, i32) {
    %c0_i32 = arith.constant 0 : i32
    %c0_i32_0 = arith.constant 0 : i32
    %c0_i32_1 = arith.constant 0 : i32
    return %c0_i32, %c0_i32_0 : i32, i32
  }
  func.func @transform_14(%arg0: i32) -> (i32, i32) {
    %c0_i32 = arith.constant 0 : i32
    %c0_i32_0 = arith.constant 0 : i32
    %c0_i32_1 = arith.constant 0 : i32
    return %c0_i32, %c0_i32_0 : i32, i32
  }
  func.func @transform_15(%arg0: i32) -> (i32, i32) {
    %c0_i32 = arith.constant 0 : i32
    %c0_i32_0 = arith.constant 0 : i32
    %c0_i32_1 = arith.constant 0 : i32
    return %c0_i32, %c0_i32_0 : i32, i32
  }
  func.func @transform_16(%arg0: i32) -> (i32, i32) {
    %c0_i32 = arith.constant 0 : i32
    %c0_i32_0 = arith.constant 0 : i32
    %c0_i32_1 = arith.constant 0 : i32
    return %c0_i32, %c0_i32_0 : i32, i32
  }
  func.func @transform_17(%arg0: i32) -> (i32, i32) {
    %c0_i32 = arith.constant 0 : i32
    %c0_i32_0 = arith.constant 0 : i32
    return %arg0, %c0_i32 : i32, i32
  }
}

module attributes {stable_mosaic.version = 11 : i64} {
  func.func @_fused_path_kernel(%arg0: i32, %arg1: memref<32x4xf32, #tpu.memory_space<vmem>>, %arg2: memref<4x32xbf16, #tpu.memory_space<vmem>>, %arg3: memref<1x32xf32, #tpu.memory_space<vmem>>, %arg4: memref<1x32xf32, #tpu.memory_space<vmem>>, %arg5: memref<1x32xf32, #tpu.memory_space<vmem>>, %arg6: memref<32x96xbf16, #tpu.memory_space<vmem>>, %arg7: memref<1x96xf32, #tpu.memory_space<vmem>>, %arg8: memref<32x32xbf16, #tpu.memory_space<vmem>>, %arg9: memref<1x32xf32, #tpu.memory_space<vmem>>, %arg10: memref<1x32xf32, #tpu.memory_space<vmem>>, %arg11: memref<1x32xf32, #tpu.memory_space<vmem>>, %arg12: memref<32x64xbf16, #tpu.memory_space<vmem>>, %arg13: memref<1x64xf32, #tpu.memory_space<vmem>>, %arg14: memref<64x32xbf16, #tpu.memory_space<vmem>>, %arg15: memref<1x32xf32, #tpu.memory_space<vmem>>, %arg16: memref<32x4xbf16, #tpu.memory_space<vmem>>, %arg17: memref<1x4xf32, #tpu.memory_space<vmem>>, %arg18: memref<32x4xf32, #tpu.memory_space<vmem>>) attributes {dimension_semantics = [#tpu.dimension_semantics<parallel>], iteration_bounds = array<i64: 2>, scalar_prefetch = 0 : i64, scratch_operands = 0 : i64, tpu.core_type = #tpu.core_type<tc>, window_params = [{transform_indices = @transform_0, window_bounds = array<i64: 32, 4>}, {pipeline_mode = #tpu.pipeline_mode<synchronous>, transform_indices = @transform_1, window_bounds = array<i64: 4, 32>}, {pipeline_mode = #tpu.pipeline_mode<synchronous>, transform_indices = @transform_2, window_bounds = array<i64: 1, 32>}, {pipeline_mode = #tpu.pipeline_mode<synchronous>, transform_indices = @transform_3, window_bounds = array<i64: 1, 32>}, {pipeline_mode = #tpu.pipeline_mode<synchronous>, transform_indices = @transform_4, window_bounds = array<i64: 1, 32>}, {pipeline_mode = #tpu.pipeline_mode<synchronous>, transform_indices = @transform_5, window_bounds = array<i64: 32, 96>}, {pipeline_mode = #tpu.pipeline_mode<synchronous>, transform_indices = @transform_6, window_bounds = array<i64: 1, 96>}, {pipeline_mode = #tpu.pipeline_mode<synchronous>, transform_indices = @transform_7, window_bounds = array<i64: 32, 32>}, {pipeline_mode = #tpu.pipeline_mode<synchronous>, transform_indices = @transform_8, window_bounds = array<i64: 1, 32>}, {pipeline_mode = #tpu.pipeline_mode<synchronous>, transform_indices = @transform_9, window_bounds = array<i64: 1, 32>}, {pipeline_mode = #tpu.pipeline_mode<synchronous>, transform_indices = @transform_10, window_bounds = array<i64: 1, 32>}, {pipeline_mode = #tpu.pipeline_mode<synchronous>, transform_indices = @transform_11, window_bounds = array<i64: 32, 64>}, {pipeline_mode = #tpu.pipeline_mode<synchronous>, transform_indices = @transform_12, window_bounds = array<i64: 1, 64>}, {pipeline_mode = #tpu.pipeline_mode<synchronous>, transform_indices = @transform_13, window_bounds = array<i64: 64, 32>}, {pipeline_mode = #tpu.pipeline_mode<synchronous>, transform_indices = @transform_14, window_bounds = array<i64: 1, 32>}, {pipeline_mode = #tpu.pipeline_mode<synchronous>, transform_indices = @transform_15, window_bounds = array<i64: 32, 4>}, {pipeline_mode = #tpu.pipeline_mode<synchronous>, transform_indices = @transform_16, window_bounds = array<i64: 1, 4>}, {transform_indices = @transform_17, window_bounds = array<i64: 32, 4>}]} {
    %c0 = arith.constant 0 : index
    %c0_0 = arith.constant 0 : index
    %0 = vector.load %arg1[%c0, %c0_0] : memref<32x4xf32, #tpu.memory_space<vmem>>, vector<32x4xf32>
    %1 = arith.truncf %0 : vector<32x4xf32> to vector<32x4xbf16>
    %c0_1 = arith.constant 0 : index
    %c0_2 = arith.constant 0 : index
    %2 = vector.load %arg2[%c0_1, %c0_2] : memref<4x32xbf16, #tpu.memory_space<vmem>>, vector<4x32xbf16>
    %cst = arith.constant dense<0.000000e+00> : vector<32x32xf32>
    %3 = tpu.matmul %1, %2, %cst {dimension_numbers = #tpu.dot_dimension_numbers<[1], [0], [0], [1], [0, 0, 1, 1], [], []>} : vector<32x4xbf16>, vector<4x32xbf16>, vector<32x32xf32> -> vector<32x32xf32>
    %c0_3 = arith.constant 0 : index
    %c0_4 = arith.constant 0 : index
    %4 = vector.load %arg3[%c0_3, %c0_4] : memref<1x32xf32, #tpu.memory_space<vmem>>, vector<1x32xf32>
    %5 = vector.broadcast %4 : vector<1x32xf32> to vector<32x32xf32>
    %6 = arith.addf %3, %5 : vector<32x32xf32>
    %cst_5 = arith.constant dense<0.000000e+00> : vector<32xf32>
    %7 = vector.multi_reduction <add>, %6, %cst_5 [1] : vector<32x32xf32> to vector<32xf32>
    %8 = vector.shape_cast %7 : vector<32xf32> to vector<32x1xf32>
    %cst_6 = arith.constant 3.200000e+01 : f32
    %9 = vector.broadcast %cst_6 : f32 to vector<32x1xf32>
    %10 = arith.divf %8, %9 : vector<32x1xf32>
    %11 = vector.broadcast %10 : vector<32x1xf32> to vector<32x32xf32>
    %12 = arith.subf %6, %11 : vector<32x32xf32>
    %13 = arith.mulf %12, %12 : vector<32x32xf32>
    %cst_7 = arith.constant dense<0.000000e+00> : vector<32xf32>
    %14 = vector.multi_reduction <add>, %13, %cst_7 [1] : vector<32x32xf32> to vector<32xf32>
    %15 = vector.shape_cast %14 : vector<32xf32> to vector<32x1xf32>
    %cst_8 = arith.constant 3.200000e+01 : f32
    %16 = vector.broadcast %cst_8 : f32 to vector<32x1xf32>
    %17 = arith.divf %15, %16 : vector<32x1xf32>
    %18 = vector.broadcast %10 : vector<32x1xf32> to vector<32x32xf32>
    %19 = arith.subf %6, %18 : vector<32x32xf32>
    %cst_9 = arith.constant 9.99999974E-6 : f32
    %20 = vector.broadcast %cst_9 : f32 to vector<32x1xf32>
    %21 = arith.addf %17, %20 : vector<32x1xf32>
    %22 = math.rsqrt %21 : vector<32x1xf32>
    %23 = vector.broadcast %22 : vector<32x1xf32> to vector<32x32xf32>
    %24 = arith.mulf %19, %23 : vector<32x32xf32>
    %c0_10 = arith.constant 0 : index
    %c0_11 = arith.constant 0 : index
    %25 = vector.load %arg4[%c0_10, %c0_11] : memref<1x32xf32, #tpu.memory_space<vmem>>, vector<1x32xf32>
    %26 = vector.broadcast %25 : vector<1x32xf32> to vector<32x32xf32>
    %27 = arith.mulf %24, %26 : vector<32x32xf32>
    %c0_12 = arith.constant 0 : index
    %c0_13 = arith.constant 0 : index
    %28 = vector.load %arg5[%c0_12, %c0_13] : memref<1x32xf32, #tpu.memory_space<vmem>>, vector<1x32xf32>
    %29 = vector.broadcast %28 : vector<1x32xf32> to vector<32x32xf32>
    %30 = arith.addf %27, %29 : vector<32x32xf32>
    %31 = arith.truncf %30 : vector<32x32xf32> to vector<32x32xbf16>
    %c0_14 = arith.constant 0 : index
    %c0_15 = arith.constant 0 : index
    %32 = vector.load %arg6[%c0_14, %c0_15] : memref<32x96xbf16, #tpu.memory_space<vmem>>, vector<32x96xbf16>
    %cst_16 = arith.constant dense<0.000000e+00> : vector<32x96xf32>
    %33 = tpu.matmul %31, %32, %cst_16 {dimension_numbers = #tpu.dot_dimension_numbers<[1], [0], [0], [1], [0, 0, 1, 1], [], []>} : vector<32x32xbf16>, vector<32x96xbf16>, vector<32x96xf32> -> vector<32x96xf32>
    %c0_17 = arith.constant 0 : index
    %c0_18 = arith.constant 0 : index
    %34 = vector.load %arg7[%c0_17, %c0_18] : memref<1x96xf32, #tpu.memory_space<vmem>>, vector<1x96xf32>
    %35 = vector.broadcast %34 : vector<1x96xf32> to vector<32x96xf32>
    %36 = arith.addf %33, %35 : vector<32x96xf32>
    %37 = vector.extract_strided_slice %36 {offsets = [0, 0], sizes = [32, 8], strides = [1, 1]} : vector<32x96xf32> to vector<32x8xf32>
    %38 = vector.shape_cast %37 : vector<32x8xf32> to vector<1x32x8xf32>
    %39 = arith.truncf %38 : vector<1x32x8xf32> to vector<1x32x8xbf16>
    %40 = vector.extract_strided_slice %36 {offsets = [0, 32], sizes = [32, 8], strides = [1, 1]} : vector<32x96xf32> to vector<32x8xf32>
    %41 = vector.shape_cast %40 : vector<32x8xf32> to vector<1x32x8xf32>
    %42 = arith.truncf %41 : vector<1x32x8xf32> to vector<1x32x8xbf16>
    %43 = vector.extract_strided_slice %36 {offsets = [0, 64], sizes = [32, 8], strides = [1, 1]} : vector<32x96xf32> to vector<32x8xf32>
    %44 = vector.shape_cast %43 : vector<32x8xf32> to vector<1x32x8xf32>
    %45 = arith.truncf %44 : vector<1x32x8xf32> to vector<1x32x8xbf16>
    "tpu.trace_start"() <{level = 10 : i32, message = "bqd,bkd->bqk"}> : () -> ()
    %cst_19 = arith.constant dense<0.000000e+00> : vector<1x32x32xf32>
    %46 = tpu.matmul %39, %42, %cst_19 {dimension_numbers = #tpu.dot_dimension_numbers<[2], [2], [1], [1], [0, 0, 0, 1, 1, 1], [0], [0]>} : vector<1x32x8xbf16>, vector<1x32x8xbf16>, vector<1x32x32xf32> -> vector<1x32x32xf32>
    "tpu.trace_stop"() : () -> ()
    %cst_20 = arith.constant 0.353553385 : f32
    %47 = vector.broadcast %cst_20 : f32 to vector<1x32x32xf32>
    %48 = arith.mulf %46, %47 : vector<1x32x32xf32>
    %cst_21 = arith.constant dense<0xFF800000> : vector<1x32xf32>
    %49 = vector.multi_reduction <maximumf>, %48, %cst_21 [2] : vector<1x32x32xf32> to vector<1x32xf32>
    %50 = vector.shape_cast %49 : vector<1x32xf32> to vector<1x32x1xf32>
    %51 = vector.broadcast %50 : vector<1x32x1xf32> to vector<1x32x32xf32>
    %52 = arith.subf %48, %51 : vector<1x32x32xf32>
    %53 = math.exp %52 : vector<1x32x32xf32>
    %cst_22 = arith.constant dense<0.000000e+00> : vector<1x32xf32>
    %54 = vector.multi_reduction <add>, %53, %cst_22 [2] : vector<1x32x32xf32> to vector<1x32xf32>
    %55 = vector.shape_cast %54 : vector<1x32xf32> to vector<1x32x1xf32>
    %56 = tpu.reciprocal %55 {approx = true} : vector<1x32x1xf32> -> vector<1x32x1xf32>
    %57 = vector.broadcast %56 : vector<1x32x1xf32> to vector<1x32x32xf32>
    %58 = arith.mulf %53, %57 : vector<1x32x32xf32>
    %59 = arith.truncf %58 : vector<1x32x32xf32> to vector<1x32x32xbf16>
    "tpu.trace_start"() <{level = 10 : i32, message = "bqk,bkd->bqd"}> : () -> ()
    %cst_23 = arith.constant dense<0.000000e+00> : vector<1x32x8xf32>
    %60 = tpu.matmul %59, %45, %cst_23 {dimension_numbers = #tpu.dot_dimension_numbers<[2], [1], [1], [2], [0, 0, 0, 1, 1, 2], [0], [0]>} : vector<1x32x32xbf16>, vector<1x32x8xbf16>, vector<1x32x8xf32> -> vector<1x32x8xf32>
    "tpu.trace_stop"() : () -> ()
    %61 = vector.shape_cast %60 : vector<1x32x8xf32> to vector<32x8xf32>
    %62 = vector.extract_strided_slice %36 {offsets = [0, 8], sizes = [32, 8], strides = [1, 1]} : vector<32x96xf32> to vector<32x8xf32>
    %63 = vector.shape_cast %62 : vector<32x8xf32> to vector<1x32x8xf32>
    %64 = arith.truncf %63 : vector<1x32x8xf32> to vector<1x32x8xbf16>
    %65 = vector.extract_strided_slice %36 {offsets = [0, 40], sizes = [32, 8], strides = [1, 1]} : vector<32x96xf32> to vector<32x8xf32>
    %66 = vector.shape_cast %65 : vector<32x8xf32> to vector<1x32x8xf32>
    %67 = arith.truncf %66 : vector<1x32x8xf32> to vector<1x32x8xbf16>
    %68 = vector.extract_strided_slice %36 {offsets = [0, 72], sizes = [32, 8], strides = [1, 1]} : vector<32x96xf32> to vector<32x8xf32>
    %69 = vector.shape_cast %68 : vector<32x8xf32> to vector<1x32x8xf32>
    %70 = arith.truncf %69 : vector<1x32x8xf32> to vector<1x32x8xbf16>
    "tpu.trace_start"() <{level = 10 : i32, message = "bqd,bkd->bqk"}> : () -> ()
    %cst_24 = arith.constant dense<0.000000e+00> : vector<1x32x32xf32>
    %71 = tpu.matmul %64, %67, %cst_24 {dimension_numbers = #tpu.dot_dimension_numbers<[2], [2], [1], [1], [0, 0, 0, 1, 1, 1], [0], [0]>} : vector<1x32x8xbf16>, vector<1x32x8xbf16>, vector<1x32x32xf32> -> vector<1x32x32xf32>
    "tpu.trace_stop"() : () -> ()
    %cst_25 = arith.constant 0.353553385 : f32
    %72 = vector.broadcast %cst_25 : f32 to vector<1x32x32xf32>
    %73 = arith.mulf %71, %72 : vector<1x32x32xf32>
    %cst_26 = arith.constant dense<0xFF800000> : vector<1x32xf32>
    %74 = vector.multi_reduction <maximumf>, %73, %cst_26 [2] : vector<1x32x32xf32> to vector<1x32xf32>
    %75 = vector.shape_cast %74 : vector<1x32xf32> to vector<1x32x1xf32>
    %76 = vector.broadcast %75 : vector<1x32x1xf32> to vector<1x32x32xf32>
    %77 = arith.subf %73, %76 : vector<1x32x32xf32>
    %78 = math.exp %77 : vector<1x32x32xf32>
    %cst_27 = arith.constant dense<0.000000e+00> : vector<1x32xf32>
    %79 = vector.multi_reduction <add>, %78, %cst_27 [2] : vector<1x32x32xf32> to vector<1x32xf32>
    %80 = vector.shape_cast %79 : vector<1x32xf32> to vector<1x32x1xf32>
    %81 = tpu.reciprocal %80 {approx = true} : vector<1x32x1xf32> -> vector<1x32x1xf32>
    %82 = vector.broadcast %81 : vector<1x32x1xf32> to vector<1x32x32xf32>
    %83 = arith.mulf %78, %82 : vector<1x32x32xf32>
    %84 = arith.truncf %83 : vector<1x32x32xf32> to vector<1x32x32xbf16>
    "tpu.trace_start"() <{level = 10 : i32, message = "bqk,bkd->bqd"}> : () -> ()
    %cst_28 = arith.constant dense<0.000000e+00> : vector<1x32x8xf32>
    %85 = tpu.matmul %84, %70, %cst_28 {dimension_numbers = #tpu.dot_dimension_numbers<[2], [1], [1], [2], [0, 0, 0, 1, 1, 2], [0], [0]>} : vector<1x32x32xbf16>, vector<1x32x8xbf16>, vector<1x32x8xf32> -> vector<1x32x8xf32>
    "tpu.trace_stop"() : () -> ()
    %86 = vector.shape_cast %85 : vector<1x32x8xf32> to vector<32x8xf32>
    %87 = vector.extract_strided_slice %36 {offsets = [0, 16], sizes = [32, 8], strides = [1, 1]} : vector<32x96xf32> to vector<32x8xf32>
    %88 = vector.shape_cast %87 : vector<32x8xf32> to vector<1x32x8xf32>
    %89 = arith.truncf %88 : vector<1x32x8xf32> to vector<1x32x8xbf16>
    %90 = vector.extract_strided_slice %36 {offsets = [0, 48], sizes = [32, 8], strides = [1, 1]} : vector<32x96xf32> to vector<32x8xf32>
    %91 = vector.shape_cast %90 : vector<32x8xf32> to vector<1x32x8xf32>
    %92 = arith.truncf %91 : vector<1x32x8xf32> to vector<1x32x8xbf16>
    %93 = vector.extract_strided_slice %36 {offsets = [0, 80], sizes = [32, 8], strides = [1, 1]} : vector<32x96xf32> to vector<32x8xf32>
    %94 = vector.shape_cast %93 : vector<32x8xf32> to vector<1x32x8xf32>
    %95 = arith.truncf %94 : vector<1x32x8xf32> to vector<1x32x8xbf16>
    "tpu.trace_start"() <{level = 10 : i32, message = "bqd,bkd->bqk"}> : () -> ()
    %cst_29 = arith.constant dense<0.000000e+00> : vector<1x32x32xf32>
    %96 = tpu.matmul %89, %92, %cst_29 {dimension_numbers = #tpu.dot_dimension_numbers<[2], [2], [1], [1], [0, 0, 0, 1, 1, 1], [0], [0]>} : vector<1x32x8xbf16>, vector<1x32x8xbf16>, vector<1x32x32xf32> -> vector<1x32x32xf32>
    "tpu.trace_stop"() : () -> ()
    %cst_30 = arith.constant 0.353553385 : f32
    %97 = vector.broadcast %cst_30 : f32 to vector<1x32x32xf32>
    %98 = arith.mulf %96, %97 : vector<1x32x32xf32>
    %cst_31 = arith.constant dense<0xFF800000> : vector<1x32xf32>
    %99 = vector.multi_reduction <maximumf>, %98, %cst_31 [2] : vector<1x32x32xf32> to vector<1x32xf32>
    %100 = vector.shape_cast %99 : vector<1x32xf32> to vector<1x32x1xf32>
    %101 = vector.broadcast %100 : vector<1x32x1xf32> to vector<1x32x32xf32>
    %102 = arith.subf %98, %101 : vector<1x32x32xf32>
    %103 = math.exp %102 : vector<1x32x32xf32>
    %cst_32 = arith.constant dense<0.000000e+00> : vector<1x32xf32>
    %104 = vector.multi_reduction <add>, %103, %cst_32 [2] : vector<1x32x32xf32> to vector<1x32xf32>
    %105 = vector.shape_cast %104 : vector<1x32xf32> to vector<1x32x1xf32>
    %106 = tpu.reciprocal %105 {approx = true} : vector<1x32x1xf32> -> vector<1x32x1xf32>
    %107 = vector.broadcast %106 : vector<1x32x1xf32> to vector<1x32x32xf32>
    %108 = arith.mulf %103, %107 : vector<1x32x32xf32>
    %109 = arith.truncf %108 : vector<1x32x32xf32> to vector<1x32x32xbf16>
    "tpu.trace_start"() <{level = 10 : i32, message = "bqk,bkd->bqd"}> : () -> ()
    %cst_33 = arith.constant dense<0.000000e+00> : vector<1x32x8xf32>
    %110 = tpu.matmul %109, %95, %cst_33 {dimension_numbers = #tpu.dot_dimension_numbers<[2], [1], [1], [2], [0, 0, 0, 1, 1, 2], [0], [0]>} : vector<1x32x32xbf16>, vector<1x32x8xbf16>, vector<1x32x8xf32> -> vector<1x32x8xf32>
    "tpu.trace_stop"() : () -> ()
    %111 = vector.shape_cast %110 : vector<1x32x8xf32> to vector<32x8xf32>
    %112 = vector.extract_strided_slice %36 {offsets = [0, 24], sizes = [32, 8], strides = [1, 1]} : vector<32x96xf32> to vector<32x8xf32>
    %113 = vector.shape_cast %112 : vector<32x8xf32> to vector<1x32x8xf32>
    %114 = arith.truncf %113 : vector<1x32x8xf32> to vector<1x32x8xbf16>
    %115 = vector.extract_strided_slice %36 {offsets = [0, 56], sizes = [32, 8], strides = [1, 1]} : vector<32x96xf32> to vector<32x8xf32>
    %116 = vector.shape_cast %115 : vector<32x8xf32> to vector<1x32x8xf32>
    %117 = arith.truncf %116 : vector<1x32x8xf32> to vector<1x32x8xbf16>
    %118 = vector.extract_strided_slice %36 {offsets = [0, 88], sizes = [32, 8], strides = [1, 1]} : vector<32x96xf32> to vector<32x8xf32>
    %119 = vector.shape_cast %118 : vector<32x8xf32> to vector<1x32x8xf32>
    %120 = arith.truncf %119 : vector<1x32x8xf32> to vector<1x32x8xbf16>
    "tpu.trace_start"() <{level = 10 : i32, message = "bqd,bkd->bqk"}> : () -> ()
    %cst_34 = arith.constant dense<0.000000e+00> : vector<1x32x32xf32>
    %121 = tpu.matmul %114, %117, %cst_34 {dimension_numbers = #tpu.dot_dimension_numbers<[2], [2], [1], [1], [0, 0, 0, 1, 1, 1], [0], [0]>} : vector<1x32x8xbf16>, vector<1x32x8xbf16>, vector<1x32x32xf32> -> vector<1x32x32xf32>
    "tpu.trace_stop"() : () -> ()
    %cst_35 = arith.constant 0.353553385 : f32
    %122 = vector.broadcast %cst_35 : f32 to vector<1x32x32xf32>
    %123 = arith.mulf %121, %122 : vector<1x32x32xf32>
    %cst_36 = arith.constant dense<0xFF800000> : vector<1x32xf32>
    %124 = vector.multi_reduction <maximumf>, %123, %cst_36 [2] : vector<1x32x32xf32> to vector<1x32xf32>
    %125 = vector.shape_cast %124 : vector<1x32xf32> to vector<1x32x1xf32>
    %126 = vector.broadcast %125 : vector<1x32x1xf32> to vector<1x32x32xf32>
    %127 = arith.subf %123, %126 : vector<1x32x32xf32>
    %128 = math.exp %127 : vector<1x32x32xf32>
    %cst_37 = arith.constant dense<0.000000e+00> : vector<1x32xf32>
    %129 = vector.multi_reduction <add>, %128, %cst_37 [2] : vector<1x32x32xf32> to vector<1x32xf32>
    %130 = vector.shape_cast %129 : vector<1x32xf32> to vector<1x32x1xf32>
    %131 = tpu.reciprocal %130 {approx = true} : vector<1x32x1xf32> -> vector<1x32x1xf32>
    %132 = vector.broadcast %131 : vector<1x32x1xf32> to vector<1x32x32xf32>
    %133 = arith.mulf %128, %132 : vector<1x32x32xf32>
    %134 = arith.truncf %133 : vector<1x32x32xf32> to vector<1x32x32xbf16>
    "tpu.trace_start"() <{level = 10 : i32, message = "bqk,bkd->bqd"}> : () -> ()
    %cst_38 = arith.constant dense<0.000000e+00> : vector<1x32x8xf32>
    %135 = tpu.matmul %134, %120, %cst_38 {dimension_numbers = #tpu.dot_dimension_numbers<[2], [1], [1], [2], [0, 0, 0, 1, 1, 2], [0], [0]>} : vector<1x32x32xbf16>, vector<1x32x8xbf16>, vector<1x32x8xf32> -> vector<1x32x8xf32>
    "tpu.trace_stop"() : () -> ()
    %136 = vector.shape_cast %135 : vector<1x32x8xf32> to vector<32x8xf32>
    %137 = tpu.concatenate %61, %86, %111, %136 in 1 : vector<32x8xf32>, vector<32x8xf32>, vector<32x8xf32>, vector<32x8xf32> -> vector<32x32xf32>
    %138 = arith.truncf %137 : vector<32x32xf32> to vector<32x32xbf16>
    %c0_39 = arith.constant 0 : index
    %c0_40 = arith.constant 0 : index
    %139 = vector.load %arg8[%c0_39, %c0_40] : memref<32x32xbf16, #tpu.memory_space<vmem>>, vector<32x32xbf16>
    %cst_41 = arith.constant dense<0.000000e+00> : vector<32x32xf32>
    %140 = tpu.matmul %138, %139, %cst_41 {dimension_numbers = #tpu.dot_dimension_numbers<[1], [0], [0], [1], [0, 0, 1, 1], [], []>} : vector<32x32xbf16>, vector<32x32xbf16>, vector<32x32xf32> -> vector<32x32xf32>
    %c0_42 = arith.constant 0 : index
    %c0_43 = arith.constant 0 : index
    %141 = vector.load %arg9[%c0_42, %c0_43] : memref<1x32xf32, #tpu.memory_space<vmem>>, vector<1x32xf32>
    %142 = vector.broadcast %141 : vector<1x32xf32> to vector<32x32xf32>
    %143 = arith.addf %140, %142 : vector<32x32xf32>
    %144 = arith.addf %6, %143 : vector<32x32xf32>
    %cst_44 = arith.constant dense<0.000000e+00> : vector<32xf32>
    %145 = vector.multi_reduction <add>, %144, %cst_44 [1] : vector<32x32xf32> to vector<32xf32>
    %146 = vector.shape_cast %145 : vector<32xf32> to vector<32x1xf32>
    %cst_45 = arith.constant 3.200000e+01 : f32
    %147 = vector.broadcast %cst_45 : f32 to vector<32x1xf32>
    %148 = arith.divf %146, %147 : vector<32x1xf32>
    %149 = vector.broadcast %148 : vector<32x1xf32> to vector<32x32xf32>
    %150 = arith.subf %144, %149 : vector<32x32xf32>
    %151 = arith.mulf %150, %150 : vector<32x32xf32>
    %cst_46 = arith.constant dense<0.000000e+00> : vector<32xf32>
    %152 = vector.multi_reduction <add>, %151, %cst_46 [1] : vector<32x32xf32> to vector<32xf32>
    %153 = vector.shape_cast %152 : vector<32xf32> to vector<32x1xf32>
    %cst_47 = arith.constant 3.200000e+01 : f32
    %154 = vector.broadcast %cst_47 : f32 to vector<32x1xf32>
    %155 = arith.divf %153, %154 : vector<32x1xf32>
    %156 = vector.broadcast %148 : vector<32x1xf32> to vector<32x32xf32>
    %157 = arith.subf %144, %156 : vector<32x32xf32>
    %cst_48 = arith.constant 9.99999974E-6 : f32
    %158 = vector.broadcast %cst_48 : f32 to vector<32x1xf32>
    %159 = arith.addf %155, %158 : vector<32x1xf32>
    %160 = math.rsqrt %159 : vector<32x1xf32>
    %161 = vector.broadcast %160 : vector<32x1xf32> to vector<32x32xf32>
    %162 = arith.mulf %157, %161 : vector<32x32xf32>
    %c0_49 = arith.constant 0 : index
    %c0_50 = arith.constant 0 : index
    %163 = vector.load %arg10[%c0_49, %c0_50] : memref<1x32xf32, #tpu.memory_space<vmem>>, vector<1x32xf32>
    %164 = vector.broadcast %163 : vector<1x32xf32> to vector<32x32xf32>
    %165 = arith.mulf %162, %164 : vector<32x32xf32>
    %c0_51 = arith.constant 0 : index
    %c0_52 = arith.constant 0 : index
    %166 = vector.load %arg11[%c0_51, %c0_52] : memref<1x32xf32, #tpu.memory_space<vmem>>, vector<1x32xf32>
    %167 = vector.broadcast %166 : vector<1x32xf32> to vector<32x32xf32>
    %168 = arith.addf %165, %167 : vector<32x32xf32>
    %169 = arith.truncf %168 : vector<32x32xf32> to vector<32x32xbf16>
    %c0_53 = arith.constant 0 : index
    %c0_54 = arith.constant 0 : index
    %170 = vector.load %arg12[%c0_53, %c0_54] : memref<32x64xbf16, #tpu.memory_space<vmem>>, vector<32x64xbf16>
    %cst_55 = arith.constant dense<0.000000e+00> : vector<32x64xf32>
    %171 = tpu.matmul %169, %170, %cst_55 {dimension_numbers = #tpu.dot_dimension_numbers<[1], [0], [0], [1], [0, 0, 1, 1], [], []>} : vector<32x32xbf16>, vector<32x64xbf16>, vector<32x64xf32> -> vector<32x64xf32>
    %c0_56 = arith.constant 0 : index
    %c0_57 = arith.constant 0 : index
    %172 = vector.load %arg13[%c0_56, %c0_57] : memref<1x64xf32, #tpu.memory_space<vmem>>, vector<1x64xf32>
    %173 = vector.broadcast %172 : vector<1x64xf32> to vector<32x64xf32>
    %174 = arith.addf %171, %173 : vector<32x64xf32>
    %175 = arith.mulf %174, %174 : vector<32x64xf32>
    %176 = arith.mulf %174, %175 : vector<32x64xf32>
    %cst_58 = arith.constant 4.471500e-02 : f32
    %177 = vector.broadcast %cst_58 : f32 to vector<32x64xf32>
    %178 = arith.mulf %177, %176 : vector<32x64xf32>
    %179 = arith.addf %174, %178 : vector<32x64xf32>
    %cst_59 = arith.constant 0.797884583 : f32
    %180 = vector.broadcast %cst_59 : f32 to vector<32x64xf32>
    %181 = arith.mulf %180, %179 : vector<32x64xf32>
    %182 = math.tanh %181 : vector<32x64xf32>
    %cst_60 = arith.constant 1.000000e+00 : f32
    %183 = vector.broadcast %cst_60 : f32 to vector<32x64xf32>
    %184 = arith.addf %183, %182 : vector<32x64xf32>
    %cst_61 = arith.constant 5.000000e-01 : f32
    %185 = vector.broadcast %cst_61 : f32 to vector<32x64xf32>
    %186 = arith.mulf %185, %184 : vector<32x64xf32>
    %187 = arith.mulf %174, %186 : vector<32x64xf32>
    %188 = arith.truncf %187 : vector<32x64xf32> to vector<32x64xbf16>
    %c0_62 = arith.constant 0 : index
    %c0_63 = arith.constant 0 : index
    %189 = vector.load %arg14[%c0_62, %c0_63] : memref<64x32xbf16, #tpu.memory_space<vmem>>, vector<64x32xbf16>
    %cst_64 = arith.constant dense<0.000000e+00> : vector<32x32xf32>
    %190 = tpu.matmul %188, %189, %cst_64 {dimension_numbers = #tpu.dot_dimension_numbers<[1], [0], [0], [1], [0, 0, 1, 1], [], []>} : vector<32x64xbf16>, vector<64x32xbf16>, vector<32x32xf32> -> vector<32x32xf32>
    %c0_65 = arith.constant 0 : index
    %c0_66 = arith.constant 0 : index
    %191 = vector.load %arg15[%c0_65, %c0_66] : memref<1x32xf32, #tpu.memory_space<vmem>>, vector<1x32xf32>
    %192 = vector.broadcast %191 : vector<1x32xf32> to vector<32x32xf32>
    %193 = arith.addf %190, %192 : vector<32x32xf32>
    %194 = arith.addf %144, %193 : vector<32x32xf32>
    %195 = arith.truncf %194 : vector<32x32xf32> to vector<32x32xbf16>
    %c0_67 = arith.constant 0 : index
    %c0_68 = arith.constant 0 : index
    %196 = vector.load %arg16[%c0_67, %c0_68] : memref<32x4xbf16, #tpu.memory_space<vmem>>, vector<32x4xbf16>
    %cst_69 = arith.constant dense<0.000000e+00> : vector<32x4xf32>
    %197 = tpu.matmul %195, %196, %cst_69 {dimension_numbers = #tpu.dot_dimension_numbers<[1], [0], [0], [1], [0, 0, 1, 1], [], []>} : vector<32x32xbf16>, vector<32x4xbf16>, vector<32x4xf32> -> vector<32x4xf32>
    %c0_70 = arith.constant 0 : index
    %c0_71 = arith.constant 0 : index
    %198 = vector.load %arg17[%c0_70, %c0_71] : memref<1x4xf32, #tpu.memory_space<vmem>>, vector<1x4xf32>
    %199 = vector.broadcast %198 : vector<1x4xf32> to vector<32x4xf32>
    %200 = arith.addf %197, %199 : vector<32x4xf32>
    %c0_72 = arith.constant 0 : index
    %c0_73 = arith.constant 0 : index
    %201 = vector.load %arg18[%c0_72, %c0_73] : memref<32x4xf32, #tpu.memory_space<vmem>>, vector<32x4xf32>
    tpu.vector_store %arg18[%c0_72, %c0_73], %200 {strides = array<i32>} : memref<32x4xf32, #tpu.memory_space<vmem>>, vector<32x4xf32>,
    return
  }
  func.func @transform_0(%arg0: i32) -> (i32, i32) {
    %c0_i32 = arith.constant 0 : i32
    %c0_i32_0 = arith.constant 0 : i32
    return %arg0, %c0_i32 : i32, i32
  }
  func.func @transform_1(%arg0: i32) -> (i32, i32) {
    %c0_i32 = arith.constant 0 : i32
    %c0_i32_0 = arith.constant 0 : i32
    %c0_i32_1 = arith.constant 0 : i32
    return %c0_i32, %c0_i32_0 : i32, i32
  }
  func.func @transform_2(%arg0: i32) -> (i32, i32) {
    %c0_i32 = arith.constant 0 : i32
    %c0_i32_0 = arith.constant 0 : i32
    %c0_i32_1 = arith.constant 0 : i32
    return %c0_i32, %c0_i32_0 : i32, i32
  }
  func.func @transform_3(%arg0: i32) -> (i32, i32) {
    %c0_i32 = arith.constant 0 : i32
    %c0_i32_0 = arith.constant 0 : i32
    %c0_i32_1 = arith.constant 0 : i32
    return %c0_i32, %c0_i32_0 : i32, i32
  }
  func.func @transform_4(%arg0: i32) -> (i32, i32) {
    %c0_i32 = arith.constant 0 : i32
    %c0_i32_0 = arith.constant 0 : i32
    %c0_i32_1 = arith.constant 0 : i32
    return %c0_i32, %c0_i32_0 : i32, i32
  }
  func.func @transform_5(%arg0: i32) -> (i32, i32) {
    %c0_i32 = arith.constant 0 : i32
    %c0_i32_0 = arith.constant 0 : i32
    %c0_i32_1 = arith.constant 0 : i32
    return %c0_i32, %c0_i32_0 : i32, i32
  }
  func.func @transform_6(%arg0: i32) -> (i32, i32) {
    %c0_i32 = arith.constant 0 : i32
    %c0_i32_0 = arith.constant 0 : i32
    %c0_i32_1 = arith.constant 0 : i32
    return %c0_i32, %c0_i32_0 : i32, i32
  }
  func.func @transform_7(%arg0: i32) -> (i32, i32) {
    %c0_i32 = arith.constant 0 : i32
    %c0_i32_0 = arith.constant 0 : i32
    %c0_i32_1 = arith.constant 0 : i32
    return %c0_i32, %c0_i32_0 : i32, i32
  }
  func.func @transform_8(%arg0: i32) -> (i32, i32) {
    %c0_i32 = arith.constant 0 : i32
    %c0_i32_0 = arith.constant 0 : i32
    %c0_i32_1 = arith.constant 0 : i32
    return %c0_i32, %c0_i32_0 : i32, i32
  }
  func.func @transform_9(%arg0: i32) -> (i32, i32) {
    %c0_i32 = arith.constant 0 : i32
    %c0_i32_0 = arith.constant 0 : i32
    %c0_i32_1 = arith.constant 0 : i32
    return %c0_i32, %c0_i32_0 : i32, i32
  }
  func.func @transform_10(%arg0: i32) -> (i32, i32) {
    %c0_i32 = arith.constant 0 : i32
    %c0_i32_0 = arith.constant 0 : i32
    %c0_i32_1 = arith.constant 0 : i32
    return %c0_i32, %c0_i32_0 : i32, i32
  }
  func.func @transform_11(%arg0: i32) -> (i32, i32) {
    %c0_i32 = arith.constant 0 : i32
    %c0_i32_0 = arith.constant 0 : i32
    %c0_i32_1 = arith.constant 0 : i32
    return %c0_i32, %c0_i32_0 : i32, i32
  }
  func.func @transform_12(%arg0: i32) -> (i32, i32) {
    %c0_i32 = arith.constant 0 : i32
    %c0_i32_0 = arith.constant 0 : i32
    %c0_i32_1 = arith.constant 0 : i32
    return %c0_i32, %c0_i32_0 : i32, i32
  }
  func.func @transform_13(%arg0: i32) -> (i32, i32) {
    %c0_i32 = arith.constant 0 : i32
    %c0_i32_0 = arith.constant 0 : i32
    %c0_i32_1 = arith.constant 0 : i32
    return %c0_i32, %c0_i32_0 : i32, i32
  }
  func.func @transform_14(%arg0: i32) -> (i32, i32) {
    %c0_i32 = arith.constant 0 : i32
    %c0_i32_0 = arith.constant 0 : i32
    %c0_i32_1 = arith.constant 0 : i32
    return %c0_i32, %c0_i32_0 : i32, i32
  }
  func.func @transform_15(%arg0: i32) -> (i32, i32) {
    %c0_i32 = arith.constant 0 : i32
    %c0_i32_0 = arith.constant 0 : i32
    %c0_i32_1 = arith.constant 0 : i32
    return %c0_i32, %c0_i32_0 : i32, i32
  }
  func.func @transform_16(%arg0: i32) -> (i32, i32) {
    %c0_i32 = arith.constant 0 : i32
    %c0_i32_0 = arith.constant 0 : i32
    %c0_i32_1 = arith.constant 0 : i32
    return %c0_i32, %c0_i32_0 : i32, i32
  }
  func.func @transform_17(%arg0: i32) -> (i32, i32) {
    %c0_i32 = arith.constant 0 : i32
    %c0_i32_0 = arith.constant 0 : i32
    return %arg0, %c0_i32 : i32, i32
  }
}

</mosaic_0001>

<llo_original>
// kernel: squeeze.2
$region0: #{squeeze.2}
  %s0 = inlined_call_operand.vmem [shape: bf16[2,4,4], index: 0, kind: input, shape index: {}]
  %s1 = inlined_call_operand.vmem [shape: bf16[8,4], index: 1, kind: output, shape index: {}]
  $region1: #{squeeze.2} parent=0
    #allocation0 [shape = 'u8[4096]{0}', space=vmem, size = 0x1000, scoped, tag = 'scoped mem for output reshape']
    #allocation1 [shape = 'u8[16384]{0}', space=vmem, size = 0x4000, scoped, tag = 'scoped mem for input reshape']
    %s3 = smul.u32 1, 2
    %s4 = sshllo.u32 0, %s3
    %s5 = smul.addr 1, 3
    %s6 = scalar_lea.vmem %s0, %s5
    %s7 = sshrl.u32 %s4, 1
    %s8 = sor.u32 %s4, %s7
    %s9 = sand.u32 %s8, 85
    %s10 = sshrl.u32 %s9, 1
    %s11 = sor.u32 %s9, %s10
    %s12 = sand.u32 51, %s11
    %s13 = sshrl.u32 %s12, 2
    %s14 = sor.u32 %s12, %s13
    %s15 = sand.u32 15, %s14
    %v16 = vld [vmem:[%s6] sm:%s15]
    %v17 = vunpack.c.l.bf16 %v16
    %v18 = vunpack.c.h.bf16 %v16
    %s19 = scalar_lea.vmem [#allocation1], 24
    %20 = vst [vmem:[%s19] sm:%s4] %v17
    %s21 = smul.addr 1, 2
    %s22 = scalar_lea.vmem %s0, %s21
    %s23 = sshrl.u32 %s4, 1
    %s24 = sor.u32 %s4, %s23
    %s25 = sand.u32 %s24, 85
    %s26 = sshrl.u32 %s25, 1
    %s27 = sor.u32 %s25, %s26
    %s28 = sand.u32 51, %s27
    %s29 = sshrl.u32 %s28, 2
    %s30 = sor.u32 %s28, %s29
    %s31 = sand.u32 15, %s30
    %v32 = vld [vmem:[%s22] sm:%s31]
    %v33 = vunpack.c.l.bf16 %v32
    %v34 = vunpack.c.h.bf16 %v32
    %s35 = scalar_lea.vmem [#allocation1], 16
    %36 = vst [vmem:[%s35] sm:%s4] %v33
    %s37 = scalar_lea.vmem %s0, 1
    %s38 = sshrl.u32 %s4, 1
    %s39 = sor.u32 %s4, %s38
    %s40 = sand.u32 %s39, 85
    %s41 = sshrl.u32 %s40, 1
    %s42 = sor.u32 %s40, %s41
    %s43 = sand.u32 51, %s42
    %s44 = sshrl.u32 %s43, 2
    %s45 = sor.u32 %s43, %s44
    %s46 = sand.u32 15, %s45
    %v47 = vld [vmem:[%s37] sm:%s46]
    %v48 = vunpack.c.l.bf16 %v47
    %v49 = vunpack.c.h.bf16 %v47
    %s50 = scalar_lea.vmem [#allocation1], 8
    %51 = vst [vmem:[%s50] sm:%s4] %v48
    %s52 = sshrl.u32 %s4, 1
    %s53 = sor.u32 %s4, %s52
    %s54 = sand.u32 %s53, 85
    %s55 = sshrl.u32 %s54, 1
    %s56 = sor.u32 %s54, %s55
    %s57 = sand.u32 51, %s56
    %s58 = sshrl.u32 %s57, 2
    %s59 = sor.u32 %s57, %s58
    %s60 = sand.u32 15, %s59
    %v61 = vld [vmem:[%s0] sm:%s60]
    %v62 = vunpack.c.l.bf16 %v61
    %v63 = vunpack.c.h.bf16 %v61
    %64 = vst [vmem:[#allocation1] sm:%s4] %v62
    %v65 = vld [vmem:[#allocation1] ss:$8 sm:$0xf]
    %vm66 = vcmask 31744
    %67 = vst.msk [vmem:[#allocation0] sm:$0xf] %vm66, %v65
    %s68 = scalar_lea.vmem [#allocation1], 1
    %v69 = vld [vmem:[%s68] ss:$8 sm:$0xf]
    %70 = vrot.lane.b32.xlu0 %v69, 4
    %v71 = vpop.permute.xlu0 %70
    %vm72 = vcmask 64544
    %73 = vst.msk [vmem:[#allocation0] sm:$0xf] %vm72, %v71
    %s75 = smul.u32 2, 2
    %s76 = sshllo.u32 0, %s75
    %s77 = sshrl.u32 %s75, 1
    %v78 = vld [vmem:[#allocation0] sm:%s76]
    %v79 = vpack.c.bf16 0.0, %v78
    %s80 = sshllo.u32 0, %s77
    %81 = vst [vmem:[%s1] sm:%s80] %v79

// kernel: spectnt_forward.5
$region0: #{spectnt_forward.5}
  #allocation0 [shape = 'u32[]', space=smem, size = 0x4, offset = 0x4, fixed_abs, tag = 'smem constant byte address 0x4 - core index']
  #allocation1 [shape = 'u32[144,128]{1,0:T(1,128)}', space=vmem, size = 0x12000, scoped, tag = 'internal scratch']
  %s0 = inlined_call_operand.vmem [shape: f32[64,4], index: 0, kind: input, shape index: {}]
  %s1 = inlined_call_operand.vmem [shape: bf16[4,32], index: 1, kind: input, shape index: {}]
  %s2 = inlined_call_operand.vmem [shape: f32[1,32], index: 2, kind: input, shape index: {}]
  %s3 = inlined_call_operand.vmem [shape: f32[1,32], index: 3, kind: input, shape index: {}]
  %s4 = inlined_call_operand.vmem [shape: f32[1,32], index: 4, kind: input, shape index: {}]
  %s5 = inlined_call_operand.vmem [shape: bf16[32,96], index: 5, kind: input, shape index: {}]
  %s6 = inlined_call_operand.vmem [shape: f32[1,96], index: 6, kind: input, shape index: {}]
  %s7 = inlined_call_operand.vmem [shape: bf16[32,32], index: 7, kind: input, shape index: {}]
  %s8 = inlined_call_operand.vmem [shape: f32[1,32], index: 8, kind: input, shape index: {}]
  %s9 = inlined_call_operand.vmem [shape: f32[1,32], index: 9, kind: input, shape index: {}]
  %s10 = inlined_call_operand.vmem [shape: f32[1,32], index: 10, kind: input, shape index: {}]
  %s11 = inlined_call_operand.vmem [shape: bf16[32,64], index: 11, kind: input, shape index: {}]
  %s12 = inlined_call_operand.vmem [shape: f32[1,64], index: 12, kind: input, shape index: {}]
  %s13 = inlined_call_operand.vmem [shape: bf16[64,32], index: 13, kind: input, shape index: {}]
  %s14 = inlined_call_operand.vmem [shape: f32[1,32], index: 14, kind: input, shape index: {}]
  %s15 = inlined_call_operand.vmem [shape: bf16[32,4], index: 15, kind: input, shape index: {}]
  %s16 = inlined_call_operand.vmem [shape: f32[1,4], index: 16, kind: input, shape index: {}]
  %s17 = inlined_call_operand.vmem [shape: f32[64,4], index: 17, kind: output, shape index: {}]
  %s18 = sld [smem:[#allocation0]]
  $region101: #{spectnt_forward.5} parent=0
    _
  %s20 = ssub.s32 1, %s18
  %s21 = scalar_select 0, %s20, %s18
  loop: start=0, step=1, limit=4
  $region2: #{spectnt_forward.5} parent=0 // loop_pre_header
    _
  $region3: #{spectnt_forward.5} parent=0 // loop_header
    %s23 = sphi 0, %s27
    %p24 = scmp.ge.s32.totalorder %s23, 4
    %s33 = sphi 0, %s35
    %s36 = sphi 0, %s33
    %s37 = sphi 0, %s36
    %s53 = sphi 0, %s37
    %s57 = sphi 0, %s57
    %s59 = sphi 0, %s57
    %s60 = sphi 0, %s59
    %s74 = sphi 0, %s60
    %s78 = sphi 0, %s78
    %s80 = sphi 0, %s78
    %s81 = sphi 0, %s80
    %s95 = sphi 0, %s81
    %s99 = sphi 0, %s99
    %s101 = sphi 0, %s99
    %s102 = sphi 0, %s101
    %s116 = sphi 0, %s102
    %s120 = sphi 0, %s120
    %s122 = sphi 0, %s120
    %s123 = sphi 0, %s122
    %s137 = sphi 0, %s123
    %s141 = sphi 0, %s141
    %s143 = sphi 0, %s141
    %s144 = sphi 0, %s143
    %s158 = sphi 0, %s144
    %s162 = sphi 0, %s162
    %s164 = sphi 0, %s162
    %s165 = sphi 0, %s164
    %s179 = sphi 0, %s165
    %s183 = sphi 0, %s183
    %s185 = sphi 0, %s183
    %s186 = sphi 0, %s185
    %s200 = sphi 0, %s186
    %s204 = sphi 0, %s204
    %s206 = sphi 0, %s204
    %s207 = sphi 0, %s206
    %s221 = sphi 0, %s207
    %s225 = sphi 0, %s225
    %s227 = sphi 0, %s225
    %s228 = sphi 0, %s227
    %s242 = sphi 0, %s228
    %s246 = sphi 0, %s246
    %s248 = sphi 0, %s246
    %s249 = sphi 0, %s248
    %s263 = sphi 0, %s249
    %s267 = sphi 0, %s267
    %s269 = sphi 0, %s267
    %s270 = sphi 0, %s269
    %s284 = sphi 0, %s270
    %s288 = sphi 0, %s288
    %s290 = sphi 0, %s288
    %s291 = sphi 0, %s290
    %s305 = sphi 0, %s291
    %s309 = sphi 0, %s309
    %s311 = sphi 0, %s309
    %s312 = sphi 0, %s311
    %s326 = sphi 0, %s312
    %s330 = sphi 0, %s330
    %s332 = sphi 0, %s330
    %s333 = sphi 0, %s332
    %s347 = sphi 0, %s333
    %s351 = sphi 0, %s351
    %s353 = sphi 0, %s351
    %s354 = sphi 0, %s353
    %s368 = sphi 0, %s354
    %s372 = sphi 0, %s372
    %s374 = sphi 0, %s372
    %s375 = sphi 0, %s374
    %s389 = sphi 0, %s375
    %s395 = sphi 0, %s397
    %s398 = sphi 0, %s395
    %s399 = sphi 0, %s398
    %s415 = sphi 0, %s399
  $region4: #{spectnt_forward.5} parent=0 // loop_header_branch
    %26 = sbr.rel (%p24) target = $region8
  $region5: #{spectnt_forward.5} parent=0 // loop_body
    %s28 = ssub.s32 %s23, 1
    %s29 = ssub.s32 %s23, 2
    %s30 = sadd.s32 %s23, 1
    %s31 = ssub.s32 %s23, %s30
    %p32 = scmp.eq.s32.totalorder %s31, 0
    %s34 = sadd.s32 %s33, 1
    %s35 = scalar_select %p32, %s33, %s34
    %p38 = pneg %p32
    %p39 = scmp.eq.s32.totalorder %s23, 1
    %p40 = por %p38, %p39
    %p41 = scmp.ne.s32.totalorder %s33, %s36
    %p42 = scmp.eq.s32.totalorder %s23, 0
    %p43 = por %p41, %p42
    %p44 = scmp.ne.s32.totalorder %s33, %s36
    %p45 = scmp.eq.s32.totalorder %s28, 1
    %p46 = por %p44, %p45
    %p47 = scmp.ne.s32.totalorder %s36, %s37
    %p48 = scmp.eq.s32.totalorder %s28, 0
    %p49 = por %p47, %p48
    %p50 = scmp.ne.s32.totalorder %s36, %s37
    %p51 = scmp.eq.s32.totalorder %s29, 1
    %p52 = por %p50, %p51
    %p54 = scmp.ne.s32.totalorder %s37, %s53
    %p55 = scmp.eq.s32.totalorder %s29, 0
    %p56 = por %p54, %p55
    %s58 = sadd.s32 %s57, 1
    %p61 = scmp.eq.s32.totalorder %s23, 1
    %p62 = scmp.ne.s32.totalorder %s57, %s59
    %p63 = scmp.eq.s32.totalorder %s23, 0
    %p64 = por %p62, %p63
    %p65 = scmp.ne.s32.totalorder %s57, %s59
    %p66 = scmp.eq.s32.totalorder %s28, 1
    %p67 = por %p65, %p66
    %p68 = scmp.ne.s32.totalorder %s59, %s60
    %p69 = scmp.eq.s32.totalorder %s28, 0
    %p70 = por %p68, %p69
    %p71 = scmp.ne.s32.totalorder %s59, %s60
    %p72 = scmp.eq.s32.totalorder %s29, 1
    %p73 = por %p71, %p72
    %p75 = scmp.ne.s32.totalorder %s60, %s74
    %p76 = scmp.eq.s32.totalorder %s29, 0
    %p77 = por %p75, %p76
    %s79 = sadd.s32 %s78, 1
    %p82 = scmp.eq.s32.totalorder %s23, 1
    %p83 = scmp.ne.s32.totalorder %s78, %s80
    %p84 = scmp.eq.s32.totalorder %s23, 0
    %p85 = por %p83, %p84
    %p86 = scmp.ne.s32.totalorder %s78, %s80
    %p87 = scmp.eq.s32.totalorder %s28, 1
    %p88 = por %p86, %p87
    %p89 = scmp.ne.s32.totalorder %s80, %s81
    %p90 = scmp.eq.s32.totalorder %s28, 0
    %p91 = por %p89, %p90
    %p92 = scmp.ne.s32.totalorder %s80, %s81
    %p93 = scmp.eq.s32.totalorder %s29, 1
    %p94 = por %p92, %p93
    %p96 = scmp.ne.s32.totalorder %s81, %s95
    %p97 = scmp.eq.s32.totalorder %s29, 0
    %p98 = por %p96, %p97
    %s100 = sadd.s32 %s99, 1
    %p103 = scmp.eq.s32.totalorder %s23, 1
    %p104 = scmp.ne.s32.totalorder %s99, %s101
    %p105 = scmp.eq.s32.totalorder %s23, 0
    %p106 = por %p104, %p105
    %p107 = scmp.ne.s32.totalorder %s99, %s101
    %p108 = scmp.eq.s32.totalorder %s28, 1
    %p109 = por %p107, %p108
    %p110 = scmp.ne.s32.totalorder %s101, %s102
    %p111 = scmp.eq.s32.totalorder %s28, 0
    %p112 = por %p110, %p111
    %p113 = scmp.ne.s32.totalorder %s101, %s102
    %p114 = scmp.eq.s32.totalorder %s29, 1
    %p115 = por %p113, %p114
    %p117 = scmp.ne.s32.totalorder %s102, %s116
    %p118 = scmp.eq.s32.totalorder %s29, 0
    %p119 = por %p117, %p118
    %s121 = sadd.s32 %s120, 1
    %p124 = scmp.eq.s32.totalorder %s23, 1
    %p125 = scmp.ne.s32.totalorder %s120, %s122
    %p126 = scmp.eq.s32.totalorder %s23, 0
    %p127 = por %p125, %p126
    %p128 = scmp.ne.s32.totalorder %s120, %s122
    %p129 = scmp.eq.s32.totalorder %s28, 1
    %p130 = por %p128, %p129
    %p131 = scmp.ne.s32.totalorder %s122, %s123
    %p132 = scmp.eq.s32.totalorder %s28, 0
    %p133 = por %p131, %p132
    %p134 = scmp.ne.s32.totalorder %s122, %s123
    %p135 = scmp.eq.s32.totalorder %s29, 1
    %p136 = por %p134, %p135
    %p138 = scmp.ne.s32.totalorder %s123, %s137
    %p139 = scmp.eq.s32.totalorder %s29, 0
    %p140 = por %p138, %p139
    %s142 = sadd.s32 %s141, 1
    %p145 = scmp.eq.s32.totalorder %s23, 1
    %p146 = scmp.ne.s32.totalorder %s141, %s143
    %p147 = scmp.eq.s32.totalorder %s23, 0
    %p148 = por %p146, %p147
    %p149 = scmp.ne.s32.totalorder %s141, %s143
    %p150 = scmp.eq.s32.totalorder %s28, 1
    %p151 = por %p149, %p150
    %p152 = scmp.ne.s32.totalorder %s143, %s144
    %p153 = scmp.eq.s32.totalorder %s28, 0
    %p154 = por %p152, %p153
    %p155 = scmp.ne.s32.totalorder %s143, %s144
    %p156 = scmp.eq.s32.totalorder %s29, 1
    %p157 = por %p155, %p156
    %p159 = scmp.ne.s32.totalorder %s144, %s158
    %p160 = scmp.eq.s32.totalorder %s29, 0
    %p161 = por %p159, %p160
    %s163 = sadd.s32 %s162, 1
    %p166 = scmp.eq.s32.totalorder %s23, 1
    %p167 = scmp.ne.s32.totalorder %s162, %s164
    %p168 = scmp.eq.s32.totalorder %s23, 0
    %p169 = por %p167, %p168
    %p170 = scmp.ne.s32.totalorder %s162, %s164
    %p171 = scmp.eq.s32.totalorder %s28, 1
    %p172 = por %p170, %p171
    %p173 = scmp.ne.s32.totalorder %s164, %s165
    %p174 = scmp.eq.s32.totalorder %s28, 0
    %p175 = por %p173, %p174
    %p176 = scmp.ne.s32.totalorder %s164, %s165
    %p177 = scmp.eq.s32.totalorder %s29, 1
    %p178 = por %p176, %p177
    %p180 = scmp.ne.s32.totalorder %s165, %s179
    %p181 = scmp.eq.s32.totalorder %s29, 0
    %p182 = por %p180, %p181
    %s184 = sadd.s32 %s183, 1
    %p187 = scmp.eq.s32.totalorder %s23, 1
    %p188 = scmp.ne.s32.totalorder %s183, %s185
    %p189 = scmp.eq.s32.totalorder %s23, 0
    %p190 = por %p188, %p189
    %p191 = scmp.ne.s32.totalorder %s183, %s185
    %p192 = scmp.eq.s32.totalorder %s28, 1
    %p193 = por %p191, %p192
    %p194 = scmp.ne.s32.totalorder %s185, %s186
    %p195 = scmp.eq.s32.totalorder %s28, 0
    %p196 = por %p194, %p195
    %p197 = scmp.ne.s32.totalorder %s185, %s186
    %p198 = scmp.eq.s32.totalorder %s29, 1
    %p199 = por %p197, %p198
    %p201 = scmp.ne.s32.totalorder %s186, %s200
    %p202 = scmp.eq.s32.totalorder %s29, 0
    %p203 = por %p201, %p202
    %s205 = sadd.s32 %s204, 1
    %p208 = scmp.eq.s32.totalorder %s23, 1
    %p209 = scmp.ne.s32.totalorder %s204, %s206
    %p210 = scmp.eq.s32.totalorder %s23, 0
    %p211 = por %p209, %p210
    %p212 = scmp.ne.s32.totalorder %s204, %s206
    %p213 = scmp.eq.s32.totalorder %s28, 1
    %p214 = por %p212, %p213
    %p215 = scmp.ne.s32.totalorder %s206, %s207
    %p216 = scmp.eq.s32.totalorder %s28, 0
    %p217 = por %p215, %p216
    %p218 = scmp.ne.s32.totalorder %s206, %s207
    %p219 = scmp.eq.s32.totalorder %s29, 1
    %p220 = por %p218, %p219
    %p222 = scmp.ne.s32.totalorder %s207, %s221
    %p223 = scmp.eq.s32.totalorder %s29, 0
    %p224 = por %p222, %p223
    %s226 = sadd.s32 %s225, 1
    %p229 = scmp.eq.s32.totalorder %s23, 1
    %p230 = scmp.ne.s32.totalorder %s225, %s227
    %p231 = scmp.eq.s32.totalorder %s23, 0
    %p232 = por %p230, %p231
    %p233 = scmp.ne.s32.totalorder %s225, %s227
    %p234 = scmp.eq.s32.totalorder %s28, 1
    %p235 = por %p233, %p234
    %p236 = scmp.ne.s32.totalorder %s227, %s228
    %p237 = scmp.eq.s32.totalorder %s28, 0
    %p238 = por %p236, %p237
    %p239 = scmp.ne.s32.totalorder %s227, %s228
    %p240 = scmp.eq.s32.totalorder %s29, 1
    %p241 = por %p239, %p240
    %p243 = scmp.ne.s32.totalorder %s228, %s242
    %p244 = scmp.eq.s32.totalorder %s29, 0
    %p245 = por %p243, %p244
    %s247 = sadd.s32 %s246, 1
    %p250 = scmp.eq.s32.totalorder %s23, 1
    %p251 = scmp.ne.s32.totalorder %s246, %s248
    %p252 = scmp.eq.s32.totalorder %s23, 0
    %p253 = por %p251, %p252
    %p254 = scmp.ne.s32.totalorder %s246, %s248
    %p255 = scmp.eq.s32.totalorder %s28, 1
    %p256 = por %p254, %p255
    %p257 = scmp.ne.s32.totalorder %s248, %s249
    %p258 = scmp.eq.s32.totalorder %s28, 0
    %p259 = por %p257, %p258
    %p260 = scmp.ne.s32.totalorder %s248, %s249
    %p261 = scmp.eq.s32.totalorder %s29, 1
    %p262 = por %p260, %p261
    %p264 = scmp.ne.s32.totalorder %s249, %s263
    %p265 = scmp.eq.s32.totalorder %s29, 0
    %p266 = por %p264, %p265
    %s268 = sadd.s32 %s267, 1
    %p271 = scmp.eq.s32.totalorder %s23, 1
    %p272 = scmp.ne.s32.totalorder %s267, %s269
    %p273 = scmp.eq.s32.totalorder %s23, 0
    %p274 = por %p272, %p273
    %p275 = scmp.ne.s32.totalorder %s267, %s269
    %p276 = scmp.eq.s32.totalorder %s28, 1
    %p277 = por %p275, %p276
    %p278 = scmp.ne.s32.totalorder %s269, %s270
    %p279 = scmp.eq.s32.totalorder %s28, 0
    %p280 = por %p278, %p279
    %p281 = scmp.ne.s32.totalorder %s269, %s270
    %p282 = scmp.eq.s32.totalorder %s29, 1
    %p283 = por %p281, %p282
    %p285 = scmp.ne.s32.totalorder %s270, %s284
    %p286 = scmp.eq.s32.totalorder %s29, 0
    %p287 = por %p285, %p286
    %s289 = sadd.s32 %s288, 1
    %p292 = scmp.eq.s32.totalorder %s23, 1
    %p293 = scmp.ne.s32.totalorder %s288, %s290
    %p294 = scmp.eq.s32.totalorder %s23, 0
    %p295 = por %p293, %p294
    %p296 = scmp.ne.s32.totalorder %s288, %s290
    %p297 = scmp.eq.s32.totalorder %s28, 1
    %p298 = por %p296, %p297
    %p299 = scmp.ne.s32.totalorder %s290, %s291
    %p300 = scmp.eq.s32.totalorder %s28, 0
    %p301 = por %p299, %p300
    %p302 = scmp.ne.s32.totalorder %s290, %s291
    %p303 = scmp.eq.s32.totalorder %s29, 1
    %p304 = por %p302, %p303
    %p306 = scmp.ne.s32.totalorder %s291, %s305
    %p307 = scmp.eq.s32.totalorder %s29, 0
    %p308 = por %p306, %p307
    %s310 = sadd.s32 %s309, 1
    %p313 = scmp.eq.s32.totalorder %s23, 1
    %p314 = scmp.ne.s32.totalorder %s309, %s311
    %p315 = scmp.eq.s32.totalorder %s23, 0
    %p316 = por %p314, %p315
    %p317 = scmp.ne.s32.totalorder %s309, %s311
    %p318 = scmp.eq.s32.totalorder %s28, 1
    %p319 = por %p317, %p318
    %p320 = scmp.ne.s32.totalorder %s311, %s312
    %p321 = scmp.eq.s32.totalorder %s28, 0
    %p322 = por %p320, %p321
    %p323 = scmp.ne.s32.totalorder %s311, %s312
    %p324 = scmp.eq.s32.totalorder %s29, 1
    %p325 = por %p323, %p324
    %p327 = scmp.ne.s32.totalorder %s312, %s326
    %p328 = scmp.eq.s32.totalorder %s29, 0
    %p329 = por %p327, %p328
    %s331 = sadd.s32 %s330, 1
    %p334 = scmp.eq.s32.totalorder %s23, 1
    %p335 = scmp.ne.s32.totalorder %s330, %s332
    %p336 = scmp.eq.s32.totalorder %s23, 0
    %p337 = por %p335, %p336
    %p338 = scmp.ne.s32.totalorder %s330, %s332
    %p339 = scmp.eq.s32.totalorder %s28, 1
    %p340 = por %p338, %p339
    %p341 = scmp.ne.s32.totalorder %s332, %s333
    %p342 = scmp.eq.s32.totalorder %s28, 0
    %p343 = por %p341, %p342
    %p344 = scmp.ne.s32.totalorder %s332, %s333
    %p345 = scmp.eq.s32.totalorder %s29, 1
    %p346 = por %p344, %p345
    %p348 = scmp.ne.s32.totalorder %s333, %s347
    %p349 = scmp.eq.s32.totalorder %s29, 0
    %p350 = por %p348, %p349
    %s352 = sadd.s32 %s351, 1
    %p355 = scmp.eq.s32.totalorder %s23, 1
    %p356 = scmp.ne.s32.totalorder %s351, %s353
    %p357 = scmp.eq.s32.totalorder %s23, 0
    %p358 = por %p356, %p357
    %p359 = scmp.ne.s32.totalorder %s351, %s353
    %p360 = scmp.eq.s32.totalorder %s28, 1
    %p361 = por %p359, %p360
    %p362 = scmp.ne.s32.totalorder %s353, %s354
    %p363 = scmp.eq.s32.totalorder %s28, 0
    %p364 = por %p362, %p363
    %p365 = scmp.ne.s32.totalorder %s353, %s354
    %p366 = scmp.eq.s32.totalorder %s29, 1
    %p367 = por %p365, %p366
    %p369 = scmp.ne.s32.totalorder %s354, %s368
    %p370 = scmp.eq.s32.totalorder %s29, 0
    %p371 = por %p369, %p370
    %s373 = sadd.s32 %s372, 1
    %p376 = scmp.eq.s32.totalorder %s23, 1
    %p377 = scmp.ne.s32.totalorder %s372, %s374
    %p378 = scmp.eq.s32.totalorder %s23, 0
    %p379 = por %p377, %p378
    %p380 = scmp.ne.s32.totalorder %s372, %s374
    %p381 = scmp.eq.s32.totalorder %s28, 1
    %p382 = por %p380, %p381
    %p383 = scmp.ne.s32.totalorder %s374, %s375
    %p384 = scmp.eq.s32.totalorder %s28, 0
    %p385 = por %p383, %p384
    %p386 = scmp.ne.s32.totalorder %s374, %s375
    %p387 = scmp.eq.s32.totalorder %s29, 1
    %p388 = por %p386, %p387
    %p390 = scmp.ne.s32.totalorder %s375, %s389
    %p391 = scmp.eq.s32.totalorder %s29, 0
    %p392 = por %p390, %p391
    %s393 = ssub.s32 %s23, %s30
    %p394 = scmp.eq.s32.totalorder %s393, 0
    %s396 = sadd.s32 %s395, 1
    %s397 = scalar_select %p394, %s395, %s396
    %p400 = pneg %p394
    %p401 = scmp.eq.s32.totalorder %s23, 1
    %p402 = por %p400, %p401
    %p403 = scmp.ne.s32.totalorder %s395, %s398
    %p404 = scmp.eq.s32.totalorder %s23, 0
    %p405 = por %p403, %p404
    %p406 = scmp.ne.s32.totalorder %s395, %s398
    %p407 = scmp.eq.s32.totalorder %s28, 1
    %p408 = por %p406, %p407
    %p409 = scmp.ne.s32.totalorder %s398, %s399
    %p410 = scmp.eq.s32.totalorder %s28, 0
    %p411 = por %p409, %p410
    %p412 = scmp.ne.s32.totalorder %s398, %s399
    %p413 = scmp.eq.s32.totalorder %s29, 1
    %p414 = por %p412, %p413
    %p416 = scmp.ne.s32.totalorder %s399, %s415
    %p417 = scmp.eq.s32.totalorder %s29, 0
    %p418 = por %p416, %p417
    %p419 = scmp.le.s32.totalorder 1, %s23
    %p420 = scmp.lt.s32.totalorder %s23, 3
    %p421 = pnand %p419, %p420
    %p422 = pneg %p421
    // Predicated region
    $region9: #{spectnt_forward.5} parent=5 // pred_check
      _
    $region10: #{spectnt_forward.5} parent=5 // pred_check_branch
      %424 = sbr.rel (%p421) target = $region12
    $region11: #{spectnt_forward.5} parent=5 // pred_region
      %s425 = ssub.s32 %s23, 1
      // Predicated region
      $region13: #{spectnt_forward.5} parent=11 // pred_check
        %p426 = pneg %p70
      $region14: #{spectnt_forward.5} parent=11 // pred_check_branch
        %428 = sbr.rel (%p426) target = $region16
      $region15: #{spectnt_forward.5} parent=11 // pred_region
        _
      $region16: #{spectnt_forward.5} parent=11 // pred_fallthru
        _
      // Predicated region
      $region17: #{spectnt_forward.5} parent=11 // pred_check
        %p429 = pneg %p91
      $region18: #{spectnt_forward.5} parent=11 // pred_check_branch
        %431 = sbr.rel (%p429) target = $region20
      $region19: #{spectnt_forward.5} parent=11 // pred_region
        _
      $region20: #{spectnt_forward.5} parent=11 // pred_fallthru
        _
      // Predicated region
      $region21: #{spectnt_forward.5} parent=11 // pred_check
        %p432 = pneg %p112
      $region22: #{spectnt_forward.5} parent=11 // pred_check_branch
        %434 = sbr.rel (%p432) target = $region24
      $region23: #{spectnt_forward.5} parent=11 // pred_region
        _
      $region24: #{spectnt_forward.5} parent=11 // pred_fallthru
        _
      // Predicated region
      $region25: #{spectnt_forward.5} parent=11 // pred_check
        %p435 = pneg %p133
      $region26: #{spectnt_forward.5} parent=11 // pred_check_branch
        %437 = sbr.rel (%p435) target = $region28
      $region27: #{spectnt_forward.5} parent=11 // pred_region
        _
      $region28: #{spectnt_forward.5} parent=11 // pred_fallthru
        _
      // Predicated region
      $region29: #{spectnt_forward.5} parent=11 // pred_check
        %p438 = pneg %p154
      $region30: #{spectnt_forward.5} parent=11 // pred_check_branch
        %440 = sbr.rel (%p438) target = $region32
      $region31: #{spectnt_forward.5} parent=11 // pred_region
        _
      $region32: #{spectnt_forward.5} parent=11 // pred_fallthru
        _
      // Predicated region
      $region33: #{spectnt_forward.5} parent=11 // pred_check
        %p441 = pneg %p175
      $region34: #{spectnt_forward.5} parent=11 // pred_check_branch
        %443 = sbr.rel (%p441) target = $region36
      $region35: #{spectnt_forward.5} parent=11 // pred_region
        _
      $region36: #{spectnt_forward.5} parent=11 // pred_fallthru
        _
      // Predicated region
      $region37: #{spectnt_forward.5} parent=11 // pred_check
        %p444 = pneg %p196
      $region38: #{spectnt_forward.5} parent=11 // pred_check_branch
        %446 = sbr.rel (%p444) target = $region40
      $region39: #{spectnt_forward.5} parent=11 // pred_region
        _
      $region40: #{spectnt_forward.5} parent=11 // pred_fallthru
        _
      // Predicated region
      $region41: #{spectnt_forward.5} parent=11 // pred_check
        %p447 = pneg %p217
      $region42: #{spectnt_forward.5} parent=11 // pred_check_branch
        %449 = sbr.rel (%p447) target = $region44
      $region43: #{spectnt_forward.5} parent=11 // pred_region
        _
      $region44: #{spectnt_forward.5} parent=11 // pred_fallthru
        _
      // Predicated region
      $region45: #{spectnt_forward.5} parent=11 // pred_check
        %p450 = pneg %p238
      $region46: #{spectnt_forward.5} parent=11 // pred_check_branch
        %452 = sbr.rel (%p450) target = $region48
      $region47: #{spectnt_forward.5} parent=11 // pred_region
        _
      $region48: #{spectnt_forward.5} parent=11 // pred_fallthru
        _
      // Predicated region
      $region49: #{spectnt_forward.5} parent=11 // pred_check
        %p453 = pneg %p259
      $region50: #{spectnt_forward.5} parent=11 // pred_check_branch
        %455 = sbr.rel (%p453) target = $region52
      $region51: #{spectnt_forward.5} parent=11 // pred_region
        _
      $region52: #{spectnt_forward.5} parent=11 // pred_fallthru
        _
      // Predicated region
      $region53: #{spectnt_forward.5} parent=11 // pred_check
        %p456 = pneg %p280
      $region54: #{spectnt_forward.5} parent=11 // pred_check_branch
        %458 = sbr.rel (%p456) target = $region56
      $region55: #{spectnt_forward.5} parent=11 // pred_region
        _
      $region56: #{spectnt_forward.5} parent=11 // pred_fallthru
        _
      // Predicated region
      $region57: #{spectnt_forward.5} parent=11 // pred_check
        %p459 = pneg %p301
      $region58: #{spectnt_forward.5} parent=11 // pred_check_branch
        %461 = sbr.rel (%p459) target = $region60
      $region59: #{spectnt_forward.5} parent=11 // pred_region
        _
      $region60: #{spectnt_forward.5} parent=11 // pred_fallthru
        _
      // Predicated region
      $region61: #{spectnt_forward.5} parent=11 // pred_check
        %p462 = pneg %p322
      $region62: #{spectnt_forward.5} parent=11 // pred_check_branch
        %464 = sbr.rel (%p462) target = $region64
      $region63: #{spectnt_forward.5} parent=11 // pred_region
        _
      $region64: #{spectnt_forward.5} parent=11 // pred_fallthru
        _
      // Predicated region
      $region65: #{spectnt_forward.5} parent=11 // pred_check
        %p465 = pneg %p343
      $region66: #{spectnt_forward.5} parent=11 // pred_check_branch
        %467 = sbr.rel (%p465) target = $region68
      $region67: #{spectnt_forward.5} parent=11 // pred_region
        _
      $region68: #{spectnt_forward.5} parent=11 // pred_fallthru
        _
      // Predicated region
      $region69: #{spectnt_forward.5} parent=11 // pred_check
        %p468 = pneg %p364
      $region70: #{spectnt_forward.5} parent=11 // pred_check_branch
        %470 = sbr.rel (%p468) target = $region72
      $region71: #{spectnt_forward.5} parent=11 // pred_region
        _
      $region72: #{spectnt_forward.5} parent=11 // pred_fallthru
        _
      // Predicated region
      $region73: #{spectnt_forward.5} parent=11 // pred_check
        %p471 = pneg %p385
      $region74: #{spectnt_forward.5} parent=11 // pred_check_branch
        %473 = sbr.rel (%p471) target = $region76
      $region75: #{spectnt_forward.5} parent=11 // pred_region
        _
      $region76: #{spectnt_forward.5} parent=11 // pred_fallthru
        _
    $region12: #{spectnt_forward.5} parent=5 // pred_fallthru
      _
    %p474 = scmp.lt.s32.totalorder %s23, 2
    // Predicated region
    $region77: #{spectnt_forward.5} parent=5 // pred_check
      %p475 = pneg %p474
    $region78: #{spectnt_forward.5} parent=5 // pred_check_branch
      %477 = sbr.rel (%p475) target = $region80
    $region79: #{spectnt_forward.5} parent=5 // pred_region
      // Predicated region
      $region81: #{spectnt_forward.5} parent=79 // pred_check
        %p478 = pneg %p43
      $region82: #{spectnt_forward.5} parent=79 // pred_check_branch
        %480 = sbr.rel (%p478) target = $region84
      $region83: #{spectnt_forward.5} parent=79 // pred_region
        %s481 = smul.u32 4, %s23
        %p482 = scmp.lt.s32.totalorder %s481, 7
        %s483 = scalar_select %p482, %s481, 7
        %s484 = smul.addr %s483, 8
        %s485 = scalar_lea.vmem %s0, %s484
        %s486 = smul.u32 4, %s23
      $region84: #{spectnt_forward.5} parent=79 // pred_fallthru
        _
    $region80: #{spectnt_forward.5} parent=5 // pred_fallthru
      _
    %p487 = scmp.le.s32.totalorder 1, %s23
    %p488 = scmp.lt.s32.totalorder %s23, 3
    %p489 = pnand %p487, %p488
    %p490 = pneg %p489
    // Predicated region
    $region85: #{spectnt_forward.5} parent=5 // pred_check
      _
    $region86: #{spectnt_forward.5} parent=5 // pred_check_branch
      %492 = sbr.rel (%p489) target = $region88
    $region87: #{spectnt_forward.5} parent=5 // pred_region
      %s493 = ssub.s32 %s23, 1
      %s494 = smul.u32 4, %s28
      %p495 = scmp.lt.s32.totalorder %s494, 7
      %s496 = scalar_select %p495, %s494, 7
      %s497 = smul.addr %s496, 8
      %s498 = scalar_lea.vmem %s0, %s497
      %p499 = pneg %p49
      %p500 = pneg %p46
      %p501 = pneg %p70
      %p502 = pneg %p67
      %p503 = pneg %p91
      %p504 = pneg %p88
      %p505 = pneg %p112
      %p506 = pneg %p109
      %p507 = pneg %p133
      %p508 = pneg %p130
      %p509 = pneg %p154
      %p510 = pneg %p151
      %p511 = pneg %p175
      %p512 = pneg %p172
      %p513 = pneg %p196
      %p514 = pneg %p193
      %p515 = pneg %p217
      %p516 = pneg %p214
      %p517 = pneg %p238
      %p518 = pneg %p235
      %p519 = pneg %p259
      %p520 = pneg %p256
      %p521 = pneg %p280
      %p522 = pneg %p277
      %p523 = pneg %p301
      %p524 = pneg %p298
      %p525 = pneg %p322
      %p526 = pneg %p319
      %p527 = pneg %p343
      %p528 = pneg %p340
      %p529 = pneg %p364
      %p530 = pneg %p361
      %p531 = pneg %p385
      %p532 = pneg %p382
      %p533 = pneg %p411
      %p534 = pneg %p408
      %s535 = smul.u32 4, %s28
      %p536 = scmp.lt.s32.totalorder %s535, 7
      %s537 = scalar_select %p536, %s535, 7
      %s538 = smul.addr %s537, 8
      %s539 = scalar_lea.vmem %s17, %s538
      %s540 = smul.u32 4, %s28
      %p541 = scmp.lt.s32.totalorder %s540, 7
      %s542 = scalar_select %p541, %s540, 7
      %s543 = smul.addr %s542, 8
      %s544 = scalar_lea.vmem %s0, %s543
      %s545 = smul.u32 4, %s28
      %s546 = smul.u32 4, %s28
      %p547 = scmp.lt.s32.totalorder %s546, 7
      %s548 = scalar_select %p547, %s546, 7
      %s549 = smul.addr %s548, 8
      %s550 = scalar_lea.vmem %s17, %s549
      %s551 = smul.u32 4, %s28
      %v553 = vld [vmem:[%s544] sm:$0xff]
      %v554 = vld [vmem:[%s544 + $0x8] sm:$0xff]
      %v555 = vld [vmem:[%s544 + $0x10] sm:$0xff]
      %v556 = vld [vmem:[%s544 + $0x18] sm:$0xff]
      %v557 = vpack.c.bf16 %v554, %v553
      %v558 = vpack.c.bf16 %v556, %v555
      %v559 = vld [vmem:[%s1] sm:$0x3]
      %v560 = vld [vmem:[%s2] sm:$0x1]
      %v562 = vlaneseq
      %v563 = vshrl.u32 %v562, 7
      %v564 = vsub.s32 0, %v563
      %v565 = vrot.slane %v560, %v564
      %vm567 = vcmask 31744
      %v569 = vsel %vm567, %v557, 0
      %v572 = vsel %vm567, %v558, 0
      %vm574 = vcmask 1041408
      %v576 = vsel %vm574, %v559, 0
      %578 = vmatprep.subr.bf16.mxu0 0
      %579 = vmatpush1.bf16.msra.mxu0 %v576
      %580 = vmatprep.subr.bf16.mxu0 0
      %581 = vmatpush1.bf16.msra.mxu0 0
      %582 = vmatprep.subr.bf16.mxu0 0
      %583 = vmatpush1.bf16.msra.mxu0 0
      %584 = vmatprep.subr.bf16.mxu0 0
      %585 = vmatpush1.bf16.msra.mxu0 0
      %586 = vmatprep.subr.bf16.mxu0 0
      %587 = vmatpush1.bf16.msra.mxu0 0
      %588 = vmatprep.subr.bf16.mxu0 0
      %589 = vmatpush1.bf16.msra.mxu0 0
      %590 = vmatprep.subr.bf16.mxu0 0
      %591 = vmatpush1.bf16.msra.mxu0 0
      %592 = vmatprep.subr.bf16.mxu0 0
      %593 = vmatpush1.bf16.msra.mxu0 0
      %594 = vmatprep.subr.bf16.mxu0 0
      %595 = vmatpush1.bf16.msra.mxu0 0
      %596 = vmatprep.subr.bf16.mxu0 0
      %597 = vmatpush1.bf16.msra.mxu0 0
      %598 = vmatprep.subr.bf16.mxu0 0
      %599 = vmatpush1.bf16.msra.mxu0 0
      %600 = vmatprep.subr.bf16.mxu0 0
      %601 = vmatpush1.bf16.msra.mxu0 0
      %602 = vmatprep.subr.bf16.mxu0 0
      %603 = vmatpush1.bf16.msra.mxu0 0
      %604 = vmatprep.subr.bf16.mxu0 0
      %605 = vmatpush1.bf16.msra.mxu0 0
      %606 = vmatprep.subr.bf16.mxu0 0
      %607 = vmatpush1.bf16.msra.mxu0 0
      %608 = vmatprep.subr.bf16.mxu0 0
      %609 = vmatpush1.bf16.msra.mxu0 0
      %610 = vmatprep.mubr.bf16.mxu0 0
      %611 = vmatmul.mubr.bf16.gmra.mrb[0].mxu0 %v569
      %v612 = vpop.f32.mrb[0].mxu0
      %v613 = vadd.f32 %v565, %v612
      %v614 = vpop.f32.mrb[0].mxu0
      %v615 = vpop.f32.mrb[0].mxu0
      %v616 = vadd.f32 %v565, %v615
      %v617 = vpop.f32.mrb[0].mxu0
      %618 = vmatprep.mubr.bf16.mxu0 0
      %619 = vmatmul.mubr.bf16.gmra.mrb[0].mxu0 %v572
      %v620 = vpop.f32.mrb[0].mxu0
      %v621 = vadd.f32 %v565, %v620
      %v622 = vpop.f32.mrb[0].mxu0
      %v623 = vpop.f32.mrb[0].mxu0
      %v624 = vadd.f32 %v565, %v623
      %v625 = vpop.f32.mrb[0].mxu0
      %626 = vdwg.mxu0
      %vm627 = vcmask 261120
      %v628 = vsel %vm627, %v613, 0.0
      %629 = vadd.xlane.f32.xlu0 %v628
      %v630 = vpop.xlane.xlu0 %629
      %v631 = vsel %vm627, %v616, 0.0
      %632 = vadd.xlane.f32.xlu0 %v631
      %v633 = vpop.xlane.xlu0 %632
      %v634 = vsel %vm627, %v621, 0.0
      %635 = vadd.xlane.f32.xlu0 %v634
      %v636 = vpop.xlane.xlu0 %635
      %v637 = vsel %vm627, %v624, 0.0
      %638 = vadd.xlane.f32.xlu0 %v637
      %v639 = vpop.xlane.xlu0 %638
      %v640 = vrcp.pop 32.0
      %v641 = vmul.f32 %v630, %v640
      %v642 = vmul.f32 %v633, %v640
      %v643 = vmul.f32 %v636, %v640
      %v644 = vmul.f32 %v639, %v640
      %v645 = vsub.f32 %v613, %v641
      %v646 = vsub.f32 %v616, %v642
      %v647 = vsub.f32 %v621, %v643
      %v648 = vsub.f32 %v624, %v644
      %v649 = vmul.f32 %v645, %v645
      %v650 = vmul.f32 %v646, %v646
      %v651 = vmul.f32 %v647, %v647
      %v652 = vmul.f32 %v648, %v648
      %v653 = vsel %vm627, %v649, 0.0
      %654 = vadd.xlane.f32.xlu0 %v653
      %v655 = vpop.xlane.xlu0 %654
      %v656 = vsel %vm627, %v650, 0.0
      %657 = vadd.xlane.f32.xlu0 %v656
      %v658 = vpop.xlane.xlu0 %657
      %v659 = vsel %vm627, %v651, 0.0
      %660 = vadd.xlane.f32.xlu0 %v659
      %v661 = vpop.xlane.xlu0 %660
      %v662 = vsel %vm627, %v652, 0.0
      %663 = vadd.xlane.f32.xlu0 %v662
      %v664 = vpop.xlane.xlu0 %663
      %v665 = vmul.f32 %v655, %v640
      %v666 = vmul.f32 %v658, %v640
      %v667 = vmul.f32 %v661, %v640
      %v668 = vmul.f32 %v664, %v640
      %v669 = vadd.f32 %v665, 1e-05
      %v670 = vadd.f32 %v666, 1e-05
      %v671 = vadd.f32 %v667, 1e-05
      %v672 = vadd.f32 %v668, 1e-05
      %v673 = vrsqrt.pop %v669
      %v674 = vrsqrt.pop %v670
      %v675 = vrsqrt.pop %v671
      %v676 = vrsqrt.pop %v672
      %v677 = vmul.f32 %v645, %v673
      %v678 = vmul.f32 %v646, %v674
      %v679 = vmul.f32 %v647, %v675
      %v680 = vmul.f32 %v648, %v676
      %v681 = vld [vmem:[%s3] sm:$0x1]
      %v683 = vlaneseq
      %v684 = vshrl.u32 %v683, 7
      %v685 = vsub.s32 0, %v684
      %v686 = vrot.slane %v681, %v685
      %v688 = vmul.f32 %v677, %v686
      %v689 = vmul.f32 %v678, %v686
      %v690 = vmul.f32 %v679, %v686
      %v691 = vmul.f32 %v680, %v686
      %v692 = vld [vmem:[%s4] sm:$0x1]
      %v694 = vlaneseq
      %v695 = vshrl.u32 %v694, 7
      %v696 = vsub.s32 0, %v695
      %v697 = vrot.slane %v692, %v696
      %v699 = vadd.f32 %v688, %v697
      %v700 = vadd.f32 %v689, %v697
      %v701 = vadd.f32 %v690, %v697
      %v702 = vadd.f32 %v691, %v697
      %v703 = vpack.c.bf16 %v700, %v699
      %v704 = vpack.c.bf16 %v702, %v701
      %v705 = vld [vmem:[%s5] sm:$0xf]
      %v706 = vld [vmem:[%s5 + $0x4] sm:$0xf]
      %v707 = vld [vmem:[%s5 + $0x8] sm:$0xf]
      %v708 = vld [vmem:[%s5 + $0xc] sm:$0xf]
      %v709 = vld [vmem:[%s6] sm:$0x1]
      %v711 = vlaneseq
      %v712 = vshrl.u32 %v711, 7
      %v713 = vsub.s32 0, %v712
      %v714 = vrot.slane %v709, %v713
      %v720 = vunpack.c.l.b16 %v705
      %v721 = vunpack.c.l.b16 %v706
      %v722 = vunpack.c.l.b16 %v707
      %v723 = vunpack.c.l.b16 %v708
      %v724 = vpack.c.b16 %v721, %v720
      %v725 = vpack.c.b16 %v723, %v722
      %v729 = vsel %vm627, %v703, 0
      %v732 = vsel %vm627, %v704, 0
      %734 = vmatprep.subr.bf16.mxu0 0
      %735 = vmatpush1.bf16.msra.mxu0 %v724
      %736 = vmatprep.subr.bf16.mxu0 0
      %737 = vmatpush1.bf16.msra.mxu0 %v725
      %738 = vmatprep.subr.bf16.mxu0 0
      %739 = vmatpush1.bf16.msra.mxu0 0
      %740 = vmatprep.subr.bf16.mxu0 0
      %741 = vmatpush1.bf16.msra.mxu0 0
      %742 = vmatprep.subr.bf16.mxu0 0
      %743 = vmatpush1.bf16.msra.mxu0 0
      %744 = vmatprep.subr.bf16.mxu0 0
      %745 = vmatpush1.bf16.msra.mxu0 0
      %746 = vmatprep.subr.bf16.mxu0 0
      %747 = vmatpush1.bf16.msra.mxu0 0
      %748 = vmatprep.subr.bf16.mxu0 0
      %749 = vmatpush1.bf16.msra.mxu0 0
      %750 = vmatprep.subr.bf16.mxu0 0
      %751 = vmatpush1.bf16.msra.mxu0 0
      %752 = vmatprep.subr.bf16.mxu0 0
      %753 = vmatpush1.bf16.msra.mxu0 0
      %754 = vmatprep.subr.bf16.mxu0 0
      %755 = vmatpush1.bf16.msra.mxu0 0
      %756 = vmatprep.subr.bf16.mxu0 0
      %757 = vmatpush1.bf16.msra.mxu0 0
      %758 = vmatprep.subr.bf16.mxu0 0
      %759 = vmatpush1.bf16.msra.mxu0 0
      %760 = vmatprep.subr.bf16.mxu0 0
      %761 = vmatpush1.bf16.msra.mxu0 0
      %762 = vmatprep.subr.bf16.mxu0 0
      %763 = vmatpush1.bf16.msra.mxu0 0
      %764 = vmatprep.subr.bf16.mxu0 0
      %765 = vmatpush1.bf16.msra.mxu0 0
      %766 = vmatprep.mubr.bf16.mxu0 0
      %767 = vmatmul.mubr.bf16.gmra.mrb[0].mxu0 %v729
      %v768 = vpop.f32.mrb[0].mxu0
      %v769 = vadd.f32 %v714, %v768
      %v770 = vpop.f32.mrb[0].mxu0
      %v771 = vpop.f32.mrb[0].mxu0
      %v772 = vadd.f32 %v714, %v771
      %v773 = vpop.f32.mrb[0].mxu0
      %774 = vmatprep.mubr.bf16.mxu0 0
      %775 = vmatmul.mubr.bf16.gmra.mrb[0].mxu0 %v732
      %v776 = vpop.f32.mrb[0].mxu0
      %v777 = vadd.f32 %v714, %v776
      %v778 = vpop.f32.mrb[0].mxu0
      %v779 = vpop.f32.mrb[0].mxu0
      %v780 = vadd.f32 %v714, %v779
      %v781 = vpop.f32.mrb[0].mxu0
      %782 = vdwg.mxu0
      %v783 = vpack.c.bf16 %v772, %v769
      %v784 = vpack.c.bf16 %v780, %v777
      %787 = vrot.lane.b32.xlu0 %v783, 96
      %v788 = vpop.permute.xlu0 %787
      %789 = vrot.lane.b32.xlu0 %v784, 96
      %v790 = vpop.permute.xlu0 %789
      %vm791 = vcmask 64512
      %v793 = vsel %vm791, %v783, 0
      %v796 = vsel %vm791, %v784, 0
      %v799 = vsel %vm791, %v788, 0
      %v802 = vsel %vm791, %v790, 0
      %804 = vmatprep.subr.bf16.mxu0 0
      %805 = vmatpush1.bf16.xpose.msra.mxu0 %v799
      %806 = vmatprep.subr.bf16.mxu0 0
      %807 = vmatpush1.bf16.xpose.msra.mxu0 %v802
      %808 = vmatprep.subr.bf16.mxu0 0
      %809 = vmatpush1.bf16.xpose.msra.mxu0 0
      %810 = vmatprep.subr.bf16.mxu0 0
      %811 = vmatpush1.bf16.xpose.msra.mxu0 0
      %812 = vmatprep.subr.bf16.mxu0 0
      %813 = vmatpush1.bf16.xpose.msra.mxu0 0
      %814 = vmatprep.subr.bf16.mxu0 0
      %815 = vmatpush1.bf16.xpose.msra.mxu0 0
      %816 = vmatprep.subr.bf16.mxu0 0
      %817 = vmatpush1.bf16.xpose.msra.mxu0 0
      %818 = vmatprep.subr.bf16.mxu0 0
      %819 = vmatpush1.bf16.xpose.msra.mxu0 0
      %820 = vmatprep.subr.bf16.mxu0 0
      %821 = vmatpush1.bf16.xpose.msra.mxu0 0
      %822 = vmatprep.subr.bf16.mxu0 0
      %823 = vmatpush1.bf16.xpose.msra.mxu0 0
      %824 = vmatprep.subr.bf16.mxu0 0
      %825 = vmatpush1.bf16.xpose.msra.mxu0 0
      %826 = vmatprep.subr.bf16.mxu0 0
      %827 = vmatpush1.bf16.xpose.msra.mxu0 0
      %828 = vmatprep.subr.bf16.mxu0 0
      %829 = vmatpush1.bf16.xpose.msra.mxu0 0
      %830 = vmatprep.subr.bf16.mxu0 0
      %831 = vmatpush1.bf16.xpose.msra.mxu0 0
      %832 = vmatprep.subr.bf16.mxu0 0
      %833 = vmatpush1.bf16.xpose.msra.mxu0 0
      %834 = vmatprep.subr.bf16.mxu0 0
      %835 = vmatpush1.bf16.xpose.msra.mxu0 0
      %836 = vmatprep.mubr.bf16.mxu0 0
      %837 = vmatmul.mubr.bf16.gmra.mrb[0].mxu0 %v793
      %v838 = vpop.f32.mrb[0].mxu0
      %v839 = vadd.f32 0.0, %v838
      %v840 = vpop.f32.mrb[0].mxu0
      %v841 = vpop.f32.mrb[0].mxu0
      %v842 = vadd.f32 0.0, %v841
      %v843 = vpop.f32.mrb[0].mxu0
      %844 = vmatprep.mubr.bf16.mxu0 0
      %845 = vmatmul.mubr.bf16.gmra.mrb[0].mxu0 %v796
      %v846 = vpop.f32.mrb[0].mxu0
      %v847 = vadd.f32 0.0, %v846
      %v848 = vpop.f32.mrb[0].mxu0
      %v849 = vpop.f32.mrb[0].mxu0
      %v850 = vadd.f32 0.0, %v849
      %v851 = vpop.f32.mrb[0].mxu0
      %852 = vdwg.mxu0
      %v853 = vmul.f32 %v839, 0.35355338
      %v854 = vmul.f32 %v842, 0.35355338
      %v855 = vmul.f32 %v847, 0.35355338
      %v856 = vmul.f32 %v850, 0.35355338
      %v857 = vsel %vm627, %v853, -inf
      %858 = vmax.xlane.f32.xlu0 %v857
      %v859 = vpop.xlane.xlu0 %858
      %v860 = vsel %vm627, %v854, -inf
      %861 = vmax.xlane.f32.xlu0 %v860
      %v862 = vpop.xlane.xlu0 %861
      %v863 = vsel %vm627, %v855, -inf
      %864 = vmax.xlane.f32.xlu0 %v863
      %v865 = vpop.xlane.xlu0 %864
      %v866 = vsel %vm627, %v856, -inf
      %867 = vmax.xlane.f32.xlu0 %v866
      %v868 = vpop.xlane.xlu0 %867
      %v869 = vsub.f32 %v853, %v859
      %v870 = vsub.f32 %v854, %v862
      %v871 = vsub.f32 %v855, %v865
      %v872 = vsub.f32 %v856, %v868
      %v873 = vmul.f32 %v869, 1.442695
      %v874 = vpow.pop %v873
      %v875 = vmul.f32 %v870, 1.442695
      %v876 = vpow.pop %v875
      %v877 = vmul.f32 %v871, 1.442695
      %v878 = vpow.pop %v877
      %v879 = vmul.f32 %v872, 1.442695
      %v880 = vpow.pop %v879
      %v881 = vsel %vm627, %v874, 0.0
      %882 = vadd.xlane.f32.xlu0 %v881
      %v883 = vpop.xlane.xlu0 %882
      %v884 = vsel %vm627, %v876, 0.0
      %885 = vadd.xlane.f32.xlu0 %v884
      %v886 = vpop.xlane.xlu0 %885
      %v887 = vsel %vm627, %v878, 0.0
      %888 = vadd.xlane.f32.xlu0 %v887
      %v889 = vpop.xlane.xlu0 %888
      %v890 = vsel %vm627, %v880, 0.0
      %891 = vadd.xlane.f32.xlu0 %v890
      %v892 = vpop.xlane.xlu0 %891
      %v893 = vrcp.pop %v883
      %v894 = vrcp.pop %v886
      %v895 = vrcp.pop %v889
      %v896 = vrcp.pop %v892
      %v897 = vmul.f32 %v874, %v893
      %v898 = vmul.f32 %v876, %v894
      %v899 = vmul.f32 %v878, %v895
      %v900 = vmul.f32 %v880, %v896
      %v901 = vpack.c.bf16 %v898, %v897
      %v902 = vpack.c.bf16 %v900, %v899
      %903 = vrot.lane.b32.xlu0 %v783, 64
      %v904 = vpop.permute.xlu0 %903
      %905 = vrot.lane.b32.xlu0 %v784, 64
      %v906 = vpop.permute.xlu0 %905
      %v910 = vsel %vm627, %v901, 0
      %v913 = vsel %vm627, %v902, 0
      %915 = vmatprep.subr.bf16.mxu0 0
      %916 = vmatpush1.bf16.msra.mxu0 %v904
      %917 = vmatprep.subr.bf16.mxu0 0
      %918 = vmatpush1.bf16.msra.mxu0 %v906
      %919 = vmatprep.subr.bf16.mxu0 0
      %920 = vmatpush1.bf16.msra.mxu0 0
      %921 = vmatprep.subr.bf16.mxu0 0
      %922 = vmatpush1.bf16.msra.mxu0 0
      %923 = vmatprep.subr.bf16.mxu0 0
      %924 = vmatpush1.bf16.msra.mxu0 0
      %925 = vmatprep.subr.bf16.mxu0 0
      %926 = vmatpush1.bf16.msra.mxu0 0
      %927 = vmatprep.subr.bf16.mxu0 0
      %928 = vmatpush1.bf16.msra.mxu0 0
      %929 = vmatprep.subr.bf16.mxu0 0
      %930 = vmatpush1.bf16.msra.mxu0 0
      %931 = vmatprep.subr.bf16.mxu0 0
      %932 = vmatpush1.bf16.msra.mxu0 0
      %933 = vmatprep.subr.bf16.mxu0 0
      %934 = vmatpush1.bf16.msra.mxu0 0
      %935 = vmatprep.subr.bf16.mxu0 0
      %936 = vmatpush1.bf16.msra.mxu0 0
      %937 = vmatprep.subr.bf16.mxu0 0
      %938 = vmatpush1.bf16.msra.mxu0 0
      %939 = vmatprep.subr.bf16.mxu0 0
      %940 = vmatpush1.bf16.msra.mxu0 0
      %941 = vmatprep.subr.bf16.mxu0 0
      %942 = vmatpush1.bf16.msra.mxu0 0
      %943 = vmatprep.subr.bf16.mxu0 0
      %944 = vmatpush1.bf16.msra.mxu0 0
      %945 = vmatprep.subr.bf16.mxu0 0
      %946 = vmatpush1.bf16.msra.mxu0 0
      %947 = vmatprep.mubr.bf16.mxu0 0
      %948 = vmatmul.mubr.bf16.gmra.mrb[0].mxu0 %v910
      %v949 = vpop.f32.mrb[0].mxu0
      %v950 = vadd.f32 0.0, %v949
      %v951 = vpop.f32.mrb[0].mxu0
      %v952 = vpop.f32.mrb[0].mxu0
      %v953 = vadd.f32 0.0, %v952
      %v954 = vpop.f32.mrb[0].mxu0
      %955 = vmatprep.mubr.bf16.mxu0 0
      %956 = vmatmul.mubr.bf16.gmra.mrb[0].mxu0 %v913
      %v957 = vpop.f32.mrb[0].mxu0
      %v958 = vadd.f32 0.0, %v957
      %v959 = vpop.f32.mrb[0].mxu0
      %v960 = vpop.f32.mrb[0].mxu0
      %v961 = vadd.f32 0.0, %v960
      %v962 = vpop.f32.mrb[0].mxu0
      %963 = vdwg.mxu0
      %964 = vrot.lane.b32.xlu0 %v783, 120
      %v965 = vpop.permute.xlu0 %964
      %966 = vrot.lane.b32.xlu0 %v784, 120
      %v967 = vpop.permute.xlu0 %966
      %968 = vrot.lane.b32.xlu0 %v783, 88
      %v969 = vpop.permute.xlu0 %968
      %970 = vrot.lane.b32.xlu0 %v784, 88
      %v971 = vpop.permute.xlu0 %970
      %v973 = vsel %vm791, %v965, 0
      %v976 = vsel %vm791, %v967, 0
      %v979 = vsel %vm791, %v969, 0
      %v982 = vsel %vm791, %v971, 0
      %984 = vmatprep.subr.bf16.mxu0 0
      %985 = vmatpush1.bf16.xpose.msra.mxu0 %v979
      %986 = vmatprep.subr.bf16.mxu0 0
      %987 = vmatpush1.bf16.xpose.msra.mxu0 %v982
      %988 = vmatprep.subr.bf16.mxu0 0
      %989 = vmatpush1.bf16.xpose.msra.mxu0 0
      %990 = vmatprep.subr.bf16.mxu0 0
      %991 = vmatpush1.bf16.xpose.msra.mxu0 0
      %992 = vmatprep.subr.bf16.mxu0 0
      %993 = vmatpush1.bf16.xpose.msra.mxu0 0
      %994 = vmatprep.subr.bf16.mxu0 0
      %995 = vmatpush1.bf16.xpose.msra.mxu0 0
      %996 = vmatprep.subr.bf16.mxu0 0
      %997 = vmatpush1.bf16.xpose.msra.mxu0 0
      %998 = vmatprep.subr.bf16.mxu0 0
      %999 = vmatpush1.bf16.xpose.msra.mxu0 0
      %1000 = vmatprep.subr.bf16.mxu0 0
      %1001 = vmatpush1.bf16.xpose.msra.mxu0 0
      %1002 = vmatprep.subr.bf16.mxu0 0
      %1003 = vmatpush1.bf16.xpose.msra.mxu0 0
      %1004 = vmatprep.subr.bf16.mxu0 0
      %1005 = vmatpush1.bf16.xpose.msra.mxu0 0
      %1006 = vmatprep.subr.bf16.mxu0 0
      %1007 = vmatpush1.bf16.xpose.msra.mxu0 0
      %1008 = vmatprep.subr.bf16.mxu0 0
      %1009 = vmatpush1.bf16.xpose.msra.mxu0 0
      %1010 = vmatprep.subr.bf16.mxu0 0
      %1011 = vmatpush1.bf16.xpose.msra.mxu0 0
      %1012 = vmatprep.subr.bf16.mxu0 0
      %1013 = vmatpush1.bf16.xpose.msra.mxu0 0
      %1014 = vmatprep.subr.bf16.mxu0 0
      %1015 = vmatpush1.bf16.xpose.msra.mxu0 0
      %1016 = vmatprep.mubr.bf16.mxu0 0
      %1017 = vmatmul.mubr.bf16.gmra.mrb[0].mxu0 %v973
      %v1018 = vpop.f32.mrb[0].mxu0
      %v1019 = vadd.f32 0.0, %v1018
      %v1020 = vpop.f32.mrb[0].mxu0
      %v1021 = vpop.f32.mrb[0].mxu0
      %v1022 = vadd.f32 0.0, %v1021
      %v1023 = vpop.f32.mrb[0].mxu0
      %1024 = vmatprep.mubr.bf16.mxu0 0
      %1025 = vmatmul.mubr.bf16.gmra.mrb[0].mxu0 %v976
      %v1026 = vpop.f32.mrb[0].mxu0
      %v1027 = vadd.f32 0.0, %v1026
      %v1028 = vpop.f32.mrb[0].mxu0
      %v1029 = vpop.f32.mrb[0].mxu0
      %v1030 = vadd.f32 0.0, %v1029
      %v1031 = vpop.f32.mrb[0].mxu0
      %1032 = vdwg.mxu0
      %v1033 = vmul.f32 %v1019, 0.35355338
      %v1034 = vmul.f32 %v1022, 0.35355338
      %v1035 = vmul.f32 %v1027, 0.35355338
      %v1036 = vmul.f32 %v1030, 0.35355338
      %v1037 = vsel %vm627, %v1033, -inf
      %1038 = vmax.xlane.f32.xlu0 %v1037
      %v1039 = vpop.xlane.xlu0 %1038
      %v1040 = vsel %vm627, %v1034, -inf
      %1041 = vmax.xlane.f32.xlu0 %v1040
      %v1042 = vpop.xlane.xlu0 %1041
      %v1043 = vsel %vm627, %v1035, -inf
      %1044 = vmax.xlane.f32.xlu0 %v1043
      %v1045 = vpop.xlane.xlu0 %1044
      %v1046 = vsel %vm627, %v1036, -inf
      %1047 = vmax.xlane.f32.xlu0 %v1046
      %v1048 = vpop.xlane.xlu0 %1047
      %v1049 = vsub.f32 %v1033, %v1039
      %v1050 = vsub.f32 %v1034, %v1042
      %v1051 = vsub.f32 %v1035, %v1045
      %v1052 = vsub.f32 %v1036, %v1048
      %v1053 = vmul.f32 %v1049, 1.442695
      %v1054 = vpow.pop %v1053
      %v1055 = vmul.f32 %v1050, 1.442695
      %v1056 = vpow.pop %v1055
      %v1057 = vmul.f32 %v1051, 1.442695
      %v1058 = vpow.pop %v1057
      %v1059 = vmul.f32 %v1052, 1.442695
      %v1060 = vpow.pop %v1059
      %v1061 = vsel %vm627, %v1054, 0.0
      %1062 = vadd.xlane.f32.xlu0 %v1061
      %v1063 = vpop.xlane.xlu0 %1062
      %v1064 = vsel %vm627, %v1056, 0.0
      %1065 = vadd.xlane.f32.xlu0 %v1064
      %v1066 = vpop.xlane.xlu0 %1065
      %v1067 = vsel %vm627, %v1058, 0.0
      %1068 = vadd.xlane.f32.xlu0 %v1067
      %v1069 = vpop.xlane.xlu0 %1068
      %v1070 = vsel %vm627, %v1060, 0.0
      %1071 = vadd.xlane.f32.xlu0 %v1070
      %v1072 = vpop.xlane.xlu0 %1071
      %v1073 = vrcp.pop %v1063
      %v1074 = vrcp.pop %v1066
      %v1075 = vrcp.pop %v1069
      %v1076 = vrcp.pop %v1072
      %v1077 = vmul.f32 %v1054, %v1073
      %v1078 = vmul.f32 %v1056, %v1074
      %v1079 = vmul.f32 %v1058, %v1075
      %v1080 = vmul.f32 %v1060, %v1076
      %v1081 = vpack.c.bf16 %v1078, %v1077
      %v1082 = vpack.c.bf16 %v1080, %v1079
      %1083 = vrot.lane.b32.xlu0 %v783, 56
      %v1084 = vpop.permute.xlu0 %1083
      %1085 = vrot.lane.b32.xlu0 %v784, 56
      %v1086 = vpop.permute.xlu0 %1085
      %v1090 = vsel %vm627, %v1081, 0
      %v1093 = vsel %vm627, %v1082, 0
      %1095 = vmatprep.subr.bf16.mxu0 0
      %1096 = vmatpush1.bf16.msra.mxu0 %v1084
      %1097 = vmatprep.subr.bf16.mxu0 0
      %1098 = vmatpush1.bf16.msra.mxu0 %v1086
      %1099 = vmatprep.subr.bf16.mxu0 0
      %1100 = vmatpush1.bf16.msra.mxu0 0
      %1101 = vmatprep.subr.bf16.mxu0 0
      %1102 = vmatpush1.bf16.msra.mxu0 0
      %1103 = vmatprep.subr.bf16.mxu0 0
      %1104 = vmatpush1.bf16.msra.mxu0 0
      %1105 = vmatprep.subr.bf16.mxu0 0
      %1106 = vmatpush1.bf16.msra.mxu0 0
      %1107 = vmatprep.subr.bf16.mxu0 0
      %1108 = vmatpush1.bf16.msra.mxu0 0
      %1109 = vmatprep.subr.bf16.mxu0 0
      %1110 = vmatpush1.bf16.msra.mxu0 0
      %1111 = vmatprep.subr.bf16.mxu0 0
      %1112 = vmatpush1.bf16.msra.mxu0 0
      %1113 = vmatprep.subr.bf16.mxu0 0
      %1114 = vmatpush1.bf16.msra.mxu0 0
      %1115 = vmatprep.subr.bf16.mxu0 0
      %1116 = vmatpush1.bf16.msra.mxu0 0
      %1117 = vmatprep.subr.bf16.mxu0 0
      %1118 = vmatpush1.bf16.msra.mxu0 0
      %1119 = vmatprep.subr.bf16.mxu0 0
      %1120 = vmatpush1.bf16.msra.mxu0 0
      %1121 = vmatprep.subr.bf16.mxu0 0
      %1122 = vmatpush1.bf16.msra.mxu0 0
      %1123 = vmatprep.subr.bf16.mxu0 0
      %1124 = vmatpush1.bf16.msra.mxu0 0
      %1125 = vmatprep.subr.bf16.mxu0 0
      %1126 = vmatpush1.bf16.msra.mxu0 0
      %1127 = vmatprep.mubr.bf16.mxu0 0
      %1128 = vmatmul.mubr.bf16.gmra.mrb[0].mxu0 %v1090
      %v1129 = vpop.f32.mrb[0].mxu0
      %v1130 = vadd.f32 0.0, %v1129
      %v1131 = vpop.f32.mrb[0].mxu0
      %v1132 = vpop.f32.mrb[0].mxu0
      %v1133 = vadd.f32 0.0, %v1132
      %v1134 = vpop.f32.mrb[0].mxu0
      %1135 = vmatprep.mubr.bf16.mxu0 0
      %1136 = vmatmul.mubr.bf16.gmra.mrb[0].mxu0 %v1093
      %v1137 = vpop.f32.mrb[0].mxu0
      %v1138 = vadd.f32 0.0, %v1137
      %v1139 = vpop.f32.mrb[0].mxu0
      %v1140 = vpop.f32.mrb[0].mxu0
      %v1141 = vadd.f32 0.0, %v1140
      %v1142 = vpop.f32.mrb[0].mxu0
      %1143 = vdwg.mxu0
      %1144 = vrot.lane.b32.xlu0 %v783, 112
      %v1145 = vpop.permute.xlu0 %1144
      %1146 = vrot.lane.b32.xlu0 %v784, 112
      %v1147 = vpop.permute.xlu0 %1146
      %1148 = vrot.lane.b32.xlu0 %v783, 80
      %v1149 = vpop.permute.xlu0 %1148
      %1150 = vrot.lane.b32.xlu0 %v784, 80
      %v1151 = vpop.permute.xlu0 %1150
      %v1153 = vsel %vm791, %v1145, 0
      %v1156 = vsel %vm791, %v1147, 0
      %v1159 = vsel %vm791, %v1149, 0
      %v1162 = vsel %vm791, %v1151, 0
      %1164 = vmatprep.subr.bf16.mxu0 0
      %1165 = vmatpush1.bf16.xpose.msra.mxu0 %v1159
      %1166 = vmatprep.subr.bf16.mxu0 0
      %1167 = vmatpush1.bf16.xpose.msra.mxu0 %v1162
      %1168 = vmatprep.subr.bf16.mxu0 0
      %1169 = vmatpush1.bf16.xpose.msra.mxu0 0
      %1170 = vmatprep.subr.bf16.mxu0 0
      %1171 = vmatpush1.bf16.xpose.msra.mxu0 0
      %1172 = vmatprep.subr.bf16.mxu0 0
      %1173 = vmatpush1.bf16.xpose.msra.mxu0 0
      %1174 = vmatprep.subr.bf16.mxu0 0
      %1175 = vmatpush1.bf16.xpose.msra.mxu0 0
      %1176 = vmatprep.subr.bf16.mxu0 0
      %1177 = vmatpush1.bf16.xpose.msra.mxu0 0
      %1178 = vmatprep.subr.bf16.mxu0 0
      %1179 = vmatpush1.bf16.xpose.msra.mxu0 0
      %1180 = vmatprep.subr.bf16.mxu0 0
      %1181 = vmatpush1.bf16.xpose.msra.mxu0 0
      %1182 = vmatprep.subr.bf16.mxu0 0
      %1183 = vmatpush1.bf16.xpose.msra.mxu0 0
      %1184 = vmatprep.subr.bf16.mxu0 0
      %1185 = vmatpush1.bf16.xpose.msra.mxu0 0
      %1186 = vmatprep.subr.bf16.mxu0 0
      %1187 = vmatpush1.bf16.xpose.msra.mxu0 0
      %1188 = vmatprep.subr.bf16.mxu0 0
      %1189 = vmatpush1.bf16.xpose.msra.mxu0 0
      %1190 = vmatprep.subr.bf16.mxu0 0
      %1191 = vmatpush1.bf16.xpose.msra.mxu0 0
      %1192 = vmatprep.subr.bf16.mxu0 0
      %1193 = vmatpush1.bf16.xpose.msra.mxu0 0
      %1194 = vmatprep.subr.bf16.mxu0 0
      %1195 = vmatpush1.bf16.xpose.msra.mxu0 0
      %1196 = vmatprep.mubr.bf16.mxu0 0
      %1197 = vmatmul.mubr.bf16.gmra.mrb[0].mxu0 %v1153
      %v1198 = vpop.f32.mrb[0].mxu0
      %v1199 = vadd.f32 0.0, %v1198
      %v1200 = vpop.f32.mrb[0].mxu0
      %v1201 = vpop.f32.mrb[0].mxu0
      %v1202 = vadd.f32 0.0, %v1201
      %v1203 = vpop.f32.mrb[0].mxu0
      %1204 = vmatprep.mubr.bf16.mxu0 0
      %1205 = vmatmul.mubr.bf16.gmra.mrb[0].mxu0 %v1156
      %v1206 = vpop.f32.mrb[0].mxu0
      %v1207 = vadd.f32 0.0, %v1206
      %v1208 = vpop.f32.mrb[0].mxu0
      %v1209 = vpop.f32.mrb[0].mxu0
      %v1210 = vadd.f32 0.0, %v1209
      %v1211 = vpop.f32.mrb[0].mxu0
      %1212 = vdwg.mxu0
      %v1213 = vmul.f32 %v1199, 0.35355338
      %v1214 = vmul.f32 %v1202, 0.35355338
      %v1215 = vmul.f32 %v1207, 0.35355338
      %v1216 = vmul.f32 %v1210, 0.35355338
      %v1217 = vsel %vm627, %v1213, -inf
      %1218 = vmax.xlane.f32.xlu0 %v1217
      %v1219 = vpop.xlane.xlu0 %1218
      %v1220 = vsel %vm627, %v1214, -inf
      %1221 = vmax.xlane.f32.xlu0 %v1220
      %v1222 = vpop.xlane.xlu0 %1221
      %v1223 = vsel %vm627, %v1215, -inf
      %1224 = vmax.xlane.f32.xlu0 %v1223
      %v1225 = vpop.xlane.xlu0 %1224
      %v1226 = vsel %vm627, %v1216, -inf
      %1227 = vmax.xlane.f32.xlu0 %v1226
      %v1228 = vpop.xlane.xlu0 %1227
      %v1229 = vsub.f32 %v1213, %v1219
      %v1230 = vsub.f32 %v1214, %v1222
      %v1231 = vsub.f32 %v1215, %v1225
      %v1232 = vsub.f32 %v1216, %v1228
      %v1233 = vmul.f32 %v1229, 1.442695
      %v1234 = vpow.pop %v1233
      %v1235 = vmul.f32 %v1230, 1.442695
      %v1236 = vpow.pop %v1235
      %v1237 = vmul.f32 %v1231, 1.442695
      %v1238 = vpow.pop %v1237
      %v1239 = vmul.f32 %v1232, 1.442695
      %v1240 = vpow.pop %v1239
      %v1241 = vsel %vm627, %v1234, 0.0
      %1242 = vadd.xlane.f32.xlu0 %v1241
      %v1243 = vpop.xlane.xlu0 %1242
      %v1244 = vsel %vm627, %v1236, 0.0
      %1245 = vadd.xlane.f32.xlu0 %v1244
      %v1246 = vpop.xlane.xlu0 %1245
      %v1247 = vsel %vm627, %v1238, 0.0
      %1248 = vadd.xlane.f32.xlu0 %v1247
      %v1249 = vpop.xlane.xlu0 %1248
      %v1250 = vsel %vm627, %v1240, 0.0
      %1251 = vadd.xlane.f32.xlu0 %v1250
      %v1252 = vpop.xlane.xlu0 %1251
      %v1253 = vrcp.pop %v1243
      %v1254 = vrcp.pop %v1246
      %v1255 = vrcp.pop %v1249
      %v1256 = vrcp.pop %v1252
      %v1257 = vmul.f32 %v1234, %v1253
      %v1258 = vmul.f32 %v1236, %v1254
      %v1259 = vmul.f32 %v1238, %v1255
      %v1260 = vmul.f32 %v1240, %v1256
      %v1261 = vpack.c.bf16 %v1258, %v1257
      %v1262 = vpack.c.bf16 %v1260, %v1259
      %1263 = vrot.lane.b32.xlu0 %v783, 48
      %v1264 = vpop.permute.xlu0 %1263
      %1265 = vrot.lane.b32.xlu0 %v784, 48
      %v1266 = vpop.permute.xlu0 %1265
      %v1270 = vsel %vm627, %v1261, 0
      %v1273 = vsel %vm627, %v1262, 0
      %1275 = vmatprep.subr.bf16.mxu0 0
      %1276 = vmatpush1.bf16.msra.mxu0 %v1264
      %1277 = vmatprep.subr.bf16.mxu0 0
      %1278 = vmatpush1.bf16.msra.mxu0 %v1266
      %1279 = vmatprep.subr.bf16.mxu0 0
      %1280 = vmatpush1.bf16.msra.mxu0 0
      %1281 = vmatprep.subr.bf16.mxu0 0
      %1282 = vmatpush1.bf16.msra.mxu0 0
      %1283 = vmatprep.subr.bf16.mxu0 0
      %1284 = vmatpush1.bf16.msra.mxu0 0
      %1285 = vmatprep.subr.bf16.mxu0 0
      %1286 = vmatpush1.bf16.msra.mxu0 0
      %1287 = vmatprep.subr.bf16.mxu0 0
      %1288 = vmatpush1.bf16.msra.mxu0 0
      %1289 = vmatprep.subr.bf16.mxu0 0
      %1290 = vmatpush1.bf16.msra.mxu0 0
      %1291 = vmatprep.subr.bf16.mxu0 0
      %1292 = vmatpush1.bf16.msra.mxu0 0
      %1293 = vmatprep.subr.bf16.mxu0 0
      %1294 = vmatpush1.bf16.msra.mxu0 0
      %1295 = vmatprep.subr.bf16.mxu0 0
      %1296 = vmatpush1.bf16.msra.mxu0 0
      %1297 = vmatprep.subr.bf16.mxu0 0
      %1298 = vmatpush1.bf16.msra.mxu0 0
      %1299 = vmatprep.subr.bf16.mxu0 0
      %1300 = vmatpush1.bf16.msra.mxu0 0
      %1301 = vmatprep.subr.bf16.mxu0 0
      %1302 = vmatpush1.bf16.msra.mxu0 0
      %1303 = vmatprep.subr.bf16.mxu0 0
      %1304 = vmatpush1.bf16.msra.mxu0 0
      %1305 = vmatprep.subr.bf16.mxu0 0
      %1306 = vmatpush1.bf16.msra.mxu0 0
      %1307 = vmatprep.mubr.bf16.mxu0 0
      %1308 = vmatmul.mubr.bf16.gmra.mrb[0].mxu0 %v1270
      %v1309 = vpop.f32.mrb[0].mxu0
      %v1310 = vadd.f32 0.0, %v1309
      %v1311 = vpop.f32.mrb[0].mxu0
      %v1312 = vpop.f32.mrb[0].mxu0
      %v1313 = vadd.f32 0.0, %v1312
      %v1314 = vpop.f32.mrb[0].mxu0
      %1315 = vmatprep.mubr.bf16.mxu0 0
      %1316 = vmatmul.mubr.bf16.gmra.mrb[0].mxu0 %v1273
      %v1317 = vpop.f32.mrb[0].mxu0
      %v1318 = vadd.f32 0.0, %v1317
      %v1319 = vpop.f32.mrb[0].mxu0
      %v1320 = vpop.f32.mrb[0].mxu0
      %v1321 = vadd.f32 0.0, %v1320
      %v1322 = vpop.f32.mrb[0].mxu0
      %1323 = vdwg.mxu0
      %1324 = vrot.lane.b32.xlu0 %v783, 104
      %v1325 = vpop.permute.xlu0 %1324
      %1326 = vrot.lane.b32.xlu0 %v784, 104
      %v1327 = vpop.permute.xlu0 %1326
      %1328 = vrot.lane.b32.xlu0 %v783, 72
      %v1329 = vpop.permute.xlu0 %1328
      %1330 = vrot.lane.b32.xlu0 %v784, 72
      %v1331 = vpop.permute.xlu0 %1330
      %v1333 = vsel %vm791, %v1325, 0
      %v1336 = vsel %vm791, %v1327, 0
      %v1339 = vsel %vm791, %v1329, 0
      %v1342 = vsel %vm791, %v1331, 0
      %1344 = vmatprep.subr.bf16.mxu0 0
      %1345 = vmatpush1.bf16.xpose.msra.mxu0 %v1339
      %1346 = vmatprep.subr.bf16.mxu0 0
      %1347 = vmatpush1.bf16.xpose.msra.mxu0 %v1342
      %1348 = vmatprep.subr.bf16.mxu0 0
      %1349 = vmatpush1.bf16.xpose.msra.mxu0 0
      %1350 = vmatprep.subr.bf16.mxu0 0
      %1351 = vmatpush1.bf16.xpose.msra.mxu0 0
      %1352 = vmatprep.subr.bf16.mxu0 0
      %1353 = vmatpush1.bf16.xpose.msra.mxu0 0
      %1354 = vmatprep.subr.bf16.mxu0 0
      %1355 = vmatpush1.bf16.xpose.msra.mxu0 0
      %1356 = vmatprep.subr.bf16.mxu0 0
      %1357 = vmatpush1.bf16.xpose.msra.mxu0 0
      %1358 = vmatprep.subr.bf16.mxu0 0
      %1359 = vmatpush1.bf16.xpose.msra.mxu0 0
      %1360 = vmatprep.subr.bf16.mxu0 0
      %1361 = vmatpush1.bf16.xpose.msra.mxu0 0
      %1362 = vmatprep.subr.bf16.mxu0 0
      %1363 = vmatpush1.bf16.xpose.msra.mxu0 0
      %1364 = vmatprep.subr.bf16.mxu0 0
      %1365 = vmatpush1.bf16.xpose.msra.mxu0 0
      %1366 = vmatprep.subr.bf16.mxu0 0
      %1367 = vmatpush1.bf16.xpose.msra.mxu0 0
      %1368 = vmatprep.subr.bf16.mxu0 0
      %1369 = vmatpush1.bf16.xpose.msra.mxu0 0
      %1370 = vmatprep.subr.bf16.mxu0 0
      %1371 = vmatpush1.bf16.xpose.msra.mxu0 0
      %1372 = vmatprep.subr.bf16.mxu0 0
      %1373 = vmatpush1.bf16.xpose.msra.mxu0 0
      %1374 = vmatprep.subr.bf16.mxu0 0
      %1375 = vmatpush1.bf16.xpose.msra.mxu0 0
      %1376 = vmatprep.mubr.bf16.mxu0 0
      %1377 = vmatmul.mubr.bf16.gmra.mrb[0].mxu0 %v1333
      %v1378 = vpop.f32.mrb[0].mxu0
      %v1379 = vadd.f32 0.0, %v1378
      %v1380 = vpop.f32.mrb[0].mxu0
      %v1381 = vpop.f32.mrb[0].mxu0
      %v1382 = vadd.f32 0.0, %v1381
      %v1383 = vpop.f32.mrb[0].mxu0
      %1384 = vmatprep.mubr.bf16.mxu0 0
      %1385 = vmatmul.mubr.bf16.gmra.mrb[0].mxu0 %v1336
      %v1386 = vpop.f32.mrb[0].mxu0
      %v1387 = vadd.f32 0.0, %v1386
      %v1388 = vpop.f32.mrb[0].mxu0
      %v1389 = vpop.f32.mrb[0].mxu0
      %v1390 = vadd.f32 0.0, %v1389
      %v1391 = vpop.f32.mrb[0].mxu0
      %1392 = vdwg.mxu0
      %v1393 = vmul.f32 %v1379, 0.35355338
      %v1394 = vmul.f32 %v1382, 0.35355338
      %v1395 = vmul.f32 %v1387, 0.35355338
      %v1396 = vmul.f32 %v1390, 0.35355338
      %v1397 = vsel %vm627, %v1393, -inf
      %1398 = vmax.xlane.f32.xlu0 %v1397
      %v1399 = vpop.xlane.xlu0 %1398
      %v1400 = vsel %vm627, %v1394, -inf
      %1401 = vmax.xlane.f32.xlu0 %v1400
      %v1402 = vpop.xlane.xlu0 %1401
      %v1403 = vsel %vm627, %v1395, -inf
      %1404 = vmax.xlane.f32.xlu0 %v1403
      %v1405 = vpop.xlane.xlu0 %1404
      %v1406 = vsel %vm627, %v1396, -inf
      %1407 = vmax.xlane.f32.xlu0 %v1406
      %v1408 = vpop.xlane.xlu0 %1407
      %v1409 = vsub.f32 %v1393, %v1399
      %v1410 = vsub.f32 %v1394, %v1402
      %v1411 = vsub.f32 %v1395, %v1405
      %v1412 = vsub.f32 %v1396, %v1408
      %v1413 = vmul.f32 %v1409, 1.442695
      %v1414 = vpow.pop %v1413
      %v1415 = vmul.f32 %v1410, 1.442695
      %v1416 = vpow.pop %v1415
      %v1417 = vmul.f32 %v1411, 1.442695
      %v1418 = vpow.pop %v1417
      %v1419 = vmul.f32 %v1412, 1.442695
      %v1420 = vpow.pop %v1419
      %v1421 = vsel %vm627, %v1414, 0.0
      %1422 = vadd.xlane.f32.xlu0 %v1421
      %v1423 = vpop.xlane.xlu0 %1422
      %v1424 = vsel %vm627, %v1416, 0.0
      %1425 = vadd.xlane.f32.xlu0 %v1424
      %v1426 = vpop.xlane.xlu0 %1425
      %v1427 = vsel %vm627, %v1418, 0.0
      %1428 = vadd.xlane.f32.xlu0 %v1427
      %v1429 = vpop.xlane.xlu0 %1428
      %v1430 = vsel %vm627, %v1420, 0.0
      %1431 = vadd.xlane.f32.xlu0 %v1430
      %v1432 = vpop.xlane.xlu0 %1431
      %v1433 = vrcp.pop %v1423
      %v1434 = vrcp.pop %v1426
      %v1435 = vrcp.pop %v1429
      %v1436 = vrcp.pop %v1432
      %v1437 = vmul.f32 %v1414, %v1433
      %v1438 = vmul.f32 %v1416, %v1434
      %v1439 = vmul.f32 %v1418, %v1435
      %v1440 = vmul.f32 %v1420, %v1436
      %v1441 = vpack.c.bf16 %v1438, %v1437
      %v1442 = vpack.c.bf16 %v1440, %v1439
      %1443 = vrot.lane.b32.xlu0 %v783, 40
      %v1444 = vpop.permute.xlu0 %1443
      %1445 = vrot.lane.b32.xlu0 %v784, 40
      %v1446 = vpop.permute.xlu0 %1445
      %v1450 = vsel %vm627, %v1441, 0
      %v1453 = vsel %vm627, %v1442, 0
      %1455 = vmatprep.subr.bf16.mxu0 0
      %1456 = vmatpush1.bf16.msra.mxu0 %v1444
      %1457 = vmatprep.subr.bf16.mxu0 0
      %1458 = vmatpush1.bf16.msra.mxu0 %v1446
      %1459 = vmatprep.subr.bf16.mxu0 0
      %1460 = vmatpush1.bf16.msra.mxu0 0
      %1461 = vmatprep.subr.bf16.mxu0 0
      %1462 = vmatpush1.bf16.msra.mxu0 0
      %1463 = vmatprep.subr.bf16.mxu0 0
      %1464 = vmatpush1.bf16.msra.mxu0 0
      %1465 = vmatprep.subr.bf16.mxu0 0
      %1466 = vmatpush1.bf16.msra.mxu0 0
      %1467 = vmatprep.subr.bf16.mxu0 0
      %1468 = vmatpush1.bf16.msra.mxu0 0
      %1469 = vmatprep.subr.bf16.mxu0 0
      %1470 = vmatpush1.bf16.msra.mxu0 0
      %1471 = vmatprep.subr.bf16.mxu0 0
      %1472 = vmatpush1.bf16.msra.mxu0 0
      %1473 = vmatprep.subr.bf16.mxu0 0
      %1474 = vmatpush1.bf16.msra.mxu0 0
      %1475 = vmatprep.subr.bf16.mxu0 0
      %1476 = vmatpush1.bf16.msra.mxu0 0
      %1477 = vmatprep.subr.bf16.mxu0 0
      %1478 = vmatpush1.bf16.msra.mxu0 0
      %1479 = vmatprep.subr.bf16.mxu0 0
      %1480 = vmatpush1.bf16.msra.mxu0 0
      %1481 = vmatprep.subr.bf16.mxu0 0
      %1482 = vmatpush1.bf16.msra.mxu0 0
      %1483 = vmatprep.subr.bf16.mxu0 0
      %1484 = vmatpush1.bf16.msra.mxu0 0
      %1485 = vmatprep.subr.bf16.mxu0 0
      %1486 = vmatpush1.bf16.msra.mxu0 0
      %1487 = vmatprep.mubr.bf16.mxu0 0
      %1488 = vmatmul.mubr.bf16.gmra.mrb[0].mxu0 %v1450
      %v1489 = vpop.f32.mrb[0].mxu0
      %v1490 = vadd.f32 0.0, %v1489
      %v1491 = vpop.f32.mrb[0].mxu0
      %v1492 = vpop.f32.mrb[0].mxu0
      %v1493 = vadd.f32 0.0, %v1492
      %v1494 = vpop.f32.mrb[0].mxu0
      %1495 = vmatprep.mubr.bf16.mxu0 0
      %1496 = vmatmul.mubr.bf16.gmra.mrb[0].mxu0 %v1453
      %v1497 = vpop.f32.mrb[0].mxu0
      %v1498 = vadd.f32 0.0, %v1497
      %v1499 = vpop.f32.mrb[0].mxu0
      %v1500 = vpop.f32.mrb[0].mxu0
      %v1501 = vadd.f32 0.0, %v1500
      %v1502 = vpop.f32.mrb[0].mxu0
      %1503 = vdwg.mxu0
      %1508 = vrot.lane.b32.xlu0 %v1130, 8
      %v1509 = vpop.permute.xlu0 %1508
      %1510 = vrot.lane.b32.xlu0 %v1133, 8
      %v1511 = vpop.permute.xlu0 %1510
      %1512 = vrot.lane.b32.xlu0 %v1138, 8
      %v1513 = vpop.permute.xlu0 %1512
      %1514 = vrot.lane.b32.xlu0 %v1141, 8
      %v1515 = vpop.permute.xlu0 %1514
      %1524 = vrot.lane.b32.xlu0 %v1310, 16
      %v1525 = vpop.permute.xlu0 %1524
      %1526 = vrot.lane.b32.xlu0 %v1313, 16
      %v1527 = vpop.permute.xlu0 %1526
      %1528 = vrot.lane.b32.xlu0 %v1318, 16
      %v1529 = vpop.permute.xlu0 %1528
      %1530 = vrot.lane.b32.xlu0 %v1321, 16
      %v1531 = vpop.permute.xlu0 %1530
      %1540 = vrot.lane.b32.xlu0 %v1490, 24
      %v1541 = vpop.permute.xlu0 %1540
      %1542 = vrot.lane.b32.xlu0 %v1493, 24
      %v1543 = vpop.permute.xlu0 %1542
      %1544 = vrot.lane.b32.xlu0 %v1498, 24
      %v1545 = vpop.permute.xlu0 %1544
      %1546 = vrot.lane.b32.xlu0 %v1501, 24
      %v1547 = vpop.permute.xlu0 %1546
      %v1552 = vsel %vm791, %v950, %v1509
      %v1553 = vsel %vm791, %v953, %v1511
      %v1554 = vsel %vm791, %v958, %v1513
      %v1555 = vsel %vm791, %v961, %v1515
      %vm1556 = vcmask 130048
      %v1557 = vsel %vm1556, %v1552, %v1525
      %v1558 = vsel %vm1556, %v1553, %v1527
      %v1559 = vsel %vm1556, %v1554, %v1529
      %v1560 = vsel %vm1556, %v1555, %v1531
      %vm1561 = vcmask 195584
      %v1562 = vsel %vm1561, %v1557, %v1541
      %v1563 = vsel %vm1561, %v1558, %v1543
      %v1564 = vsel %vm1561, %v1559, %v1545
      %v1565 = vsel %vm1561, %v1560, %v1547
      %v1566 = vpack.c.bf16 %v1563, %v1562
      %v1567 = vpack.c.bf16 %v1565, %v1564
      %v1568 = vld [vmem:[%s7] sm:$0xf]
      %v1569 = vld [vmem:[%s7 + $0x4] sm:$0xf]
      %v1570 = vld [vmem:[%s7 + $0x8] sm:$0xf]
      %v1571 = vld [vmem:[%s7 + $0xc] sm:$0xf]
      %v1572 = vld [vmem:[%s8] sm:$0x1]
      %v1574 = vlaneseq
      %v1575 = vshrl.u32 %v1574, 7
      %v1576 = vsub.s32 0, %v1575
      %v1577 = vrot.slane %v1572, %v1576
      %v1583 = vunpack.c.l.b16 %v1568
      %v1584 = vunpack.c.l.b16 %v1569
      %v1585 = vunpack.c.l.b16 %v1570
      %v1586 = vunpack.c.l.b16 %v1571
      %v1587 = vpack.c.b16 %v1584, %v1583
      %v1588 = vpack.c.b16 %v1586, %v1585
      %v1592 = vsel %vm627, %v1566, 0
      %v1595 = vsel %vm627, %v1567, 0
      %1597 = vmatprep.subr.bf16.mxu0 0
      %1598 = vmatpush1.bf16.msra.mxu0 %v1587
      %1599 = vmatprep.subr.bf16.mxu0 0
      %1600 = vmatpush1.bf16.msra.mxu0 %v1588
      %1601 = vmatprep.subr.bf16.mxu0 0
      %1602 = vmatpush1.bf16.msra.mxu0 0
      %1603 = vmatprep.subr.bf16.mxu0 0
      %1604 = vmatpush1.bf16.msra.mxu0 0
      %1605 = vmatprep.subr.bf16.mxu0 0
      %1606 = vmatpush1.bf16.msra.mxu0 0
      %1607 = vmatprep.subr.bf16.mxu0 0
      %1608 = vmatpush1.bf16.msra.mxu0 0
      %1609 = vmatprep.subr.bf16.mxu0 0
      %1610 = vmatpush1.bf16.msra.mxu0 0
      %1611 = vmatprep.subr.bf16.mxu0 0
      %1612 = vmatpush1.bf16.msra.mxu0 0
      %1613 = vmatprep.subr.bf16.mxu0 0
      %1614 = vmatpush1.bf16.msra.mxu0 0
      %1615 = vmatprep.subr.bf16.mxu0 0
      %1616 = vmatpush1.bf16.msra.mxu0 0
      %1617 = vmatprep.subr.bf16.mxu0 0
      %1618 = vmatpush1.bf16.msra.mxu0 0
      %1619 = vmatprep.subr.bf16.mxu0 0
      %1620 = vmatpush1.bf16.msra.mxu0 0
      %1621 = vmatprep.subr.bf16.mxu0 0
      %1622 = vmatpush1.bf16.msra.mxu0 0
      %1623 = vmatprep.subr.bf16.mxu0 0
      %1624 = vmatpush1.bf16.msra.mxu0 0
      %1625 = vmatprep.subr.bf16.mxu0 0
      %1626 = vmatpush1.bf16.msra.mxu0 0
      %1627 = vmatprep.subr.bf16.mxu0 0
      %1628 = vmatpush1.bf16.msra.mxu0 0
      %1629 = vmatprep.mubr.bf16.mxu0 0
      %1630 = vmatmul.mubr.bf16.gmra.mrb[0].mxu0 %v1592
      %v1631 = vpop.f32.mrb[0].mxu0
      %v1632 = vadd.f32 %v1577, %v1631
      %v1633 = vpop.f32.mrb[0].mxu0
      %v1634 = vpop.f32.mrb[0].mxu0
      %v1635 = vadd.f32 %v1577, %v1634
      %v1636 = vpop.f32.mrb[0].mxu0
      %1637 = vmatprep.mubr.bf16.mxu0 0
      %1638 = vmatmul.mubr.bf16.gmra.mrb[0].mxu0 %v1595
      %v1639 = vpop.f32.mrb[0].mxu0
      %v1640 = vadd.f32 %v1577, %v1639
      %v1641 = vpop.f32.mrb[0].mxu0
      %v1642 = vpop.f32.mrb[0].mxu0
      %v1643 = vadd.f32 %v1577, %v1642
      %v1644 = vpop.f32.mrb[0].mxu0
      %1645 = vdwg.mxu0
      %v1646 = vadd.f32 %v613, %v1632
      %v1647 = vadd.f32 %v616, %v1635
      %v1648 = vadd.f32 %v621, %v1640
      %v1649 = vadd.f32 %v624, %v1643
      %v1650 = vsel %vm627, %v1646, 0.0
      %1651 = vadd.xlane.f32.xlu0 %v1650
      %v1652 = vpop.xlane.xlu0 %1651
      %v1653 = vsel %vm627, %v1647, 0.0
      %1654 = vadd.xlane.f32.xlu0 %v1653
      %v1655 = vpop.xlane.xlu0 %1654
      %v1656 = vsel %vm627, %v1648, 0.0
      %1657 = vadd.xlane.f32.xlu0 %v1656
      %v1658 = vpop.xlane.xlu0 %1657
      %v1659 = vsel %vm627, %v1649, 0.0
      %1660 = vadd.xlane.f32.xlu0 %v1659
      %v1661 = vpop.xlane.xlu0 %1660
      %v1662 = vmul.f32 %v1652, %v640
      %v1663 = vmul.f32 %v1655, %v640
      %v1664 = vmul.f32 %v1658, %v640
      %v1665 = vmul.f32 %v1661, %v640
      %v1666 = vsub.f32 %v1646, %v1662
      %v1667 = vsub.f32 %v1647, %v1663
      %v1668 = vsub.f32 %v1648, %v1664
      %v1669 = vsub.f32 %v1649, %v1665
      %v1670 = vmul.f32 %v1666, %v1666
      %v1671 = vmul.f32 %v1667, %v1667
      %v1672 = vmul.f32 %v1668, %v1668
      %v1673 = vmul.f32 %v1669, %v1669
      %v1674 = vsel %vm627, %v1670, 0.0
      %1675 = vadd.xlane.f32.xlu0 %v1674
      %v1676 = vpop.xlane.xlu0 %1675
      %v1677 = vsel %vm627, %v1671, 0.0
      %1678 = vadd.xlane.f32.xlu0 %v1677
      %v1679 = vpop.xlane.xlu0 %1678
      %v1680 = vsel %vm627, %v1672, 0.0
      %1681 = vadd.xlane.f32.xlu0 %v1680
      %v1682 = vpop.xlane.xlu0 %1681
      %v1683 = vsel %vm627, %v1673, 0.0
      %1684 = vadd.xlane.f32.xlu0 %v1683
      %v1685 = vpop.xlane.xlu0 %1684
      %v1686 = vmul.f32 %v1676, %v640
      %v1687 = vmul.f32 %v1679, %v640
      %v1688 = vmul.f32 %v1682, %v640
      %v1689 = vmul.f32 %v1685, %v640
      %v1690 = vadd.f32 %v1686, 1e-05
      %v1691 = vadd.f32 %v1687, 1e-05
      %v1692 = vadd.f32 %v1688, 1e-05
      %v1693 = vadd.f32 %v1689, 1e-05
      %v1694 = vrsqrt.pop %v1690
      %v1695 = vrsqrt.pop %v1691
      %v1696 = vrsqrt.pop %v1692
      %v1697 = vrsqrt.pop %v1693
      %v1698 = vmul.f32 %v1666, %v1694
      %v1699 = vmul.f32 %v1667, %v1695
      %v1700 = vmul.f32 %v1668, %v1696
      %v1701 = vmul.f32 %v1669, %v1697
      %v1702 = vld [vmem:[%s9] sm:$0x1]
      %v1704 = vlaneseq
      %v1705 = vshrl.u32 %v1704, 7
      %v1706 = vsub.s32 0, %v1705
      %v1707 = vrot.slane %v1702, %v1706
      %v1709 = vmul.f32 %v1698, %v1707
      %v1710 = vmul.f32 %v1699, %v1707
      %v1711 = vmul.f32 %v1700, %v1707
      %v1712 = vmul.f32 %v1701, %v1707
      %v1713 = vld [vmem:[%s10] sm:$0x1]
      %v1715 = vlaneseq
      %v1716 = vshrl.u32 %v1715, 7
      %v1717 = vsub.s32 0, %v1716
      %v1718 = vrot.slane %v1713, %v1717
      %v1720 = vadd.f32 %v1709, %v1718
      %v1721 = vadd.f32 %v1710, %v1718
      %v1722 = vadd.f32 %v1711, %v1718
      %v1723 = vadd.f32 %v1712, %v1718
      %v1724 = vpack.c.bf16 %v1721, %v1720
      %v1725 = vpack.c.bf16 %v1723, %v1722
      %v1726 = vld [vmem:[%s11] sm:$0xf]
      %v1727 = vld [vmem:[%s11 + $0x4] sm:$0xf]
      %v1728 = vld [vmem:[%s11 + $0x8] sm:$0xf]
      %v1729 = vld [vmem:[%s11 + $0xc] sm:$0xf]
      %v1730 = vld [vmem:[%s12] sm:$0x1]
      %v1732 = vlaneseq
      %v1733 = vshrl.u32 %v1732, 7
      %v1734 = vsub.s32 0, %v1733
      %v1735 = vrot.slane %v1730, %v1734
      %v1741 = vunpack.c.l.b16 %v1726
      %v1742 = vunpack.c.l.b16 %v1727
      %v1743 = vunpack.c.l.b16 %v1728
      %v1744 = vunpack.c.l.b16 %v1729
      %v1745 = vpack.c.b16 %v1742, %v1741
      %v1746 = vpack.c.b16 %v1744, %v1743
      %v1750 = vsel %vm627, %v1724, 0
      %v1753 = vsel %vm627, %v1725, 0
      %1755 = vmatprep.subr.bf16.mxu0 0
      %1756 = vmatpush1.bf16.msra.mxu0 %v1745
      %1757 = vmatprep.subr.bf16.mxu0 0
      %1758 = vmatpush1.bf16.msra.mxu0 %v1746
      %1759 = vmatprep.subr.bf16.mxu0 0
      %1760 = vmatpush1.bf16.msra.mxu0 0
      %1761 = vmatprep.subr.bf16.mxu0 0
      %1762 = vmatpush1.bf16.msra.mxu0 0
      %1763 = vmatprep.subr.bf16.mxu0 0
      %1764 = vmatpush1.bf16.msra.mxu0 0
      %1765 = vmatprep.subr.bf16.mxu0 0
      %1766 = vmatpush1.bf16.msra.mxu0 0
      %1767 = vmatprep.subr.bf16.mxu0 0
      %1768 = vmatpush1.bf16.msra.mxu0 0
      %1769 = vmatprep.subr.bf16.mxu0 0
      %1770 = vmatpush1.bf16.msra.mxu0 0
      %1771 = vmatprep.subr.bf16.mxu0 0
      %1772 = vmatpush1.bf16.msra.mxu0 0
      %1773 = vmatprep.subr.bf16.mxu0 0
      %1774 = vmatpush1.bf16.msra.mxu0 0
      %1775 = vmatprep.subr.bf16.mxu0 0
      %1776 = vmatpush1.bf16.msra.mxu0 0
      %1777 = vmatprep.subr.bf16.mxu0 0
      %1778 = vmatpush1.bf16.msra.mxu0 0
      %1779 = vmatprep.subr.bf16.mxu0 0
      %1780 = vmatpush1.bf16.msra.mxu0 0
      %1781 = vmatprep.subr.bf16.mxu0 0
      %1782 = vmatpush1.bf16.msra.mxu0 0
      %1783 = vmatprep.subr.bf16.mxu0 0
      %1784 = vmatpush1.bf16.msra.mxu0 0
      %1785 = vmatprep.subr.bf16.mxu0 0
      %1786 = vmatpush1.bf16.msra.mxu0 0
      %1787 = vmatprep.mubr.bf16.mxu0 0
      %1788 = vmatmul.mubr.bf16.gmra.mrb[0].mxu0 %v1750
      %v1789 = vpop.f32.mrb[0].mxu0
      %v1790 = vadd.f32 %v1735, %v1789
      %v1791 = vpop.f32.mrb[0].mxu0
      %v1792 = vpop.f32.mrb[0].mxu0
      %v1793 = vadd.f32 %v1735, %v1792
      %v1794 = vpop.f32.mrb[0].mxu0
      %1795 = vmatprep.mubr.bf16.mxu0 0
      %1796 = vmatmul.mubr.bf16.gmra.mrb[0].mxu0 %v1753
      %v1797 = vpop.f32.mrb[0].mxu0
      %v1798 = vadd.f32 %v1735, %v1797
      %v1799 = vpop.f32.mrb[0].mxu0
      %v1800 = vpop.f32.mrb[0].mxu0
      %v1801 = vadd.f32 %v1735, %v1800
      %v1802 = vpop.f32.mrb[0].mxu0
      %1803 = vdwg.mxu0
      %v1804 = vmul.f32 %v1790, %v1790
      %v1805 = vmul.f32 %v1793, %v1793
      %v1806 = vmul.f32 %v1798, %v1798
      %v1807 = vmul.f32 %v1801, %v1801
      %v1808 = vmul.f32 %v1790, %v1804
      %v1809 = vmul.f32 %v1793, %v1805
      %v1810 = vmul.f32 %v1798, %v1806
      %v1811 = vmul.f32 %v1801, %v1807
      %v1812 = vmul.f32 %v1808, 0.044715
      %v1813 = vmul.f32 %v1809, 0.044715
      %v1814 = vmul.f32 %v1810, 0.044715
      %v1815 = vmul.f32 %v1811, 0.044715
      %v1816 = vadd.f32 %v1790, %v1812
      %v1817 = vadd.f32 %v1793, %v1813
      %v1818 = vadd.f32 %v1798, %v1814
      %v1819 = vadd.f32 %v1801, %v1815
      %v1820 = vmul.f32 %v1816, 0.7978846
      %v1821 = vmul.f32 %v1817, 0.7978846
      %v1822 = vmul.f32 %v1818, 0.7978846
      %v1823 = vmul.f32 %v1819, 0.7978846
      %v1824 = vtanh.pop %v1820
      %v1825 = vtanh.pop %v1821
      %v1826 = vtanh.pop %v1822
      %v1827 = vtanh.pop %v1823
      %v1828 = vadd.f32 %v1824, 1.0
      %v1829 = vadd.f32 %v1825, 1.0
      %v1830 = vadd.f32 %v1826, 1.0
      %v1831 = vadd.f32 %v1827, 1.0
      %v1832 = vmul.f32 %v1828, 0.5
      %v1833 = vmul.f32 %v1829, 0.5
      %v1834 = vmul.f32 %v1830, 0.5
      %v1835 = vmul.f32 %v1831, 0.5
      %v1836 = vmul.f32 %v1790, %v1832
      %v1837 = vmul.f32 %v1793, %v1833
      %v1838 = vmul.f32 %v1798, %v1834
      %v1839 = vmul.f32 %v1801, %v1835
      %v1840 = vpack.c.bf16 %v1837, %v1836
      %v1841 = vpack.c.bf16 %v1839, %v1838
      %v1842 = vld [vmem:[%s13] sm:$0xf]
      %v1843 = vld [vmem:[%s13 + $0x4] sm:$0xf]
      %v1844 = vld [vmem:[%s13 + $0x8] sm:$0xf]
      %v1845 = vld [vmem:[%s13 + $0xc] sm:$0xf]
      %v1846 = vld [vmem:[%s13 + $0x10] sm:$0xf]
      %v1847 = vld [vmem:[%s13 + $0x14] sm:$0xf]
      %v1848 = vld [vmem:[%s13 + $0x18] sm:$0xf]
      %v1849 = vld [vmem:[%s13 + $0x1c] sm:$0xf]
      %v1850 = vld [vmem:[%s14] sm:$0x1]
      %v1852 = vlaneseq
      %v1853 = vshrl.u32 %v1852, 7
      %v1854 = vsub.s32 0, %v1853
      %v1855 = vrot.slane %v1850, %v1854
      %v1865 = vunpack.c.l.b16 %v1842
      %v1866 = vunpack.c.l.b16 %v1843
      %v1867 = vunpack.c.l.b16 %v1844
      %v1868 = vunpack.c.l.b16 %v1845
      %v1869 = vunpack.c.l.b16 %v1846
      %v1870 = vunpack.c.l.b16 %v1847
      %v1871 = vunpack.c.l.b16 %v1848
      %v1872 = vunpack.c.l.b16 %v1849
      %v1873 = vpack.c.b16 %v1866, %v1865
      %v1874 = vpack.c.b16 %v1868, %v1867
      %v1875 = vpack.c.b16 %v1870, %v1869
      %v1876 = vpack.c.b16 %v1872, %v1871
      %vm1881 = vcmask 523264
      %v1883 = vsel %vm1881, %v1840, 0
      %v1886 = vsel %vm1881, %v1841, 0
      %1888 = vmatprep.subr.bf16.mxu0 0
      %1889 = vmatpush1.bf16.msra.mxu0 %v1873
      %1890 = vmatprep.subr.bf16.mxu0 0
      %1891 = vmatpush1.bf16.msra.mxu0 %v1874
      %1892 = vmatprep.subr.bf16.mxu0 0
      %1893 = vmatpush1.bf16.msra.mxu0 %v1875
      %1894 = vmatprep.subr.bf16.mxu0 0
      %1895 = vmatpush1.bf16.msra.mxu0 %v1876
      %1896 = vmatprep.subr.bf16.mxu0 0
      %1897 = vmatpush1.bf16.msra.mxu0 0
      %1898 = vmatprep.subr.bf16.mxu0 0
      %1899 = vmatpush1.bf16.msra.mxu0 0
      %1900 = vmatprep.subr.bf16.mxu0 0
      %1901 = vmatpush1.bf16.msra.mxu0 0
      %1902 = vmatprep.subr.bf16.mxu0 0
      %1903 = vmatpush1.bf16.msra.mxu0 0
      %1904 = vmatprep.subr.bf16.mxu0 0
      %1905 = vmatpush1.bf16.msra.mxu0 0
      %1906 = vmatprep.subr.bf16.mxu0 0
      %1907 = vmatpush1.bf16.msra.mxu0 0
      %1908 = vmatprep.subr.bf16.mxu0 0
      %1909 = vmatpush1.bf16.msra.mxu0 0
      %1910 = vmatprep.subr.bf16.mxu0 0
      %1911 = vmatpush1.bf16.msra.mxu0 0
      %1912 = vmatprep.subr.bf16.mxu0 0
      %1913 = vmatpush1.bf16.msra.mxu0 0
      %1914 = vmatprep.subr.bf16.mxu0 0
      %1915 = vmatpush1.bf16.msra.mxu0 0
      %1916 = vmatprep.subr.bf16.mxu0 0
      %1917 = vmatpush1.bf16.msra.mxu0 0
      %1918 = vmatprep.subr.bf16.mxu0 0
      %1919 = vmatpush1.bf16.msra.mxu0 0
      %1920 = vmatprep.mubr.bf16.mxu0 0
      %1921 = vmatmul.mubr.bf16.gmra.mrb[0].mxu0 %v1883
      %v1922 = vpop.f32.mrb[0].mxu0
      %v1923 = vadd.f32 %v1855, %v1922
      %v1924 = vpop.f32.mrb[0].mxu0
      %v1925 = vpop.f32.mrb[0].mxu0
      %v1926 = vadd.f32 %v1855, %v1925
      %v1927 = vpop.f32.mrb[0].mxu0
      %1928 = vmatprep.mubr.bf16.mxu0 0
      %1929 = vmatmul.mubr.bf16.gmra.mrb[0].mxu0 %v1886
      %v1930 = vpop.f32.mrb[0].mxu0
      %v1931 = vadd.f32 %v1855, %v1930
      %v1932 = vpop.f32.mrb[0].mxu0
      %v1933 = vpop.f32.mrb[0].mxu0
      %v1934 = vadd.f32 %v1855, %v1933
      %v1935 = vpop.f32.mrb[0].mxu0
      %1936 = vdwg.mxu0
      %v1937 = vadd.f32 %v1646, %v1923
      %v1938 = vadd.f32 %v1647, %v1926
      %v1939 = vadd.f32 %v1648, %v1931
      %v1940 = vadd.f32 %v1649, %v1934
      %v1941 = vpack.c.bf16 %v1938, %v1937
      %v1942 = vpack.c.bf16 %v1940, %v1939
      %v1943 = vld [vmem:[%s15] sm:$0xf]
      %v1944 = vld [vmem:[%s15 + $0x4] sm:$0xf]
      %v1945 = vld [vmem:[%s15 + $0x8] sm:$0xf]
      %v1946 = vld [vmem:[%s15 + $0xc] sm:$0xf]
      %v1947 = vld [vmem:[%s16] sm:$0x1]
      %v1949 = vlaneseq
      %v1950 = vshrl.u32 %v1949, 7
      %v1951 = vsub.s32 0, %v1950
      %v1952 = vrot.slane %v1947, %v1951
      %v1958 = vunpack.c.l.b16 %v1943
      %v1959 = vunpack.c.l.b16 %v1944
      %v1960 = vunpack.c.l.b16 %v1945
      %v1961 = vunpack.c.l.b16 %v1946
      %v1962 = vpack.c.b16 %v1959, %v1958
      %v1963 = vpack.c.b16 %v1961, %v1960
      %v1967 = vsel %vm627, %v1941, 0
      %v1970 = vsel %vm627, %v1942, 0
      %1972 = vmatprep.subr.bf16.mxu0 0
      %1973 = vmatpush1.bf16.msra.mxu0 %v1962
      %1974 = vmatprep.subr.bf16.mxu0 0
      %1975 = vmatpush1.bf16.msra.mxu0 %v1963
      %1976 = vmatprep.subr.bf16.mxu0 0
      %1977 = vmatpush1.bf16.msra.mxu0 0
      %1978 = vmatprep.subr.bf16.mxu0 0
      %1979 = vmatpush1.bf16.msra.mxu0 0
      %1980 = vmatprep.subr.bf16.mxu0 0
      %1981 = vmatpush1.bf16.msra.mxu0 0
      %1982 = vmatprep.subr.bf16.mxu0 0
      %1983 = vmatpush1.bf16.msra.mxu0 0
      %1984 = vmatprep.subr.bf16.mxu0 0
      %1985 = vmatpush1.bf16.msra.mxu0 0
      %1986 = vmatprep.subr.bf16.mxu0 0
      %1987 = vmatpush1.bf16.msra.mxu0 0
      %1988 = vmatprep.subr.bf16.mxu0 0
      %1989 = vmatpush1.bf16.msra.mxu0 0
      %1990 = vmatprep.subr.bf16.mxu0 0
      %1991 = vmatpush1.bf16.msra.mxu0 0
      %1992 = vmatprep.subr.bf16.mxu0 0
      %1993 = vmatpush1.bf16.msra.mxu0 0
      %1994 = vmatprep.subr.bf16.mxu0 0
      %1995 = vmatpush1.bf16.msra.mxu0 0
      %1996 = vmatprep.subr.bf16.mxu0 0
      %1997 = vmatpush1.bf16.msra.mxu0 0
      %1998 = vmatprep.subr.bf16.mxu0 0
      %1999 = vmatpush1.bf16.msra.mxu0 0
      %2000 = vmatprep.subr.bf16.mxu0 0
      %2001 = vmatpush1.bf16.msra.mxu0 0
      %2002 = vmatprep.subr.bf16.mxu0 0
      %2003 = vmatpush1.bf16.msra.mxu0 0
      %2004 = vmatprep.mubr.bf16.mxu0 0
      %2005 = vmatmul.mubr.bf16.gmra.mrb[0].mxu0 %v1967
      %v2006 = vpop.f32.mrb[0].mxu0
      %v2007 = vadd.f32 %v1952, %v2006
      %v2008 = vpop.f32.mrb[0].mxu0
      %v2009 = vpop.f32.mrb[0].mxu0
      %v2010 = vadd.f32 %v1952, %v2009
      %v2011 = vpop.f32.mrb[0].mxu0
      %2012 = vmatprep.mubr.bf16.mxu0 0
      %2013 = vmatmul.mubr.bf16.gmra.mrb[0].mxu0 %v1970
      %v2014 = vpop.f32.mrb[0].mxu0
      %v2015 = vadd.f32 %v1952, %v2014
      %v2016 = vpop.f32.mrb[0].mxu0
      %v2017 = vpop.f32.mrb[0].mxu0
      %v2018 = vadd.f32 %v1952, %v2017
      %v2019 = vpop.f32.mrb[0].mxu0
      %2020 = vdwg.mxu0
      %2021 = vst.msk [vmem:[%s550] sm:$0xff] %vm567, %v2007
      %2022 = vst.msk [vmem:[%s550 + $0x8] sm:$0xff] %vm567, %v2010
      %2023 = vst.msk [vmem:[%s550 + $0x10] sm:$0xff] %vm567, %v2015
      %2024 = vst.msk [vmem:[%s550 + $0x18] sm:$0xff] %vm567, %v2018
      %s2025 = smul.u32 4, %s28
      %p2026 = scmp.lt.s32.totalorder %s2025, 7
      %s2027 = scalar_select %p2026, %s2025, 7
      %s2028 = smul.addr %s2027, 8
      %s2029 = scalar_lea.vmem %s17, %s2028
      // Predicated region
      $region89: #{spectnt_forward.5} parent=87 // pred_check
        %p2030 = pneg %p408
      $region90: #{spectnt_forward.5} parent=87 // pred_check_branch
        %2032 = sbr.rel (%p2030) target = $region92
      $region91: #{spectnt_forward.5} parent=87 // pred_region
        %s2033 = smul.u32 4, %s28
      $region92: #{spectnt_forward.5} parent=87 // pred_fallthru
        _
    $region88: #{spectnt_forward.5} parent=5 // pred_fallthru
      _
    %p2034 = scmp.le.s32.totalorder 2, %s23
    // Predicated region
    $region93: #{spectnt_forward.5} parent=5 // pred_check
      %p2035 = pneg %p2034
    $region94: #{spectnt_forward.5} parent=5 // pred_check_branch
      %2037 = sbr.rel (%p2035) target = $region96
    $region95: #{spectnt_forward.5} parent=5 // pred_region
      %s2038 = ssub.s32 %s23, 2
      // Predicated region
      $region97: #{spectnt_forward.5} parent=95 // pred_check
        %p2039 = pneg %p414
      $region98: #{spectnt_forward.5} parent=95 // pred_check_branch
        %2041 = sbr.rel (%p2039) target = $region100
      $region99: #{spectnt_forward.5} parent=95 // pred_region
        %s2042 = smul.u32 4, %s29
        %p2043 = scmp.lt.s32.totalorder %s2042, 7
        %s2044 = scalar_select %p2043, %s2042, 7
        %s2045 = smul.addr %s2044, 8
        %s2046 = scalar_lea.vmem %s17, %s2045
      $region100: #{spectnt_forward.5} parent=95 // pred_fallthru
        _
    $region96: #{spectnt_forward.5} parent=5 // pred_fallthru
      _
  $region6: #{spectnt_forward.5} parent=0 // loop_footer
    %s27 = sadd.s32 1, %s23
  $region7: #{spectnt_forward.5} parent=0 // loop_footer_branch
    %22 = sbr.rel target = $region3
  $region8: #{spectnt_forward.5} parent=0 // loop_exit
    _

// kernel: spectnt_forward.4
$region0: #{spectnt_forward.4}
  #allocation0 [shape = 'u32[]', space=smem, size = 0x4, offset = 0x4, fixed_abs, tag = 'smem constant byte address 0x4 - core index']
  #allocation1 [shape = 'u32[144,128]{1,0:T(1,128)}', space=vmem, size = 0x12000, scoped, tag = 'internal scratch']
  %s0 = inlined_call_operand.vmem [shape: f32[32,9], index: 0, kind: input, shape index: {}]
  %s1 = inlined_call_operand.vmem [shape: bf16[9,32], index: 1, kind: input, shape index: {}]
  %s2 = inlined_call_operand.vmem [shape: f32[1,32], index: 2, kind: input, shape index: {}]
  %s3 = inlined_call_operand.vmem [shape: f32[1,32], index: 3, kind: input, shape index: {}]
  %s4 = inlined_call_operand.vmem [shape: f32[1,32], index: 4, kind: input, shape index: {}]
  %s5 = inlined_call_operand.vmem [shape: bf16[32,96], index: 5, kind: input, shape index: {}]
  %s6 = inlined_call_operand.vmem [shape: f32[1,96], index: 6, kind: input, shape index: {}]
  %s7 = inlined_call_operand.vmem [shape: bf16[32,32], index: 7, kind: input, shape index: {}]
  %s8 = inlined_call_operand.vmem [shape: f32[1,32], index: 8, kind: input, shape index: {}]
  %s9 = inlined_call_operand.vmem [shape: f32[1,32], index: 9, kind: input, shape index: {}]
  %s10 = inlined_call_operand.vmem [shape: f32[1,32], index: 10, kind: input, shape index: {}]
  %s11 = inlined_call_operand.vmem [shape: bf16[32,64], index: 11, kind: input, shape index: {}]
  %s12 = inlined_call_operand.vmem [shape: f32[1,64], index: 12, kind: input, shape index: {}]
  %s13 = inlined_call_operand.vmem [shape: bf16[64,32], index: 13, kind: input, shape index: {}]
  %s14 = inlined_call_operand.vmem [shape: f32[1,32], index: 14, kind: input, shape index: {}]
  %s15 = inlined_call_operand.vmem [shape: bf16[32,9], index: 15, kind: input, shape index: {}]
  %s16 = inlined_call_operand.vmem [shape: f32[1,9], index: 16, kind: input, shape index: {}]
  %s17 = inlined_call_operand.vmem [shape: f32[32,9], index: 17, kind: output, shape index: {}]
  %s18 = sld [smem:[#allocation0]]
  $region101: #{spectnt_forward.4} parent=0
    _
  %s20 = ssub.s32 1, %s18
  %s21 = scalar_select 0, %s20, %s18
  loop: start=0, step=1, limit=4
  $region2: #{spectnt_forward.4} parent=0 // loop_pre_header
    _
  $region3: #{spectnt_forward.4} parent=0 // loop_header
    %s23 = sphi 0, %s27
    %p24 = scmp.ge.s32.totalorder %s23, 4
    %s33 = sphi 0, %s35
    %s36 = sphi 0, %s33
    %s37 = sphi 0, %s36
    %s53 = sphi 0, %s37
    %s57 = sphi 0, %s57
    %s59 = sphi 0, %s57
    %s60 = sphi 0, %s59
    %s74 = sphi 0, %s60
    %s78 = sphi 0, %s78
    %s80 = sphi 0, %s78
    %s81 = sphi 0, %s80
    %s95 = sphi 0, %s81
    %s99 = sphi 0, %s99
    %s101 = sphi 0, %s99
    %s102 = sphi 0, %s101
    %s116 = sphi 0, %s102
    %s120 = sphi 0, %s120
    %s122 = sphi 0, %s120
    %s123 = sphi 0, %s122
    %s137 = sphi 0, %s123
    %s141 = sphi 0, %s141
    %s143 = sphi 0, %s141
    %s144 = sphi 0, %s143
    %s158 = sphi 0, %s144
    %s162 = sphi 0, %s162
    %s164 = sphi 0, %s162
    %s165 = sphi 0, %s164
    %s179 = sphi 0, %s165
    %s183 = sphi 0, %s183
    %s185 = sphi 0, %s183
    %s186 = sphi 0, %s185
    %s200 = sphi 0, %s186
    %s204 = sphi 0, %s204
    %s206 = sphi 0, %s204
    %s207 = sphi 0, %s206
    %s221 = sphi 0, %s207
    %s225 = sphi 0, %s225
    %s227 = sphi 0, %s225
    %s228 = sphi 0, %s227
    %s242 = sphi 0, %s228
    %s246 = sphi 0, %s246
    %s248 = sphi 0, %s246
    %s249 = sphi 0, %s248
    %s263 = sphi 0, %s249
    %s267 = sphi 0, %s267
    %s269 = sphi 0, %s267
    %s270 = sphi 0, %s269
    %s284 = sphi 0, %s270
    %s288 = sphi 0, %s288
    %s290 = sphi 0, %s288
    %s291 = sphi 0, %s290
    %s305 = sphi 0, %s291
    %s309 = sphi 0, %s309
    %s311 = sphi 0, %s309
    %s312 = sphi 0, %s311
    %s326 = sphi 0, %s312
    %s330 = sphi 0, %s330
    %s332 = sphi 0, %s330
    %s333 = sphi 0, %s332
    %s347 = sphi 0, %s333
    %s351 = sphi 0, %s351
    %s353 = sphi 0, %s351
    %s354 = sphi 0, %s353
    %s368 = sphi 0, %s354
    %s372 = sphi 0, %s372
    %s374 = sphi 0, %s372
    %s375 = sphi 0, %s374
    %s389 = sphi 0, %s375
    %s395 = sphi 0, %s397
    %s398 = sphi 0, %s395
    %s399 = sphi 0, %s398
    %s415 = sphi 0, %s399
  $region4: #{spectnt_forward.4} parent=0 // loop_header_branch
    %26 = sbr.rel (%p24) target = $region8
  $region5: #{spectnt_forward.4} parent=0 // loop_body
    %s28 = ssub.s32 %s23, 1
    %s29 = ssub.s32 %s23, 2
    %s30 = sadd.s32 %s23, 1
    %s31 = ssub.s32 %s23, %s30
    %p32 = scmp.eq.s32.totalorder %s31, 0
    %s34 = sadd.s32 %s33, 1
    %s35 = scalar_select %p32, %s33, %s34
    %p38 = pneg %p32
    %p39 = scmp.eq.s32.totalorder %s23, 1
    %p40 = por %p38, %p39
    %p41 = scmp.ne.s32.totalorder %s33, %s36
    %p42 = scmp.eq.s32.totalorder %s23, 0
    %p43 = por %p41, %p42
    %p44 = scmp.ne.s32.totalorder %s33, %s36
    %p45 = scmp.eq.s32.totalorder %s28, 1
    %p46 = por %p44, %p45
    %p47 = scmp.ne.s32.totalorder %s36, %s37
    %p48 = scmp.eq.s32.totalorder %s28, 0
    %p49 = por %p47, %p48
    %p50 = scmp.ne.s32.totalorder %s36, %s37
    %p51 = scmp.eq.s32.totalorder %s29, 1
    %p52 = por %p50, %p51
    %p54 = scmp.ne.s32.totalorder %s37, %s53
    %p55 = scmp.eq.s32.totalorder %s29, 0
    %p56 = por %p54, %p55
    %s58 = sadd.s32 %s57, 1
    %p61 = scmp.eq.s32.totalorder %s23, 1
    %p62 = scmp.ne.s32.totalorder %s57, %s59
    %p63 = scmp.eq.s32.totalorder %s23, 0
    %p64 = por %p62, %p63
    %p65 = scmp.ne.s32.totalorder %s57, %s59
    %p66 = scmp.eq.s32.totalorder %s28, 1
    %p67 = por %p65, %p66
    %p68 = scmp.ne.s32.totalorder %s59, %s60
    %p69 = scmp.eq.s32.totalorder %s28, 0
    %p70 = por %p68, %p69
    %p71 = scmp.ne.s32.totalorder %s59, %s60
    %p72 = scmp.eq.s32.totalorder %s29, 1
    %p73 = por %p71, %p72
    %p75 = scmp.ne.s32.totalorder %s60, %s74
    %p76 = scmp.eq.s32.totalorder %s29, 0
    %p77 = por %p75, %p76
    %s79 = sadd.s32 %s78, 1
    %p82 = scmp.eq.s32.totalorder %s23, 1
    %p83 = scmp.ne.s32.totalorder %s78, %s80
    %p84 = scmp.eq.s32.totalorder %s23, 0
    %p85 = por %p83, %p84
    %p86 = scmp.ne.s32.totalorder %s78, %s80
    %p87 = scmp.eq.s32.totalorder %s28, 1
    %p88 = por %p86, %p87
    %p89 = scmp.ne.s32.totalorder %s80, %s81
    %p90 = scmp.eq.s32.totalorder %s28, 0
    %p91 = por %p89, %p90
    %p92 = scmp.ne.s32.totalorder %s80, %s81
    %p93 = scmp.eq.s32.totalorder %s29, 1
    %p94 = por %p92, %p93
    %p96 = scmp.ne.s32.totalorder %s81, %s95
    %p97 = scmp.eq.s32.totalorder %s29, 0
    %p98 = por %p96, %p97
    %s100 = sadd.s32 %s99, 1
    %p103 = scmp.eq.s32.totalorder %s23, 1
    %p104 = scmp.ne.s32.totalorder %s99, %s101
    %p105 = scmp.eq.s32.totalorder %s23, 0
    %p106 = por %p104, %p105
    %p107 = scmp.ne.s32.totalorder %s99, %s101
    %p108 = scmp.eq.s32.totalorder %s28, 1
    %p109 = por %p107, %p108
    %p110 = scmp.ne.s32.totalorder %s101, %s102
    %p111 = scmp.eq.s32.totalorder %s28, 0
    %p112 = por %p110, %p111
    %p113 = scmp.ne.s32.totalorder %s101, %s102
    %p114 = scmp.eq.s32.totalorder %s29, 1
    %p115 = por %p113, %p114
    %p117 = scmp.ne.s32.totalorder %s102, %s116
    %p118 = scmp.eq.s32.totalorder %s29, 0
    %p119 = por %p117, %p118
    %s121 = sadd.s32 %s120, 1
    %p124 = scmp.eq.s32.totalorder %s23, 1
    %p125 = scmp.ne.s32.totalorder %s120, %s122
    %p126 = scmp.eq.s32.totalorder %s23, 0
    %p127 = por %p125, %p126
    %p128 = scmp.ne.s32.totalorder %s120, %s122
    %p129 = scmp.eq.s32.totalorder %s28, 1
    %p130 = por %p128, %p129
    %p131 = scmp.ne.s32.totalorder %s122, %s123
    %p132 = scmp.eq.s32.totalorder %s28, 0
    %p133 = por %p131, %p132
    %p134 = scmp.ne.s32.totalorder %s122, %s123
    %p135 = scmp.eq.s32.totalorder %s29, 1
    %p136 = por %p134, %p135
    %p138 = scmp.ne.s32.totalorder %s123, %s137
    %p139 = scmp.eq.s32.totalorder %s29, 0
    %p140 = por %p138, %p139
    %s142 = sadd.s32 %s141, 1
    %p145 = scmp.eq.s32.totalorder %s23, 1
    %p146 = scmp.ne.s32.totalorder %s141, %s143
    %p147 = scmp.eq.s32.totalorder %s23, 0
    %p148 = por %p146, %p147
    %p149 = scmp.ne.s32.totalorder %s141, %s143
    %p150 = scmp.eq.s32.totalorder %s28, 1
    %p151 = por %p149, %p150
    %p152 = scmp.ne.s32.totalorder %s143, %s144
    %p153 = scmp.eq.s32.totalorder %s28, 0
    %p154 = por %p152, %p153
    %p155 = scmp.ne.s32.totalorder %s143, %s144
    %p156 = scmp.eq.s32.totalorder %s29, 1
    %p157 = por %p155, %p156
    %p159 = scmp.ne.s32.totalorder %s144, %s158
    %p160 = scmp.eq.s32.totalorder %s29, 0
    %p161 = por %p159, %p160
    %s163 = sadd.s32 %s162, 1
    %p166 = scmp.eq.s32.totalorder %s23, 1
    %p167 = scmp.ne.s32.totalorder %s162, %s164
    %p168 = scmp.eq.s32.totalorder %s23, 0
    %p169 = por %p167, %p168
    %p170 = scmp.ne.s32.totalorder %s162, %s164
    %p171 = scmp.eq.s32.totalorder %s28, 1
    %p172 = por %p170, %p171
    %p173 = scmp.ne.s32.totalorder %s164, %s165
    %p174 = scmp.eq.s32.totalorder %s28, 0
    %p175 = por %p173, %p174
    %p176 = scmp.ne.s32.totalorder %s164, %s165
    %p177 = scmp.eq.s32.totalorder %s29, 1
    %p178 = por %p176, %p177
    %p180 = scmp.ne.s32.totalorder %s165, %s179
    %p181 = scmp.eq.s32.totalorder %s29, 0
    %p182 = por %p180, %p181
    %s184 = sadd.s32 %s183, 1
    %p187 = scmp.eq.s32.totalorder %s23, 1
    %p188 = scmp.ne.s32.totalorder %s183, %s185
    %p189 = scmp.eq.s32.totalorder %s23, 0
    %p190 = por %p188, %p189
    %p191 = scmp.ne.s32.totalorder %s183, %s185
    %p192 = scmp.eq.s32.totalorder %s28, 1
    %p193 = por %p191, %p192
    %p194 = scmp.ne.s32.totalorder %s185, %s186
    %p195 = scmp.eq.s32.totalorder %s28, 0
    %p196 = por %p194, %p195
    %p197 = scmp.ne.s32.totalorder %s185, %s186
    %p198 = scmp.eq.s32.totalorder %s29, 1
    %p199 = por %p197, %p198
    %p201 = scmp.ne.s32.totalorder %s186, %s200
    %p202 = scmp.eq.s32.totalorder %s29, 0
    %p203 = por %p201, %p202
    %s205 = sadd.s32 %s204, 1
    %p208 = scmp.eq.s32.totalorder %s23, 1
    %p209 = scmp.ne.s32.totalorder %s204, %s206
    %p210 = scmp.eq.s32.totalorder %s23, 0
    %p211 = por %p209, %p210
    %p212 = scmp.ne.s32.totalorder %s204, %s206
    %p213 = scmp.eq.s32.totalorder %s28, 1
    %p214 = por %p212, %p213
    %p215 = scmp.ne.s32.totalorder %s206, %s207
    %p216 = scmp.eq.s32.totalorder %s28, 0
    %p217 = por %p215, %p216
    %p218 = scmp.ne.s32.totalorder %s206, %s207
    %p219 = scmp.eq.s32.totalorder %s29, 1
    %p220 = por %p218, %p219
    %p222 = scmp.ne.s32.totalorder %s207, %s221
    %p223 = scmp.eq.s32.totalorder %s29, 0
    %p224 = por %p222, %p223
    %s226 = sadd.s32 %s225, 1
    %p229 = scmp.eq.s32.totalorder %s23, 1
    %p230 = scmp.ne.s32.totalorder %s225, %s227
    %p231 = scmp.eq.s32.totalorder %s23, 0
    %p232 = por %p230, %p231
    %p233 = scmp.ne.s32.totalorder %s225, %s227
    %p234 = scmp.eq.s32.totalorder %s28, 1
    %p235 = por %p233, %p234
    %p236 = scmp.ne.s32.totalorder %s227, %s228
    %p237 = scmp.eq.s32.totalorder %s28, 0
    %p238 = por %p236, %p237
    %p239 = scmp.ne.s32.totalorder %s227, %s228
    %p240 = scmp.eq.s32.totalorder %s29, 1
    %p241 = por %p239, %p240
    %p243 = scmp.ne.s32.totalorder %s228, %s242
    %p244 = scmp.eq.s32.totalorder %s29, 0
    %p245 = por %p243, %p244
    %s247 = sadd.s32 %s246, 1
    %p250 = scmp.eq.s32.totalorder %s23, 1
    %p251 = scmp.ne.s32.totalorder %s246, %s248
    %p252 = scmp.eq.s32.totalorder %s23, 0
    %p253 = por %p251, %p252
    %p254 = scmp.ne.s32.totalorder %s246, %s248
    %p255 = scmp.eq.s32.totalorder %s28, 1
    %p256 = por %p254, %p255
    %p257 = scmp.ne.s32.totalorder %s248, %s249
    %p258 = scmp.eq.s32.totalorder %s28, 0
    %p259 = por %p257, %p258
    %p260 = scmp.ne.s32.totalorder %s248, %s249
    %p261 = scmp.eq.s32.totalorder %s29, 1
    %p262 = por %p260, %p261
    %p264 = scmp.ne.s32.totalorder %s249, %s263
    %p265 = scmp.eq.s32.totalorder %s29, 0
    %p266 = por %p264, %p265
    %s268 = sadd.s32 %s267, 1
    %p271 = scmp.eq.s32.totalorder %s23, 1
    %p272 = scmp.ne.s32.totalorder %s267, %s269
    %p273 = scmp.eq.s32.totalorder %s23, 0
    %p274 = por %p272, %p273
    %p275 = scmp.ne.s32.totalorder %s267, %s269
    %p276 = scmp.eq.s32.totalorder %s28, 1
    %p277 = por %p275, %p276
    %p278 = scmp.ne.s32.totalorder %s269, %s270
    %p279 = scmp.eq.s32.totalorder %s28, 0
    %p280 = por %p278, %p279
    %p281 = scmp.ne.s32.totalorder %s269, %s270
    %p282 = scmp.eq.s32.totalorder %s29, 1
    %p283 = por %p281, %p282
    %p285 = scmp.ne.s32.totalorder %s270, %s284
    %p286 = scmp.eq.s32.totalorder %s29, 0
    %p287 = por %p285, %p286
    %s289 = sadd.s32 %s288, 1
    %p292 = scmp.eq.s32.totalorder %s23, 1
    %p293 = scmp.ne.s32.totalorder %s288, %s290
    %p294 = scmp.eq.s32.totalorder %s23, 0
    %p295 = por %p293, %p294
    %p296 = scmp.ne.s32.totalorder %s288, %s290
    %p297 = scmp.eq.s32.totalorder %s28, 1
    %p298 = por %p296, %p297
    %p299 = scmp.ne.s32.totalorder %s290, %s291
    %p300 = scmp.eq.s32.totalorder %s28, 0
    %p301 = por %p299, %p300
    %p302 = scmp.ne.s32.totalorder %s290, %s291
    %p303 = scmp.eq.s32.totalorder %s29, 1
    %p304 = por %p302, %p303
    %p306 = scmp.ne.s32.totalorder %s291, %s305
    %p307 = scmp.eq.s32.totalorder %s29, 0
    %p308 = por %p306, %p307
    %s310 = sadd.s32 %s309, 1
    %p313 = scmp.eq.s32.totalorder %s23, 1
    %p314 = scmp.ne.s32.totalorder %s309, %s311
    %p315 = scmp.eq.s32.totalorder %s23, 0
    %p316 = por %p314, %p315
    %p317 = scmp.ne.s32.totalorder %s309, %s311
    %p318 = scmp.eq.s32.totalorder %s28, 1
    %p319 = por %p317, %p318
    %p320 = scmp.ne.s32.totalorder %s311, %s312
    %p321 = scmp.eq.s32.totalorder %s28, 0
    %p322 = por %p320, %p321
    %p323 = scmp.ne.s32.totalorder %s311, %s312
    %p324 = scmp.eq.s32.totalorder %s29, 1
    %p325 = por %p323, %p324
    %p327 = scmp.ne.s32.totalorder %s312, %s326
    %p328 = scmp.eq.s32.totalorder %s29, 0
    %p329 = por %p327, %p328
    %s331 = sadd.s32 %s330, 1
    %p334 = scmp.eq.s32.totalorder %s23, 1
    %p335 = scmp.ne.s32.totalorder %s330, %s332
    %p336 = scmp.eq.s32.totalorder %s23, 0
    %p337 = por %p335, %p336
    %p338 = scmp.ne.s32.totalorder %s330, %s332
    %p339 = scmp.eq.s32.totalorder %s28, 1
    %p340 = por %p338, %p339
    %p341 = scmp.ne.s32.totalorder %s332, %s333
    %p342 = scmp.eq.s32.totalorder %s28, 0
    %p343 = por %p341, %p342
    %p344 = scmp.ne.s32.totalorder %s332, %s333
    %p345 = scmp.eq.s32.totalorder %s29, 1
    %p346 = por %p344, %p345
    %p348 = scmp.ne.s32.totalorder %s333, %s347
    %p349 = scmp.eq.s32.totalorder %s29, 0
    %p350 = por %p348, %p349
    %s352 = sadd.s32 %s351, 1
    %p355 = scmp.eq.s32.totalorder %s23, 1
    %p356 = scmp.ne.s32.totalorder %s351, %s353
    %p357 = scmp.eq.s32.totalorder %s23, 0
    %p358 = por %p356, %p357
    %p359 = scmp.ne.s32.totalorder %s351, %s353
    %p360 = scmp.eq.s32.totalorder %s28, 1
    %p361 = por %p359, %p360
    %p362 = scmp.ne.s32.totalorder %s353, %s354
    %p363 = scmp.eq.s32.totalorder %s28, 0
    %p364 = por %p362, %p363
    %p365 = scmp.ne.s32.totalorder %s353, %s354
    %p366 = scmp.eq.s32.totalorder %s29, 1
    %p367 = por %p365, %p366
    %p369 = scmp.ne.s32.totalorder %s354, %s368
    %p370 = scmp.eq.s32.totalorder %s29, 0
    %p371 = por %p369, %p370
    %s373 = sadd.s32 %s372, 1
    %p376 = scmp.eq.s32.totalorder %s23, 1
    %p377 = scmp.ne.s32.totalorder %s372, %s374
    %p378 = scmp.eq.s32.totalorder %s23, 0
    %p379 = por %p377, %p378
    %p380 = scmp.ne.s32.totalorder %s372, %s374
    %p381 = scmp.eq.s32.totalorder %s28, 1
    %p382 = por %p380, %p381
    %p383 = scmp.ne.s32.totalorder %s374, %s375
    %p384 = scmp.eq.s32.totalorder %s28, 0
    %p385 = por %p383, %p384
    %p386 = scmp.ne.s32.totalorder %s374, %s375
    %p387 = scmp.eq.s32.totalorder %s29, 1
    %p388 = por %p386, %p387
    %p390 = scmp.ne.s32.totalorder %s375, %s389
    %p391 = scmp.eq.s32.totalorder %s29, 0
    %p392 = por %p390, %p391
    %s393 = ssub.s32 %s23, %s30
    %p394 = scmp.eq.s32.totalorder %s393, 0
    %s396 = sadd.s32 %s395, 1
    %s397 = scalar_select %p394, %s395, %s396
    %p400 = pneg %p394
    %p401 = scmp.eq.s32.totalorder %s23, 1
    %p402 = por %p400, %p401
    %p403 = scmp.ne.s32.totalorder %s395, %s398
    %p404 = scmp.eq.s32.totalorder %s23, 0
    %p405 = por %p403, %p404
    %p406 = scmp.ne.s32.totalorder %s395, %s398
    %p407 = scmp.eq.s32.totalorder %s28, 1
    %p408 = por %p406, %p407
    %p409 = scmp.ne.s32.totalorder %s398, %s399
    %p410 = scmp.eq.s32.totalorder %s28, 0
    %p411 = por %p409, %p410
    %p412 = scmp.ne.s32.totalorder %s398, %s399
    %p413 = scmp.eq.s32.totalorder %s29, 1
    %p414 = por %p412, %p413
    %p416 = scmp.ne.s32.totalorder %s399, %s415
    %p417 = scmp.eq.s32.totalorder %s29, 0
    %p418 = por %p416, %p417
    %p419 = scmp.le.s32.totalorder 1, %s23
    %p420 = scmp.lt.s32.totalorder %s23, 3
    %p421 = pnand %p419, %p420
    %p422 = pneg %p421
    // Predicated region
    $region9: #{spectnt_forward.4} parent=5 // pred_check
      _
    $region10: #{spectnt_forward.4} parent=5 // pred_check_branch
      %424 = sbr.rel (%p421) target = $region12
    $region11: #{spectnt_forward.4} parent=5 // pred_region
      %s425 = ssub.s32 %s23, 1
      // Predicated region
      $region13: #{spectnt_forward.4} parent=11 // pred_check
        %p426 = pneg %p70
      $region14: #{spectnt_forward.4} parent=11 // pred_check_branch
        %428 = sbr.rel (%p426) target = $region16
      $region15: #{spectnt_forward.4} parent=11 // pred_region
        _
      $region16: #{spectnt_forward.4} parent=11 // pred_fallthru
        _
      // Predicated region
      $region17: #{spectnt_forward.4} parent=11 // pred_check
        %p429 = pneg %p91
      $region18: #{spectnt_forward.4} parent=11 // pred_check_branch
        %431 = sbr.rel (%p429) target = $region20
      $region19: #{spectnt_forward.4} parent=11 // pred_region
        _
      $region20: #{spectnt_forward.4} parent=11 // pred_fallthru
        _
      // Predicated region
      $region21: #{spectnt_forward.4} parent=11 // pred_check
        %p432 = pneg %p112
      $region22: #{spectnt_forward.4} parent=11 // pred_check_branch
        %434 = sbr.rel (%p432) target = $region24
      $region23: #{spectnt_forward.4} parent=11 // pred_region
        _
      $region24: #{spectnt_forward.4} parent=11 // pred_fallthru
        _
      // Predicated region
      $region25: #{spectnt_forward.4} parent=11 // pred_check
        %p435 = pneg %p133
      $region26: #{spectnt_forward.4} parent=11 // pred_check_branch
        %437 = sbr.rel (%p435) target = $region28
      $region27: #{spectnt_forward.4} parent=11 // pred_region
        _
      $region28: #{spectnt_forward.4} parent=11 // pred_fallthru
        _
      // Predicated region
      $region29: #{spectnt_forward.4} parent=11 // pred_check
        %p438 = pneg %p154
      $region30: #{spectnt_forward.4} parent=11 // pred_check_branch
        %440 = sbr.rel (%p438) target = $region32
      $region31: #{spectnt_forward.4} parent=11 // pred_region
        _
      $region32: #{spectnt_forward.4} parent=11 // pred_fallthru
        _
      // Predicated region
      $region33: #{spectnt_forward.4} parent=11 // pred_check
        %p441 = pneg %p175
      $region34: #{spectnt_forward.4} parent=11 // pred_check_branch
        %443 = sbr.rel (%p441) target = $region36
      $region35: #{spectnt_forward.4} parent=11 // pred_region
        _
      $region36: #{spectnt_forward.4} parent=11 // pred_fallthru
        _
      // Predicated region
      $region37: #{spectnt_forward.4} parent=11 // pred_check
        %p444 = pneg %p196
      $region38: #{spectnt_forward.4} parent=11 // pred_check_branch
        %446 = sbr.rel (%p444) target = $region40
      $region39: #{spectnt_forward.4} parent=11 // pred_region
        _
      $region40: #{spectnt_forward.4} parent=11 // pred_fallthru
        _
      // Predicated region
      $region41: #{spectnt_forward.4} parent=11 // pred_check
        %p447 = pneg %p217
      $region42: #{spectnt_forward.4} parent=11 // pred_check_branch
        %449 = sbr.rel (%p447) target = $region44
      $region43: #{spectnt_forward.4} parent=11 // pred_region
        _
      $region44: #{spectnt_forward.4} parent=11 // pred_fallthru
        _
      // Predicated region
      $region45: #{spectnt_forward.4} parent=11 // pred_check
        %p450 = pneg %p238
      $region46: #{spectnt_forward.4} parent=11 // pred_check_branch
        %452 = sbr.rel (%p450) target = $region48
      $region47: #{spectnt_forward.4} parent=11 // pred_region
        _
      $region48: #{spectnt_forward.4} parent=11 // pred_fallthru
        _
      // Predicated region
      $region49: #{spectnt_forward.4} parent=11 // pred_check
        %p453 = pneg %p259
      $region50: #{spectnt_forward.4} parent=11 // pred_check_branch
        %455 = sbr.rel (%p453) target = $region52
      $region51: #{spectnt_forward.4} parent=11 // pred_region
        _
      $region52: #{spectnt_forward.4} parent=11 // pred_fallthru
        _
      // Predicated region
      $region53: #{spectnt_forward.4} parent=11 // pred_check
        %p456 = pneg %p280
      $region54: #{spectnt_forward.4} parent=11 // pred_check_branch
        %458 = sbr.rel (%p456) target = $region56
      $region55: #{spectnt_forward.4} parent=11 // pred_region
        _
      $region56: #{spectnt_forward.4} parent=11 // pred_fallthru
        _
      // Predicated region
      $region57: #{spectnt_forward.4} parent=11 // pred_check
        %p459 = pneg %p301
      $region58: #{spectnt_forward.4} parent=11 // pred_check_branch
        %461 = sbr.rel (%p459) target = $region60
      $region59: #{spectnt_forward.4} parent=11 // pred_region
        _
      $region60: #{spectnt_forward.4} parent=11 // pred_fallthru
        _
      // Predicated region
      $region61: #{spectnt_forward.4} parent=11 // pred_check
        %p462 = pneg %p322
      $region62: #{spectnt_forward.4} parent=11 // pred_check_branch
        %464 = sbr.rel (%p462) target = $region64
      $region63: #{spectnt_forward.4} parent=11 // pred_region
        _
      $region64: #{spectnt_forward.4} parent=11 // pred_fallthru
        _
      // Predicated region
      $region65: #{spectnt_forward.4} parent=11 // pred_check
        %p465 = pneg %p343
      $region66: #{spectnt_forward.4} parent=11 // pred_check_branch
        %467 = sbr.rel (%p465) target = $region68
      $region67: #{spectnt_forward.4} parent=11 // pred_region
        _
      $region68: #{spectnt_forward.4} parent=11 // pred_fallthru
        _
      // Predicated region
      $region69: #{spectnt_forward.4} parent=11 // pred_check
        %p468 = pneg %p364
      $region70: #{spectnt_forward.4} parent=11 // pred_check_branch
        %470 = sbr.rel (%p468) target = $region72
      $region71: #{spectnt_forward.4} parent=11 // pred_region
        _
      $region72: #{spectnt_forward.4} parent=11 // pred_fallthru
        _
      // Predicated region
      $region73: #{spectnt_forward.4} parent=11 // pred_check
        %p471 = pneg %p385
      $region74: #{spectnt_forward.4} parent=11 // pred_check_branch
        %473 = sbr.rel (%p471) target = $region76
      $region75: #{spectnt_forward.4} parent=11 // pred_region
        _
      $region76: #{spectnt_forward.4} parent=11 // pred_fallthru
        _
    $region12: #{spectnt_forward.4} parent=5 // pred_fallthru
      _
    %p474 = scmp.lt.s32.totalorder %s23, 2
    // Predicated region
    $region77: #{spectnt_forward.4} parent=5 // pred_check
      %p475 = pneg %p474
    $region78: #{spectnt_forward.4} parent=5 // pred_check_branch
      %477 = sbr.rel (%p475) target = $region80
    $region79: #{spectnt_forward.4} parent=5 // pred_region
      // Predicated region
      $region81: #{spectnt_forward.4} parent=79 // pred_check
        %p478 = pneg %p43
      $region82: #{spectnt_forward.4} parent=79 // pred_check_branch
        %480 = sbr.rel (%p478) target = $region84
      $region83: #{spectnt_forward.4} parent=79 // pred_region
        %s481 = smul.u32 2, %s23
        %p482 = scmp.lt.s32.totalorder %s481, 3
        %s483 = scalar_select %p482, %s481, 3
        %s484 = smul.addr %s483, 8
        %s485 = scalar_lea.vmem %s0, %s484
        %s486 = smul.u32 2, %s23
      $region84: #{spectnt_forward.4} parent=79 // pred_fallthru
        _
    $region80: #{spectnt_forward.4} parent=5 // pred_fallthru
      _
    %p487 = scmp.le.s32.totalorder 1, %s23
    %p488 = scmp.lt.s32.totalorder %s23, 3
    %p489 = pnand %p487, %p488
    %p490 = pneg %p489
    // Predicated region
    $region85: #{spectnt_forward.4} parent=5 // pred_check
      _
    $region86: #{spectnt_forward.4} parent=5 // pred_check_branch
      %492 = sbr.rel (%p489) target = $region88
    $region87: #{spectnt_forward.4} parent=5 // pred_region
      %s493 = ssub.s32 %s23, 1
      %s494 = smul.u32 2, %s28
      %p495 = scmp.lt.s32.totalorder %s494, 3
      %s496 = scalar_select %p495, %s494, 3
      %s497 = smul.addr %s496, 8
      %s498 = scalar_lea.vmem %s0, %s497
      %p499 = pneg %p49
      %p500 = pneg %p46
      %p501 = pneg %p70
      %p502 = pneg %p67
      %p503 = pneg %p91
      %p504 = pneg %p88
      %p505 = pneg %p112
      %p506 = pneg %p109
      %p507 = pneg %p133
      %p508 = pneg %p130
      %p509 = pneg %p154
      %p510 = pneg %p151
      %p511 = pneg %p175
      %p512 = pneg %p172
      %p513 = pneg %p196
      %p514 = pneg %p193
      %p515 = pneg %p217
      %p516 = pneg %p214
      %p517 = pneg %p238
      %p518 = pneg %p235
      %p519 = pneg %p259
      %p520 = pneg %p256
      %p521 = pneg %p280
      %p522 = pneg %p277
      %p523 = pneg %p301
      %p524 = pneg %p298
      %p525 = pneg %p322
      %p526 = pneg %p319
      %p527 = pneg %p343
      %p528 = pneg %p340
      %p529 = pneg %p364
      %p530 = pneg %p361
      %p531 = pneg %p385
      %p532 = pneg %p382
      %p533 = pneg %p411
      %p534 = pneg %p408
      %s535 = smul.u32 2, %s28
      %p536 = scmp.lt.s32.totalorder %s535, 3
      %s537 = scalar_select %p536, %s535, 3
      %s538 = smul.addr %s537, 8
      %s539 = scalar_lea.vmem %s17, %s538
      %s540 = smul.u32 2, %s28
      %p541 = scmp.lt.s32.totalorder %s540, 3
      %s542 = scalar_select %p541, %s540, 3
      %s543 = smul.addr %s542, 8
      %s544 = scalar_lea.vmem %s0, %s543
      %s545 = smul.u32 2, %s28
      %s546 = smul.u32 2, %s28
      %p547 = scmp.lt.s32.totalorder %s546, 3
      %s548 = scalar_select %p547, %s546, 3
      %s549 = smul.addr %s548, 8
      %s550 = scalar_lea.vmem %s17, %s549
      %s551 = smul.u32 2, %s28
      %v553 = vld [vmem:[%s544] sm:$0xff]
      %v554 = vld [vmem:[%s544 + $0x8] sm:$0xff]
      %v555 = vpack.c.bf16 %v554, %v553
      %v556 = vld [vmem:[%s1] sm:$0xf]
      %v557 = vld [vmem:[%s1 + $0x4] sm:$0x1]
      %v558 = vld [vmem:[%s2] sm:$0x1]
      %v560 = vlaneseq
      %v561 = vshrl.u32 %v560, 7
      %v562 = vsub.s32 0, %v561
      %v563 = vrot.slane %v558, %v562
      %v567 = vunpack.c.l.b16 %v556
      %v568 = vunpack.c.l.b16 %v557
      %v569 = vpack.c.b16 %v568, %v567
      %vm570 = vcmask 72704
      %v572 = vsel %vm570, %v555, 0
      %vm574 = vcmask 1043456
      %vm575 = vcmask 1044480
      %v576 = vsel %vm574, 4294967295, 65535
      %v577 = vsel %vm575, %v576, 0
      %v579 = vand.u32 %v569, %v577
      %581 = vmatprep.subr.bf16.mxu0 0
      %582 = vmatpush1.bf16.msra.mxu0 %v579
      %583 = vmatprep.subr.bf16.mxu0 0
      %584 = vmatpush1.bf16.msra.mxu0 0
      %585 = vmatprep.subr.bf16.mxu0 0
      %586 = vmatpush1.bf16.msra.mxu0 0
      %587 = vmatprep.subr.bf16.mxu0 0
      %588 = vmatpush1.bf16.msra.mxu0 0
      %589 = vmatprep.subr.bf16.mxu0 0
      %590 = vmatpush1.bf16.msra.mxu0 0
      %591 = vmatprep.subr.bf16.mxu0 0
      %592 = vmatpush1.bf16.msra.mxu0 0
      %593 = vmatprep.subr.bf16.mxu0 0
      %594 = vmatpush1.bf16.msra.mxu0 0
      %595 = vmatprep.subr.bf16.mxu0 0
      %596 = vmatpush1.bf16.msra.mxu0 0
      %597 = vmatprep.subr.bf16.mxu0 0
      %598 = vmatpush1.bf16.msra.mxu0 0
      %599 = vmatprep.subr.bf16.mxu0 0
      %600 = vmatpush1.bf16.msra.mxu0 0
      %601 = vmatprep.subr.bf16.mxu0 0
      %602 = vmatpush1.bf16.msra.mxu0 0
      %603 = vmatprep.subr.bf16.mxu0 0
      %604 = vmatpush1.bf16.msra.mxu0 0
      %605 = vmatprep.subr.bf16.mxu0 0
      %606 = vmatpush1.bf16.msra.mxu0 0
      %607 = vmatprep.subr.bf16.mxu0 0
      %608 = vmatpush1.bf16.msra.mxu0 0
      %609 = vmatprep.subr.bf16.mxu0 0
      %610 = vmatpush1.bf16.msra.mxu0 0
      %611 = vmatprep.subr.bf16.mxu0 0
      %612 = vmatpush1.bf16.msra.mxu0 0
      %613 = vmatprep.mubr.bf16.mxu0 0
      %614 = vmatmul.mubr.bf16.gmra.mrb[0].mxu0 %v572
      %v615 = vpop.f32.mrb[0].mxu0
      %v616 = vadd.f32 %v563, %v615
      %v617 = vpop.f32.mrb[0].mxu0
      %v618 = vpop.f32.mrb[0].mxu0
      %v619 = vadd.f32 %v563, %v618
      %v620 = vpop.f32.mrb[0].mxu0
      %621 = vdwg.mxu0
      %vm622 = vcmask 261120
      %v623 = vsel %vm622, %v616, 0.0
      %624 = vadd.xlane.f32.xlu0 %v623
      %v625 = vpop.xlane.xlu0 %624
      %v626 = vsel %vm622, %v619, 0.0
      %627 = vadd.xlane.f32.xlu0 %v626
      %v628 = vpop.xlane.xlu0 %627
      %v629 = vrcp.pop 32.0
      %v630 = vmul.f32 %v625, %v629
      %v631 = vmul.f32 %v628, %v629
      %v632 = vsub.f32 %v616, %v630
      %v633 = vsub.f32 %v619, %v631
      %v634 = vmul.f32 %v632, %v632
      %v635 = vmul.f32 %v633, %v633
      %v636 = vsel %vm622, %v634, 0.0
      %637 = vadd.xlane.f32.xlu0 %v636
      %v638 = vpop.xlane.xlu0 %637
      %v639 = vsel %vm622, %v635, 0.0
      %640 = vadd.xlane.f32.xlu0 %v639
      %v641 = vpop.xlane.xlu0 %640
      %v642 = vmul.f32 %v638, %v629
      %v643 = vmul.f32 %v641, %v629
      %v644 = vadd.f32 %v642, 1e-05
      %v645 = vadd.f32 %v643, 1e-05
      %v646 = vrsqrt.pop %v644
      %v647 = vrsqrt.pop %v645
      %v648 = vmul.f32 %v632, %v646
      %v649 = vmul.f32 %v633, %v647
      %v650 = vld [vmem:[%s3] sm:$0x1]
      %v652 = vlaneseq
      %v653 = vshrl.u32 %v652, 7
      %v654 = vsub.s32 0, %v653
      %v655 = vrot.slane %v650, %v654
      %v657 = vmul.f32 %v648, %v655
      %v658 = vmul.f32 %v649, %v655
      %v659 = vld [vmem:[%s4] sm:$0x1]
      %v661 = vlaneseq
      %v662 = vshrl.u32 %v661, 7
      %v663 = vsub.s32 0, %v662
      %v664 = vrot.slane %v659, %v663
      %v666 = vadd.f32 %v657, %v664
      %v667 = vadd.f32 %v658, %v664
      %v668 = vpack.c.bf16 %v667, %v666
      %v669 = vld [vmem:[%s5] sm:$0xf]
      %v670 = vld [vmem:[%s5 + $0x4] sm:$0xf]
      %v671 = vld [vmem:[%s5 + $0x8] sm:$0xf]
      %v672 = vld [vmem:[%s5 + $0xc] sm:$0xf]
      %v673 = vld [vmem:[%s6] sm:$0x1]
      %v675 = vlaneseq
      %v676 = vshrl.u32 %v675, 7
      %v677 = vsub.s32 0, %v676
      %v678 = vrot.slane %v673, %v677
      %v684 = vunpack.c.l.b16 %v669
      %v685 = vunpack.c.l.b16 %v670
      %v686 = vunpack.c.l.b16 %v671
      %v687 = vunpack.c.l.b16 %v672
      %v688 = vpack.c.b16 %v685, %v684
      %v689 = vpack.c.b16 %v687, %v686
      %v693 = vsel %vm622, %v668, 0
      %695 = vmatprep.subr.bf16.mxu0 0
      %696 = vmatpush1.bf16.msra.mxu0 %v688
      %697 = vmatprep.subr.bf16.mxu0 0
      %698 = vmatpush1.bf16.msra.mxu0 %v689
      %699 = vmatprep.subr.bf16.mxu0 0
      %700 = vmatpush1.bf16.msra.mxu0 0
      %701 = vmatprep.subr.bf16.mxu0 0
      %702 = vmatpush1.bf16.msra.mxu0 0
      %703 = vmatprep.subr.bf16.mxu0 0
      %704 = vmatpush1.bf16.msra.mxu0 0
      %705 = vmatprep.subr.bf16.mxu0 0
      %706 = vmatpush1.bf16.msra.mxu0 0
      %707 = vmatprep.subr.bf16.mxu0 0
      %708 = vmatpush1.bf16.msra.mxu0 0
      %709 = vmatprep.subr.bf16.mxu0 0
      %710 = vmatpush1.bf16.msra.mxu0 0
      %711 = vmatprep.subr.bf16.mxu0 0
      %712 = vmatpush1.bf16.msra.mxu0 0
      %713 = vmatprep.subr.bf16.mxu0 0
      %714 = vmatpush1.bf16.msra.mxu0 0
      %715 = vmatprep.subr.bf16.mxu0 0
      %716 = vmatpush1.bf16.msra.mxu0 0
      %717 = vmatprep.subr.bf16.mxu0 0
      %718 = vmatpush1.bf16.msra.mxu0 0
      %719 = vmatprep.subr.bf16.mxu0 0
      %720 = vmatpush1.bf16.msra.mxu0 0
      %721 = vmatprep.subr.bf16.mxu0 0
      %722 = vmatpush1.bf16.msra.mxu0 0
      %723 = vmatprep.subr.bf16.mxu0 0
      %724 = vmatpush1.bf16.msra.mxu0 0
      %725 = vmatprep.subr.bf16.mxu0 0
      %726 = vmatpush1.bf16.msra.mxu0 0
      %727 = vmatprep.mubr.bf16.mxu0 0
      %728 = vmatmul.mubr.bf16.gmra.mrb[0].mxu0 %v693
      %v729 = vpop.f32.mrb[0].mxu0
      %v730 = vadd.f32 %v678, %v729
      %v731 = vpop.f32.mrb[0].mxu0
      %v732 = vpop.f32.mrb[0].mxu0
      %v733 = vadd.f32 %v678, %v732
      %v734 = vpop.f32.mrb[0].mxu0
      %735 = vdwg.mxu0
      %v738 = vcombine.high %v730, %v730
      %v739 = vcombine.high %v733, %v733
      %v742 = vpack.c.bf16 %v730, %v730
      %v743 = vpack.c.bf16 %v738, %v738
      %v744 = vpack.c.bf16 %v733, %v733
      %v745 = vpack.c.bf16 %v739, %v739
      %747 = vrot.lane.b32.xlu0 %v742, 96
      %v748 = vpop.permute.xlu0 %747
      %vm749 = vcmask 64512
      %v751 = vsel %vm749, %v742, 0
      %v754 = vsel %vm749, %v748, 0
      %756 = vmatprep.subr.bf16.mxu0 0
      %757 = vmatpush1.bf16.xpose.msra.mxu0 %v754
      %758 = vmatprep.subr.bf16.mxu0 0
      %759 = vmatpush1.bf16.xpose.msra.mxu0 0
      %760 = vmatprep.subr.bf16.mxu0 0
      %761 = vmatpush1.bf16.xpose.msra.mxu0 0
      %762 = vmatprep.subr.bf16.mxu0 0
      %763 = vmatpush1.bf16.xpose.msra.mxu0 0
      %764 = vmatprep.subr.bf16.mxu0 0
      %765 = vmatpush1.bf16.xpose.msra.mxu0 0
      %766 = vmatprep.subr.bf16.mxu0 0
      %767 = vmatpush1.bf16.xpose.msra.mxu0 0
      %768 = vmatprep.subr.bf16.mxu0 0
      %769 = vmatpush1.bf16.xpose.msra.mxu0 0
      %770 = vmatprep.subr.bf16.mxu0 0
      %771 = vmatpush1.bf16.xpose.msra.mxu0 0
      %772 = vmatprep.subr.bf16.mxu0 0
      %773 = vmatpush1.bf16.xpose.msra.mxu0 0
      %774 = vmatprep.subr.bf16.mxu0 0
      %775 = vmatpush1.bf16.xpose.msra.mxu0 0
      %776 = vmatprep.subr.bf16.mxu0 0
      %777 = vmatpush1.bf16.xpose.msra.mxu0 0
      %778 = vmatprep.subr.bf16.mxu0 0
      %779 = vmatpush1.bf16.xpose.msra.mxu0 0
      %780 = vmatprep.subr.bf16.mxu0 0
      %781 = vmatpush1.bf16.xpose.msra.mxu0 0
      %782 = vmatprep.subr.bf16.mxu0 0
      %783 = vmatpush1.bf16.xpose.msra.mxu0 0
      %784 = vmatprep.subr.bf16.mxu0 0
      %785 = vmatpush1.bf16.xpose.msra.mxu0 0
      %786 = vmatprep.subr.bf16.mxu0 0
      %787 = vmatpush1.bf16.xpose.msra.mxu0 0
      %788 = vmatprep.mubr.bf16.mxu0 0
      %789 = vmatmul.mubr.bf16.gmra.mrb[0].mxu0 %v751
      %v790 = vpop.f32.mrb[0].mxu0
      %v791 = vadd.f32 0.0, %v790
      %v792 = vpop.f32.mrb[0].mxu0
      %v793 = vpop.f32.mrb[0].mxu0
      %v794 = vpop.f32.mrb[0].mxu0
      %795 = vdwg.mxu0
      %797 = vrot.lane.b32.xlu0 %v743, 96
      %v798 = vpop.permute.xlu0 %797
      %v800 = vsel %vm749, %v743, 0
      %v803 = vsel %vm749, %v798, 0
      %805 = vmatprep.subr.bf16.mxu0 0
      %806 = vmatpush1.bf16.xpose.msra.mxu0 %v803
      %807 = vmatprep.subr.bf16.mxu0 0
      %808 = vmatpush1.bf16.xpose.msra.mxu0 0
      %809 = vmatprep.subr.bf16.mxu0 0
      %810 = vmatpush1.bf16.xpose.msra.mxu0 0
      %811 = vmatprep.subr.bf16.mxu0 0
      %812 = vmatpush1.bf16.xpose.msra.mxu0 0
      %813 = vmatprep.subr.bf16.mxu0 0
      %814 = vmatpush1.bf16.xpose.msra.mxu0 0
      %815 = vmatprep.subr.bf16.mxu0 0
      %816 = vmatpush1.bf16.xpose.msra.mxu0 0
      %817 = vmatprep.subr.bf16.mxu0 0
      %818 = vmatpush1.bf16.xpose.msra.mxu0 0
      %819 = vmatprep.subr.bf16.mxu0 0
      %820 = vmatpush1.bf16.xpose.msra.mxu0 0
      %821 = vmatprep.subr.bf16.mxu0 0
      %822 = vmatpush1.bf16.xpose.msra.mxu0 0
      %823 = vmatprep.subr.bf16.mxu0 0
      %824 = vmatpush1.bf16.xpose.msra.mxu0 0
      %825 = vmatprep.subr.bf16.mxu0 0
      %826 = vmatpush1.bf16.xpose.msra.mxu0 0
      %827 = vmatprep.subr.bf16.mxu0 0
      %828 = vmatpush1.bf16.xpose.msra.mxu0 0
      %829 = vmatprep.subr.bf16.mxu0 0
      %830 = vmatpush1.bf16.xpose.msra.mxu0 0
      %831 = vmatprep.subr.bf16.mxu0 0
      %832 = vmatpush1.bf16.xpose.msra.mxu0 0
      %833 = vmatprep.subr.bf16.mxu0 0
      %834 = vmatpush1.bf16.xpose.msra.mxu0 0
      %835 = vmatprep.subr.bf16.mxu0 0
      %836 = vmatpush1.bf16.xpose.msra.mxu0 0
      %837 = vmatprep.mubr.bf16.mxu0 0
      %838 = vmatmul.mubr.bf16.gmra.mrb[0].mxu0 %v800
      %v839 = vpop.f32.mrb[0].mxu0
      %v840 = vadd.f32 0.0, %v839
      %v841 = vpop.f32.mrb[0].mxu0
      %v842 = vpop.f32.mrb[0].mxu0
      %v843 = vpop.f32.mrb[0].mxu0
      %844 = vdwg.mxu0
      %846 = vrot.lane.b32.xlu0 %v744, 96
      %v847 = vpop.permute.xlu0 %846
      %v849 = vsel %vm749, %v744, 0
      %v852 = vsel %vm749, %v847, 0
      %854 = vmatprep.subr.bf16.mxu0 0
      %855 = vmatpush1.bf16.xpose.msra.mxu0 %v852
      %856 = vmatprep.subr.bf16.mxu0 0
      %857 = vmatpush1.bf16.xpose.msra.mxu0 0
      %858 = vmatprep.subr.bf16.mxu0 0
      %859 = vmatpush1.bf16.xpose.msra.mxu0 0
      %860 = vmatprep.subr.bf16.mxu0 0
      %861 = vmatpush1.bf16.xpose.msra.mxu0 0
      %862 = vmatprep.subr.bf16.mxu0 0
      %863 = vmatpush1.bf16.xpose.msra.mxu0 0
      %864 = vmatprep.subr.bf16.mxu0 0
      %865 = vmatpush1.bf16.xpose.msra.mxu0 0
      %866 = vmatprep.subr.bf16.mxu0 0
      %867 = vmatpush1.bf16.xpose.msra.mxu0 0
      %868 = vmatprep.subr.bf16.mxu0 0
      %869 = vmatpush1.bf16.xpose.msra.mxu0 0
      %870 = vmatprep.subr.bf16.mxu0 0
      %871 = vmatpush1.bf16.xpose.msra.mxu0 0
      %872 = vmatprep.subr.bf16.mxu0 0
      %873 = vmatpush1.bf16.xpose.msra.mxu0 0
      %874 = vmatprep.subr.bf16.mxu0 0
      %875 = vmatpush1.bf16.xpose.msra.mxu0 0
      %876 = vmatprep.subr.bf16.mxu0 0
      %877 = vmatpush1.bf16.xpose.msra.mxu0 0
      %878 = vmatprep.subr.bf16.mxu0 0
      %879 = vmatpush1.bf16.xpose.msra.mxu0 0
      %880 = vmatprep.subr.bf16.mxu0 0
      %881 = vmatpush1.bf16.xpose.msra.mxu0 0
      %882 = vmatprep.subr.bf16.mxu0 0
      %883 = vmatpush1.bf16.xpose.msra.mxu0 0
      %884 = vmatprep.subr.bf16.mxu0 0
      %885 = vmatpush1.bf16.xpose.msra.mxu0 0
      %886 = vmatprep.mubr.bf16.mxu0 0
      %887 = vmatmul.mubr.bf16.gmra.mrb[0].mxu0 %v849
      %v888 = vpop.f32.mrb[0].mxu0
      %v889 = vadd.f32 0.0, %v888
      %v890 = vpop.f32.mrb[0].mxu0
      %v891 = vpop.f32.mrb[0].mxu0
      %v892 = vpop.f32.mrb[0].mxu0
      %893 = vdwg.mxu0
      %895 = vrot.lane.b32.xlu0 %v745, 96
      %v896 = vpop.permute.xlu0 %895
      %v898 = vsel %vm749, %v745, 0
      %v901 = vsel %vm749, %v896, 0
      %903 = vmatprep.subr.bf16.mxu0 0
      %904 = vmatpush1.bf16.xpose.msra.mxu0 %v901
      %905 = vmatprep.subr.bf16.mxu0 0
      %906 = vmatpush1.bf16.xpose.msra.mxu0 0
      %907 = vmatprep.subr.bf16.mxu0 0
      %908 = vmatpush1.bf16.xpose.msra.mxu0 0
      %909 = vmatprep.subr.bf16.mxu0 0
      %910 = vmatpush1.bf16.xpose.msra.mxu0 0
      %911 = vmatprep.subr.bf16.mxu0 0
      %912 = vmatpush1.bf16.xpose.msra.mxu0 0
      %913 = vmatprep.subr.bf16.mxu0 0
      %914 = vmatpush1.bf16.xpose.msra.mxu0 0
      %915 = vmatprep.subr.bf16.mxu0 0
      %916 = vmatpush1.bf16.xpose.msra.mxu0 0
      %917 = vmatprep.subr.bf16.mxu0 0
      %918 = vmatpush1.bf16.xpose.msra.mxu0 0
      %919 = vmatprep.subr.bf16.mxu0 0
      %920 = vmatpush1.bf16.xpose.msra.mxu0 0
      %921 = vmatprep.subr.bf16.mxu0 0
      %922 = vmatpush1.bf16.xpose.msra.mxu0 0
      %923 = vmatprep.subr.bf16.mxu0 0
      %924 = vmatpush1.bf16.xpose.msra.mxu0 0
      %925 = vmatprep.subr.bf16.mxu0 0
      %926 = vmatpush1.bf16.xpose.msra.mxu0 0
      %927 = vmatprep.subr.bf16.mxu0 0
      %928 = vmatpush1.bf16.xpose.msra.mxu0 0
      %929 = vmatprep.subr.bf16.mxu0 0
      %930 = vmatpush1.bf16.xpose.msra.mxu0 0
      %931 = vmatprep.subr.bf16.mxu0 0
      %932 = vmatpush1.bf16.xpose.msra.mxu0 0
      %933 = vmatprep.subr.bf16.mxu0 0
      %934 = vmatpush1.bf16.xpose.msra.mxu0 0
      %935 = vmatprep.mubr.bf16.mxu0 0
      %936 = vmatmul.mubr.bf16.gmra.mrb[0].mxu0 %v898
      %v937 = vpop.f32.mrb[0].mxu0
      %v938 = vadd.f32 0.0, %v937
      %v939 = vpop.f32.mrb[0].mxu0
      %v940 = vpop.f32.mrb[0].mxu0
      %v941 = vpop.f32.mrb[0].mxu0
      %942 = vdwg.mxu0
      %v943 = vmul.f32 %v791, 0.35355338
      %v944 = vmul.f32 %v840, 0.35355338
      %v945 = vmul.f32 %v889, 0.35355338
      %v946 = vmul.f32 %v938, 0.35355338
      %vm947 = vcmask 27648
      %v948 = vsel %vm947, %v943, -inf
      %949 = vmax.xlane.f32.xlu0 %v948
      %v950 = vpop.xlane.xlu0 %949
      %v951 = vsel %vm947, %v944, -inf
      %952 = vmax.xlane.f32.xlu0 %v951
      %v953 = vpop.xlane.xlu0 %952
      %v954 = vsel %vm947, %v945, -inf
      %955 = vmax.xlane.f32.xlu0 %v954
      %v956 = vpop.xlane.xlu0 %955
      %v957 = vsel %vm947, %v946, -inf
      %958 = vmax.xlane.f32.xlu0 %v957
      %v959 = vpop.xlane.xlu0 %958
      %v960 = vsub.f32 %v943, %v950
      %v961 = vsub.f32 %v944, %v953
      %v962 = vsub.f32 %v945, %v956
      %v963 = vsub.f32 %v946, %v959
      %v964 = vmul.f32 %v960, 1.442695
      %v965 = vpow.pop %v964
      %v966 = vmul.f32 %v961, 1.442695
      %v967 = vpow.pop %v966
      %v968 = vmul.f32 %v962, 1.442695
      %v969 = vpow.pop %v968
      %v970 = vmul.f32 %v963, 1.442695
      %v971 = vpow.pop %v970
      %v972 = vsel %vm947, %v965, 0.0
      %973 = vadd.xlane.f32.xlu0 %v972
      %v974 = vpop.xlane.xlu0 %973
      %v975 = vsel %vm947, %v967, 0.0
      %976 = vadd.xlane.f32.xlu0 %v975
      %v977 = vpop.xlane.xlu0 %976
      %v978 = vsel %vm947, %v969, 0.0
      %979 = vadd.xlane.f32.xlu0 %v978
      %v980 = vpop.xlane.xlu0 %979
      %v981 = vsel %vm947, %v971, 0.0
      %982 = vadd.xlane.f32.xlu0 %v981
      %v983 = vpop.xlane.xlu0 %982
      %v984 = vrcp.pop %v974
      %v985 = vrcp.pop %v977
      %v986 = vrcp.pop %v980
      %v987 = vrcp.pop %v983
      %v988 = vmul.f32 %v965, %v984
      %v989 = vmul.f32 %v967, %v985
      %v990 = vmul.f32 %v969, %v986
      %v991 = vmul.f32 %v971, %v987
      %v992 = vpack.c.bf16 %v988, %v988
      %v993 = vpack.c.bf16 %v989, %v989
      %v994 = vpack.c.bf16 %v990, %v990
      %v995 = vpack.c.bf16 %v991, %v991
      %996 = vrot.lane.b32.xlu0 %v742, 64
      %v997 = vpop.permute.xlu0 %996
      %vm998 = vcmask 31744
      %v1000 = vsel %vm998, %v992, 0
      %vm1002 = vcmask 1041408
      %v1004 = vsel %vm1002, %v997, 0
      %1006 = vmatprep.subr.bf16.mxu0 0
      %1007 = vmatpush1.bf16.msra.mxu0 %v1004
      %1008 = vmatprep.subr.bf16.mxu0 0
      %1009 = vmatpush1.bf16.msra.mxu0 0
      %1010 = vmatprep.subr.bf16.mxu0 0
      %1011 = vmatpush1.bf16.msra.mxu0 0
      %1012 = vmatprep.subr.bf16.mxu0 0
      %1013 = vmatpush1.bf16.msra.mxu0 0
      %1014 = vmatprep.subr.bf16.mxu0 0
      %1015 = vmatpush1.bf16.msra.mxu0 0
      %1016 = vmatprep.subr.bf16.mxu0 0
      %1017 = vmatpush1.bf16.msra.mxu0 0
      %1018 = vmatprep.subr.bf16.mxu0 0
      %1019 = vmatpush1.bf16.msra.mxu0 0
      %1020 = vmatprep.subr.bf16.mxu0 0
      %1021 = vmatpush1.bf16.msra.mxu0 0
      %1022 = vmatprep.subr.bf16.mxu0 0
      %1023 = vmatpush1.bf16.msra.mxu0 0
      %1024 = vmatprep.subr.bf16.mxu0 0
      %1025 = vmatpush1.bf16.msra.mxu0 0
      %1026 = vmatprep.subr.bf16.mxu0 0
      %1027 = vmatpush1.bf16.msra.mxu0 0
      %1028 = vmatprep.subr.bf16.mxu0 0
      %1029 = vmatpush1.bf16.msra.mxu0 0
      %1030 = vmatprep.subr.bf16.mxu0 0
      %1031 = vmatpush1.bf16.msra.mxu0 0
      %1032 = vmatprep.subr.bf16.mxu0 0
      %1033 = vmatpush1.bf16.msra.mxu0 0
      %1034 = vmatprep.subr.bf16.mxu0 0
      %1035 = vmatpush1.bf16.msra.mxu0 0
      %1036 = vmatprep.subr.bf16.mxu0 0
      %1037 = vmatpush1.bf16.msra.mxu0 0
      %1038 = vmatprep.mubr.bf16.mxu0 0
      %1039 = vmatmul.mubr.bf16.gmra.mrb[0].mxu0 %v1000
      %v1040 = vpop.f32.mrb[0].mxu0
      %v1041 = vadd.f32 0.0, %v1040
      %v1042 = vpop.f32.mrb[0].mxu0
      %v1043 = vpop.f32.mrb[0].mxu0
      %v1044 = vpop.f32.mrb[0].mxu0
      %1045 = vdwg.mxu0
      %1046 = vrot.lane.b32.xlu0 %v743, 64
      %v1047 = vpop.permute.xlu0 %1046
      %v1049 = vsel %vm998, %v993, 0
      %v1052 = vsel %vm1002, %v1047, 0
      %1054 = vmatprep.subr.bf16.mxu0 0
      %1055 = vmatpush1.bf16.msra.mxu0 %v1052
      %1056 = vmatprep.subr.bf16.mxu0 0
      %1057 = vmatpush1.bf16.msra.mxu0 0
      %1058 = vmatprep.subr.bf16.mxu0 0
      %1059 = vmatpush1.bf16.msra.mxu0 0
      %1060 = vmatprep.subr.bf16.mxu0 0
      %1061 = vmatpush1.bf16.msra.mxu0 0
      %1062 = vmatprep.subr.bf16.mxu0 0
      %1063 = vmatpush1.bf16.msra.mxu0 0
      %1064 = vmatprep.subr.bf16.mxu0 0
      %1065 = vmatpush1.bf16.msra.mxu0 0
      %1066 = vmatprep.subr.bf16.mxu0 0
      %1067 = vmatpush1.bf16.msra.mxu0 0
      %1068 = vmatprep.subr.bf16.mxu0 0
      %1069 = vmatpush1.bf16.msra.mxu0 0
      %1070 = vmatprep.subr.bf16.mxu0 0
      %1071 = vmatpush1.bf16.msra.mxu0 0
      %1072 = vmatprep.subr.bf16.mxu0 0
      %1073 = vmatpush1.bf16.msra.mxu0 0
      %1074 = vmatprep.subr.bf16.mxu0 0
      %1075 = vmatpush1.bf16.msra.mxu0 0
      %1076 = vmatprep.subr.bf16.mxu0 0
      %1077 = vmatpush1.bf16.msra.mxu0 0
      %1078 = vmatprep.subr.bf16.mxu0 0
      %1079 = vmatpush1.bf16.msra.mxu0 0
      %1080 = vmatprep.subr.bf16.mxu0 0
      %1081 = vmatpush1.bf16.msra.mxu0 0
      %1082 = vmatprep.subr.bf16.mxu0 0
      %1083 = vmatpush1.bf16.msra.mxu0 0
      %1084 = vmatprep.subr.bf16.mxu0 0
      %1085 = vmatpush1.bf16.msra.mxu0 0
      %1086 = vmatprep.mubr.bf16.mxu0 0
      %1087 = vmatmul.mubr.bf16.gmra.mrb[0].mxu0 %v1049
      %v1088 = vpop.f32.mrb[0].mxu0
      %v1089 = vadd.f32 0.0, %v1088
      %v1090 = vpop.f32.mrb[0].mxu0
      %v1091 = vpop.f32.mrb[0].mxu0
      %v1092 = vpop.f32.mrb[0].mxu0
      %1093 = vdwg.mxu0
      %1094 = vrot.lane.b32.xlu0 %v744, 64
      %v1095 = vpop.permute.xlu0 %1094
      %v1097 = vsel %vm998, %v994, 0
      %v1100 = vsel %vm1002, %v1095, 0
      %1102 = vmatprep.subr.bf16.mxu0 0
      %1103 = vmatpush1.bf16.msra.mxu0 %v1100
      %1104 = vmatprep.subr.bf16.mxu0 0
      %1105 = vmatpush1.bf16.msra.mxu0 0
      %1106 = vmatprep.subr.bf16.mxu0 0
      %1107 = vmatpush1.bf16.msra.mxu0 0
      %1108 = vmatprep.subr.bf16.mxu0 0
      %1109 = vmatpush1.bf16.msra.mxu0 0
      %1110 = vmatprep.subr.bf16.mxu0 0
      %1111 = vmatpush1.bf16.msra.mxu0 0
      %1112 = vmatprep.subr.bf16.mxu0 0
      %1113 = vmatpush1.bf16.msra.mxu0 0
      %1114 = vmatprep.subr.bf16.mxu0 0
      %1115 = vmatpush1.bf16.msra.mxu0 0
      %1116 = vmatprep.subr.bf16.mxu0 0
      %1117 = vmatpush1.bf16.msra.mxu0 0
      %1118 = vmatprep.subr.bf16.mxu0 0
      %1119 = vmatpush1.bf16.msra.mxu0 0
      %1120 = vmatprep.subr.bf16.mxu0 0
      %1121 = vmatpush1.bf16.msra.mxu0 0
      %1122 = vmatprep.subr.bf16.mxu0 0
      %1123 = vmatpush1.bf16.msra.mxu0 0
      %1124 = vmatprep.subr.bf16.mxu0 0
      %1125 = vmatpush1.bf16.msra.mxu0 0
      %1126 = vmatprep.subr.bf16.mxu0 0
      %1127 = vmatpush1.bf16.msra.mxu0 0
      %1128 = vmatprep.subr.bf16.mxu0 0
      %1129 = vmatpush1.bf16.msra.mxu0 0
      %1130 = vmatprep.subr.bf16.mxu0 0
      %1131 = vmatpush1.bf16.msra.mxu0 0
      %1132 = vmatprep.subr.bf16.mxu0 0
      %1133 = vmatpush1.bf16.msra.mxu0 0
      %1134 = vmatprep.mubr.bf16.mxu0 0
      %1135 = vmatmul.mubr.bf16.gmra.mrb[0].mxu0 %v1097
      %v1136 = vpop.f32.mrb[0].mxu0
      %v1137 = vadd.f32 0.0, %v1136
      %v1138 = vpop.f32.mrb[0].mxu0
      %v1139 = vpop.f32.mrb[0].mxu0
      %v1140 = vpop.f32.mrb[0].mxu0
      %1141 = vdwg.mxu0
      %1142 = vrot.lane.b32.xlu0 %v745, 64
      %v1143 = vpop.permute.xlu0 %1142
      %v1145 = vsel %vm998, %v995, 0
      %v1148 = vsel %vm1002, %v1143, 0
      %1150 = vmatprep.subr.bf16.mxu0 0
      %1151 = vmatpush1.bf16.msra.mxu0 %v1148
      %1152 = vmatprep.subr.bf16.mxu0 0
      %1153 = vmatpush1.bf16.msra.mxu0 0
      %1154 = vmatprep.subr.bf16.mxu0 0
      %1155 = vmatpush1.bf16.msra.mxu0 0
      %1156 = vmatprep.subr.bf16.mxu0 0
      %1157 = vmatpush1.bf16.msra.mxu0 0
      %1158 = vmatprep.subr.bf16.mxu0 0
      %1159 = vmatpush1.bf16.msra.mxu0 0
      %1160 = vmatprep.subr.bf16.mxu0 0
      %1161 = vmatpush1.bf16.msra.mxu0 0
      %1162 = vmatprep.subr.bf16.mxu0 0
      %1163 = vmatpush1.bf16.msra.mxu0 0
      %1164 = vmatprep.subr.bf16.mxu0 0
      %1165 = vmatpush1.bf16.msra.mxu0 0
      %1166 = vmatprep.subr.bf16.mxu0 0
      %1167 = vmatpush1.bf16.msra.mxu0 0
      %1168 = vmatprep.subr.bf16.mxu0 0
      %1169 = vmatpush1.bf16.msra.mxu0 0
      %1170 = vmatprep.subr.bf16.mxu0 0
      %1171 = vmatpush1.bf16.msra.mxu0 0
      %1172 = vmatprep.subr.bf16.mxu0 0
      %1173 = vmatpush1.bf16.msra.mxu0 0
      %1174 = vmatprep.subr.bf16.mxu0 0
      %1175 = vmatpush1.bf16.msra.mxu0 0
      %1176 = vmatprep.subr.bf16.mxu0 0
      %1177 = vmatpush1.bf16.msra.mxu0 0
      %1178 = vmatprep.subr.bf16.mxu0 0
      %1179 = vmatpush1.bf16.msra.mxu0 0
      %1180 = vmatprep.subr.bf16.mxu0 0
      %1181 = vmatpush1.bf16.msra.mxu0 0
      %1182 = vmatprep.mubr.bf16.mxu0 0
      %1183 = vmatmul.mubr.bf16.gmra.mrb[0].mxu0 %v1145
      %v1184 = vpop.f32.mrb[0].mxu0
      %v1185 = vadd.f32 0.0, %v1184
      %v1186 = vpop.f32.mrb[0].mxu0
      %v1187 = vpop.f32.mrb[0].mxu0
      %v1188 = vpop.f32.mrb[0].mxu0
      %1189 = vdwg.mxu0
      %1190 = vrot.lane.b32.xlu0 %v742, 120
      %v1191 = vpop.permute.xlu0 %1190
      %1192 = vrot.lane.b32.xlu0 %v742, 88
      %v1193 = vpop.permute.xlu0 %1192
      %v1195 = vsel %vm749, %v1191, 0
      %v1198 = vsel %vm749, %v1193, 0
      %1200 = vmatprep.subr.bf16.mxu0 0
      %1201 = vmatpush1.bf16.xpose.msra.mxu0 %v1198
      %1202 = vmatprep.subr.bf16.mxu0 0
      %1203 = vmatpush1.bf16.xpose.msra.mxu0 0
      %1204 = vmatprep.subr.bf16.mxu0 0
      %1205 = vmatpush1.bf16.xpose.msra.mxu0 0
      %1206 = vmatprep.subr.bf16.mxu0 0
      %1207 = vmatpush1.bf16.xpose.msra.mxu0 0
      %1208 = vmatprep.subr.bf16.mxu0 0
      %1209 = vmatpush1.bf16.xpose.msra.mxu0 0
      %1210 = vmatprep.subr.bf16.mxu0 0
      %1211 = vmatpush1.bf16.xpose.msra.mxu0 0
      %1212 = vmatprep.subr.bf16.mxu0 0
      %1213 = vmatpush1.bf16.xpose.msra.mxu0 0
      %1214 = vmatprep.subr.bf16.mxu0 0
      %1215 = vmatpush1.bf16.xpose.msra.mxu0 0
      %1216 = vmatprep.subr.bf16.mxu0 0
      %1217 = vmatpush1.bf16.xpose.msra.mxu0 0
      %1218 = vmatprep.subr.bf16.mxu0 0
      %1219 = vmatpush1.bf16.xpose.msra.mxu0 0
      %1220 = vmatprep.subr.bf16.mxu0 0
      %1221 = vmatpush1.bf16.xpose.msra.mxu0 0
      %1222 = vmatprep.subr.bf16.mxu0 0
      %1223 = vmatpush1.bf16.xpose.msra.mxu0 0
      %1224 = vmatprep.subr.bf16.mxu0 0
      %1225 = vmatpush1.bf16.xpose.msra.mxu0 0
      %1226 = vmatprep.subr.bf16.mxu0 0
      %1227 = vmatpush1.bf16.xpose.msra.mxu0 0
      %1228 = vmatprep.subr.bf16.mxu0 0
      %1229 = vmatpush1.bf16.xpose.msra.mxu0 0
      %1230 = vmatprep.subr.bf16.mxu0 0
      %1231 = vmatpush1.bf16.xpose.msra.mxu0 0
      %1232 = vmatprep.mubr.bf16.mxu0 0
      %1233 = vmatmul.mubr.bf16.gmra.mrb[0].mxu0 %v1195
      %v1234 = vpop.f32.mrb[0].mxu0
      %v1235 = vadd.f32 0.0, %v1234
      %v1236 = vpop.f32.mrb[0].mxu0
      %v1237 = vpop.f32.mrb[0].mxu0
      %v1238 = vpop.f32.mrb[0].mxu0
      %1239 = vdwg.mxu0
      %1240 = vrot.lane.b32.xlu0 %v743, 120
      %v1241 = vpop.permute.xlu0 %1240
      %1242 = vrot.lane.b32.xlu0 %v743, 88
      %v1243 = vpop.permute.xlu0 %1242
      %v1245 = vsel %vm749, %v1241, 0
      %v1248 = vsel %vm749, %v1243, 0
      %1250 = vmatprep.subr.bf16.mxu0 0
      %1251 = vmatpush1.bf16.xpose.msra.mxu0 %v1248
      %1252 = vmatprep.subr.bf16.mxu0 0
      %1253 = vmatpush1.bf16.xpose.msra.mxu0 0
      %1254 = vmatprep.subr.bf16.mxu0 0
      %1255 = vmatpush1.bf16.xpose.msra.mxu0 0
      %1256 = vmatprep.subr.bf16.mxu0 0
      %1257 = vmatpush1.bf16.xpose.msra.mxu0 0
      %1258 = vmatprep.subr.bf16.mxu0 0
      %1259 = vmatpush1.bf16.xpose.msra.mxu0 0
      %1260 = vmatprep.subr.bf16.mxu0 0
      %1261 = vmatpush1.bf16.xpose.msra.mxu0 0
      %1262 = vmatprep.subr.bf16.mxu0 0
      %1263 = vmatpush1.bf16.xpose.msra.mxu0 0
      %1264 = vmatprep.subr.bf16.mxu0 0
      %1265 = vmatpush1.bf16.xpose.msra.mxu0 0
      %1266 = vmatprep.subr.bf16.mxu0 0
      %1267 = vmatpush1.bf16.xpose.msra.mxu0 0
      %1268 = vmatprep.subr.bf16.mxu0 0
      %1269 = vmatpush1.bf16.xpose.msra.mxu0 0
      %1270 = vmatprep.subr.bf16.mxu0 0
      %1271 = vmatpush1.bf16.xpose.msra.mxu0 0
      %1272 = vmatprep.subr.bf16.mxu0 0
      %1273 = vmatpush1.bf16.xpose.msra.mxu0 0
      %1274 = vmatprep.subr.bf16.mxu0 0
      %1275 = vmatpush1.bf16.xpose.msra.mxu0 0
      %1276 = vmatprep.subr.bf16.mxu0 0
      %1277 = vmatpush1.bf16.xpose.msra.mxu0 0
      %1278 = vmatprep.subr.bf16.mxu0 0
      %1279 = vmatpush1.bf16.xpose.msra.mxu0 0
      %1280 = vmatprep.subr.bf16.mxu0 0
      %1281 = vmatpush1.bf16.xpose.msra.mxu0 0
      %1282 = vmatprep.mubr.bf16.mxu0 0
      %1283 = vmatmul.mubr.bf16.gmra.mrb[0].mxu0 %v1245
      %v1284 = vpop.f32.mrb[0].mxu0
      %v1285 = vadd.f32 0.0, %v1284
      %v1286 = vpop.f32.mrb[0].mxu0
      %v1287 = vpop.f32.mrb[0].mxu0
      %v1288 = vpop.f32.mrb[0].mxu0
      %1289 = vdwg.mxu0
      %1290 = vrot.lane.b32.xlu0 %v744, 120
      %v1291 = vpop.permute.xlu0 %1290
      %1292 = vrot.lane.b32.xlu0 %v744, 88
      %v1293 = vpop.permute.xlu0 %1292
      %v1295 = vsel %vm749, %v1291, 0
      %v1298 = vsel %vm749, %v1293, 0
      %1300 = vmatprep.subr.bf16.mxu0 0
      %1301 = vmatpush1.bf16.xpose.msra.mxu0 %v1298
      %1302 = vmatprep.subr.bf16.mxu0 0
      %1303 = vmatpush1.bf16.xpose.msra.mxu0 0
      %1304 = vmatprep.subr.bf16.mxu0 0
      %1305 = vmatpush1.bf16.xpose.msra.mxu0 0
      %1306 = vmatprep.subr.bf16.mxu0 0
      %1307 = vmatpush1.bf16.xpose.msra.mxu0 0
      %1308 = vmatprep.subr.bf16.mxu0 0
      %1309 = vmatpush1.bf16.xpose.msra.mxu0 0
      %1310 = vmatprep.subr.bf16.mxu0 0
      %1311 = vmatpush1.bf16.xpose.msra.mxu0 0
      %1312 = vmatprep.subr.bf16.mxu0 0
      %1313 = vmatpush1.bf16.xpose.msra.mxu0 0
      %1314 = vmatprep.subr.bf16.mxu0 0
      %1315 = vmatpush1.bf16.xpose.msra.mxu0 0
      %1316 = vmatprep.subr.bf16.mxu0 0
      %1317 = vmatpush1.bf16.xpose.msra.mxu0 0
      %1318 = vmatprep.subr.bf16.mxu0 0
      %1319 = vmatpush1.bf16.xpose.msra.mxu0 0
      %1320 = vmatprep.subr.bf16.mxu0 0
      %1321 = vmatpush1.bf16.xpose.msra.mxu0 0
      %1322 = vmatprep.subr.bf16.mxu0 0
      %1323 = vmatpush1.bf16.xpose.msra.mxu0 0
      %1324 = vmatprep.subr.bf16.mxu0 0
      %1325 = vmatpush1.bf16.xpose.msra.mxu0 0
      %1326 = vmatprep.subr.bf16.mxu0 0
      %1327 = vmatpush1.bf16.xpose.msra.mxu0 0
      %1328 = vmatprep.subr.bf16.mxu0 0
      %1329 = vmatpush1.bf16.xpose.msra.mxu0 0
      %1330 = vmatprep.subr.bf16.mxu0 0
      %1331 = vmatpush1.bf16.xpose.msra.mxu0 0
      %1332 = vmatprep.mubr.bf16.mxu0 0
      %1333 = vmatmul.mubr.bf16.gmra.mrb[0].mxu0 %v1295
      %v1334 = vpop.f32.mrb[0].mxu0
      %v1335 = vadd.f32 0.0, %v1334
      %v1336 = vpop.f32.mrb[0].mxu0
      %v1337 = vpop.f32.mrb[0].mxu0
      %v1338 = vpop.f32.mrb[0].mxu0
      %1339 = vdwg.mxu0
      %1340 = vrot.lane.b32.xlu0 %v745, 120
      %v1341 = vpop.permute.xlu0 %1340
      %1342 = vrot.lane.b32.xlu0 %v745, 88
      %v1343 = vpop.permute.xlu0 %1342
      %v1345 = vsel %vm749, %v1341, 0
      %v1348 = vsel %vm749, %v1343, 0
      %1350 = vmatprep.subr.bf16.mxu0 0
      %1351 = vmatpush1.bf16.xpose.msra.mxu0 %v1348
      %1352 = vmatprep.subr.bf16.mxu0 0
      %1353 = vmatpush1.bf16.xpose.msra.mxu0 0
      %1354 = vmatprep.subr.bf16.mxu0 0
      %1355 = vmatpush1.bf16.xpose.msra.mxu0 0
      %1356 = vmatprep.subr.bf16.mxu0 0
      %1357 = vmatpush1.bf16.xpose.msra.mxu0 0
      %1358 = vmatprep.subr.bf16.mxu0 0
      %1359 = vmatpush1.bf16.xpose.msra.mxu0 0
      %1360 = vmatprep.subr.bf16.mxu0 0
      %1361 = vmatpush1.bf16.xpose.msra.mxu0 0
      %1362 = vmatprep.subr.bf16.mxu0 0
      %1363 = vmatpush1.bf16.xpose.msra.mxu0 0
      %1364 = vmatprep.subr.bf16.mxu0 0
      %1365 = vmatpush1.bf16.xpose.msra.mxu0 0
      %1366 = vmatprep.subr.bf16.mxu0 0
      %1367 = vmatpush1.bf16.xpose.msra.mxu0 0
      %1368 = vmatprep.subr.bf16.mxu0 0
      %1369 = vmatpush1.bf16.xpose.msra.mxu0 0
      %1370 = vmatprep.subr.bf16.mxu0 0
      %1371 = vmatpush1.bf16.xpose.msra.mxu0 0
      %1372 = vmatprep.subr.bf16.mxu0 0
      %1373 = vmatpush1.bf16.xpose.msra.mxu0 0
      %1374 = vmatprep.subr.bf16.mxu0 0
      %1375 = vmatpush1.bf16.xpose.msra.mxu0 0
      %1376 = vmatprep.subr.bf16.mxu0 0
      %1377 = vmatpush1.bf16.xpose.msra.mxu0 0
      %1378 = vmatprep.subr.bf16.mxu0 0
      %1379 = vmatpush1.bf16.xpose.msra.mxu0 0
      %1380 = vmatprep.subr.bf16.mxu0 0
      %1381 = vmatpush1.bf16.xpose.msra.mxu0 0
      %1382 = vmatprep.mubr.bf16.mxu0 0
      %1383 = vmatmul.mubr.bf16.gmra.mrb[0].mxu0 %v1345
      %v1384 = vpop.f32.mrb[0].mxu0
      %v1385 = vadd.f32 0.0, %v1384
      %v1386 = vpop.f32.mrb[0].mxu0
      %v1387 = vpop.f32.mrb[0].mxu0
      %v1388 = vpop.f32.mrb[0].mxu0
      %1389 = vdwg.mxu0
      %v1390 = vmul.f32 %v1235, 0.35355338
      %v1391 = vmul.f32 %v1285, 0.35355338
      %v1392 = vmul.f32 %v1335, 0.35355338
      %v1393 = vmul.f32 %v1385, 0.35355338
      %v1394 = vsel %vm947, %v1390, -inf
      %1395 = vmax.xlane.f32.xlu0 %v1394
      %v1396 = vpop.xlane.xlu0 %1395
      %v1397 = vsel %vm947, %v1391, -inf
      %1398 = vmax.xlane.f32.xlu0 %v1397
      %v1399 = vpop.xlane.xlu0 %1398
      %v1400 = vsel %vm947, %v1392, -inf
      %1401 = vmax.xlane.f32.xlu0 %v1400
      %v1402 = vpop.xlane.xlu0 %1401
      %v1403 = vsel %vm947, %v1393, -inf
      %1404 = vmax.xlane.f32.xlu0 %v1403
      %v1405 = vpop.xlane.xlu0 %1404
      %v1406 = vsub.f32 %v1390, %v1396
      %v1407 = vsub.f32 %v1391, %v1399
      %v1408 = vsub.f32 %v1392, %v1402
      %v1409 = vsub.f32 %v1393, %v1405
      %v1410 = vmul.f32 %v1406, 1.442695
      %v1411 = vpow.pop %v1410
      %v1412 = vmul.f32 %v1407, 1.442695
      %v1413 = vpow.pop %v1412
      %v1414 = vmul.f32 %v1408, 1.442695
      %v1415 = vpow.pop %v1414
      %v1416 = vmul.f32 %v1409, 1.442695
      %v1417 = vpow.pop %v1416
      %v1418 = vsel %vm947, %v1411, 0.0
      %1419 = vadd.xlane.f32.xlu0 %v1418
      %v1420 = vpop.xlane.xlu0 %1419
      %v1421 = vsel %vm947, %v1413, 0.0
      %1422 = vadd.xlane.f32.xlu0 %v1421
      %v1423 = vpop.xlane.xlu0 %1422
      %v1424 = vsel %vm947, %v1415, 0.0
      %1425 = vadd.xlane.f32.xlu0 %v1424
      %v1426 = vpop.xlane.xlu0 %1425
      %v1427 = vsel %vm947, %v1417, 0.0
      %1428 = vadd.xlane.f32.xlu0 %v1427
      %v1429 = vpop.xlane.xlu0 %1428
      %v1430 = vrcp.pop %v1420
      %v1431 = vrcp.pop %v1423
      %v1432 = vrcp.pop %v1426
      %v1433 = vrcp.pop %v1429
      %v1434 = vmul.f32 %v1411, %v1430
      %v1435 = vmul.f32 %v1413, %v1431
      %v1436 = vmul.f32 %v1415, %v1432
      %v1437 = vmul.f32 %v1417, %v1433
      %v1438 = vpack.c.bf16 %v1434, %v1434
      %v1439 = vpack.c.bf16 %v1435, %v1435
      %v1440 = vpack.c.bf16 %v1436, %v1436
      %v1441 = vpack.c.bf16 %v1437, %v1437
      %1442 = vrot.lane.b32.xlu0 %v742, 56
      %v1443 = vpop.permute.xlu0 %1442
      %v1445 = vsel %vm998, %v1438, 0
      %v1448 = vsel %vm1002, %v1443, 0
      %1450 = vmatprep.subr.bf16.mxu0 0
      %1451 = vmatpush1.bf16.msra.mxu0 %v1448
      %1452 = vmatprep.subr.bf16.mxu0 0
      %1453 = vmatpush1.bf16.msra.mxu0 0
      %1454 = vmatprep.subr.bf16.mxu0 0
      %1455 = vmatpush1.bf16.msra.mxu0 0
      %1456 = vmatprep.subr.bf16.mxu0 0
      %1457 = vmatpush1.bf16.msra.mxu0 0
      %1458 = vmatprep.subr.bf16.mxu0 0
      %1459 = vmatpush1.bf16.msra.mxu0 0
      %1460 = vmatprep.subr.bf16.mxu0 0
      %1461 = vmatpush1.bf16.msra.mxu0 0
      %1462 = vmatprep.subr.bf16.mxu0 0
      %1463 = vmatpush1.bf16.msra.mxu0 0
      %1464 = vmatprep.subr.bf16.mxu0 0
      %1465 = vmatpush1.bf16.msra.mxu0 0
      %1466 = vmatprep.subr.bf16.mxu0 0
      %1467 = vmatpush1.bf16.msra.mxu0 0
      %1468 = vmatprep.subr.bf16.mxu0 0
      %1469 = vmatpush1.bf16.msra.mxu0 0
      %1470 = vmatprep.subr.bf16.mxu0 0
      %1471 = vmatpush1.bf16.msra.mxu0 0
      %1472 = vmatprep.subr.bf16.mxu0 0
      %1473 = vmatpush1.bf16.msra.mxu0 0
      %1474 = vmatprep.subr.bf16.mxu0 0
      %1475 = vmatpush1.bf16.msra.mxu0 0
      %1476 = vmatprep.subr.bf16.mxu0 0
      %1477 = vmatpush1.bf16.msra.mxu0 0
      %1478 = vmatprep.subr.bf16.mxu0 0
      %1479 = vmatpush1.bf16.msra.mxu0 0
      %1480 = vmatprep.subr.bf16.mxu0 0
      %1481 = vmatpush1.bf16.msra.mxu0 0
      %1482 = vmatprep.mubr.bf16.mxu0 0
      %1483 = vmatmul.mubr.bf16.gmra.mrb[0].mxu0 %v1445
      %v1484 = vpop.f32.mrb[0].mxu0
      %v1485 = vadd.f32 0.0, %v1484
      %v1486 = vpop.f32.mrb[0].mxu0
      %v1487 = vpop.f32.mrb[0].mxu0
      %v1488 = vpop.f32.mrb[0].mxu0
      %1489 = vdwg.mxu0
      %1490 = vrot.lane.b32.xlu0 %v743, 56
      %v1491 = vpop.permute.xlu0 %1490
      %v1493 = vsel %vm998, %v1439, 0
      %v1496 = vsel %vm1002, %v1491, 0
      %1498 = vmatprep.subr.bf16.mxu0 0
      %1499 = vmatpush1.bf16.msra.mxu0 %v1496
      %1500 = vmatprep.subr.bf16.mxu0 0
      %1501 = vmatpush1.bf16.msra.mxu0 0
      %1502 = vmatprep.subr.bf16.mxu0 0
      %1503 = vmatpush1.bf16.msra.mxu0 0
      %1504 = vmatprep.subr.bf16.mxu0 0
      %1505 = vmatpush1.bf16.msra.mxu0 0
      %1506 = vmatprep.subr.bf16.mxu0 0
      %1507 = vmatpush1.bf16.msra.mxu0 0
      %1508 = vmatprep.subr.bf16.mxu0 0
      %1509 = vmatpush1.bf16.msra.mxu0 0
      %1510 = vmatprep.subr.bf16.mxu0 0
      %1511 = vmatpush1.bf16.msra.mxu0 0
      %1512 = vmatprep.subr.bf16.mxu0 0
      %1513 = vmatpush1.bf16.msra.mxu0 0
      %1514 = vmatprep.subr.bf16.mxu0 0
      %1515 = vmatpush1.bf16.msra.mxu0 0
      %1516 = vmatprep.subr.bf16.mxu0 0
      %1517 = vmatpush1.bf16.msra.mxu0 0
      %1518 = vmatprep.subr.bf16.mxu0 0
      %1519 = vmatpush1.bf16.msra.mxu0 0
      %1520 = vmatprep.subr.bf16.mxu0 0
      %1521 = vmatpush1.bf16.msra.mxu0 0
      %1522 = vmatprep.subr.bf16.mxu0 0
      %1523 = vmatpush1.bf16.msra.mxu0 0
      %1524 = vmatprep.subr.bf16.mxu0 0
      %1525 = vmatpush1.bf16.msra.mxu0 0
      %1526 = vmatprep.subr.bf16.mxu0 0
      %1527 = vmatpush1.bf16.msra.mxu0 0
      %1528 = vmatprep.subr.bf16.mxu0 0
      %1529 = vmatpush1.bf16.msra.mxu0 0
      %1530 = vmatprep.mubr.bf16.mxu0 0
      %1531 = vmatmul.mubr.bf16.gmra.mrb[0].mxu0 %v1493
      %v1532 = vpop.f32.mrb[0].mxu0
      %v1533 = vadd.f32 0.0, %v1532
      %v1534 = vpop.f32.mrb[0].mxu0
      %v1535 = vpop.f32.mrb[0].mxu0
      %v1536 = vpop.f32.mrb[0].mxu0
      %1537 = vdwg.mxu0
      %1538 = vrot.lane.b32.xlu0 %v744, 56
      %v1539 = vpop.permute.xlu0 %1538
      %v1541 = vsel %vm998, %v1440, 0
      %v1544 = vsel %vm1002, %v1539, 0
      %1546 = vmatprep.subr.bf16.mxu0 0
      %1547 = vmatpush1.bf16.msra.mxu0 %v1544
      %1548 = vmatprep.subr.bf16.mxu0 0
      %1549 = vmatpush1.bf16.msra.mxu0 0
      %1550 = vmatprep.subr.bf16.mxu0 0
      %1551 = vmatpush1.bf16.msra.mxu0 0
      %1552 = vmatprep.subr.bf16.mxu0 0
      %1553 = vmatpush1.bf16.msra.mxu0 0
      %1554 = vmatprep.subr.bf16.mxu0 0
      %1555 = vmatpush1.bf16.msra.mxu0 0
      %1556 = vmatprep.subr.bf16.mxu0 0
      %1557 = vmatpush1.bf16.msra.mxu0 0
      %1558 = vmatprep.subr.bf16.mxu0 0
      %1559 = vmatpush1.bf16.msra.mxu0 0
      %1560 = vmatprep.subr.bf16.mxu0 0
      %1561 = vmatpush1.bf16.msra.mxu0 0
      %1562 = vmatprep.subr.bf16.mxu0 0
      %1563 = vmatpush1.bf16.msra.mxu0 0
      %1564 = vmatprep.subr.bf16.mxu0 0
      %1565 = vmatpush1.bf16.msra.mxu0 0
      %1566 = vmatprep.subr.bf16.mxu0 0
      %1567 = vmatpush1.bf16.msra.mxu0 0
      %1568 = vmatprep.subr.bf16.mxu0 0
      %1569 = vmatpush1.bf16.msra.mxu0 0
      %1570 = vmatprep.subr.bf16.mxu0 0
      %1571 = vmatpush1.bf16.msra.mxu0 0
      %1572 = vmatprep.subr.bf16.mxu0 0
      %1573 = vmatpush1.bf16.msra.mxu0 0
      %1574 = vmatprep.subr.bf16.mxu0 0
      %1575 = vmatpush1.bf16.msra.mxu0 0
      %1576 = vmatprep.subr.bf16.mxu0 0
      %1577 = vmatpush1.bf16.msra.mxu0 0
      %1578 = vmatprep.mubr.bf16.mxu0 0
      %1579 = vmatmul.mubr.bf16.gmra.mrb[0].mxu0 %v1541
      %v1580 = vpop.f32.mrb[0].mxu0
      %v1581 = vadd.f32 0.0, %v1580
      %v1582 = vpop.f32.mrb[0].mxu0
      %v1583 = vpop.f32.mrb[0].mxu0
      %v1584 = vpop.f32.mrb[0].mxu0
      %1585 = vdwg.mxu0
      %1586 = vrot.lane.b32.xlu0 %v745, 56
      %v1587 = vpop.permute.xlu0 %1586
      %v1589 = vsel %vm998, %v1441, 0
      %v1592 = vsel %vm1002, %v1587, 0
      %1594 = vmatprep.subr.bf16.mxu0 0
      %1595 = vmatpush1.bf16.msra.mxu0 %v1592
      %1596 = vmatprep.subr.bf16.mxu0 0
      %1597 = vmatpush1.bf16.msra.mxu0 0
      %1598 = vmatprep.subr.bf16.mxu0 0
      %1599 = vmatpush1.bf16.msra.mxu0 0
      %1600 = vmatprep.subr.bf16.mxu0 0
      %1601 = vmatpush1.bf16.msra.mxu0 0
      %1602 = vmatprep.subr.bf16.mxu0 0
      %1603 = vmatpush1.bf16.msra.mxu0 0
      %1604 = vmatprep.subr.bf16.mxu0 0
      %1605 = vmatpush1.bf16.msra.mxu0 0
      %1606 = vmatprep.subr.bf16.mxu0 0
      %1607 = vmatpush1.bf16.msra.mxu0 0
      %1608 = vmatprep.subr.bf16.mxu0 0
      %1609 = vmatpush1.bf16.msra.mxu0 0
      %1610 = vmatprep.subr.bf16.mxu0 0
      %1611 = vmatpush1.bf16.msra.mxu0 0
      %1612 = vmatprep.subr.bf16.mxu0 0
      %1613 = vmatpush1.bf16.msra.mxu0 0
      %1614 = vmatprep.subr.bf16.mxu0 0
      %1615 = vmatpush1.bf16.msra.mxu0 0
      %1616 = vmatprep.subr.bf16.mxu0 0
      %1617 = vmatpush1.bf16.msra.mxu0 0
      %1618 = vmatprep.subr.bf16.mxu0 0
      %1619 = vmatpush1.bf16.msra.mxu0 0
      %1620 = vmatprep.subr.bf16.mxu0 0
      %1621 = vmatpush1.bf16.msra.mxu0 0
      %1622 = vmatprep.subr.bf16.mxu0 0
      %1623 = vmatpush1.bf16.msra.mxu0 0
      %1624 = vmatprep.subr.bf16.mxu0 0
      %1625 = vmatpush1.bf16.msra.mxu0 0
      %1626 = vmatprep.mubr.bf16.mxu0 0
      %1627 = vmatmul.mubr.bf16.gmra.mrb[0].mxu0 %v1589
      %v1628 = vpop.f32.mrb[0].mxu0
      %v1629 = vadd.f32 0.0, %v1628
      %v1630 = vpop.f32.mrb[0].mxu0
      %v1631 = vpop.f32.mrb[0].mxu0
      %v1632 = vpop.f32.mrb[0].mxu0
      %1633 = vdwg.mxu0
      %1634 = vrot.lane.b32.xlu0 %v742, 112
      %v1635 = vpop.permute.xlu0 %1634
      %1636 = vrot.lane.b32.xlu0 %v742, 80
      %v1637 = vpop.permute.xlu0 %1636
      %v1639 = vsel %vm749, %v1635, 0
      %v1642 = vsel %vm749, %v1637, 0
      %1644 = vmatprep.subr.bf16.mxu0 0
      %1645 = vmatpush1.bf16.xpose.msra.mxu0 %v1642
      %1646 = vmatprep.subr.bf16.mxu0 0
      %1647 = vmatpush1.bf16.xpose.msra.mxu0 0
      %1648 = vmatprep.subr.bf16.mxu0 0
      %1649 = vmatpush1.bf16.xpose.msra.mxu0 0
      %1650 = vmatprep.subr.bf16.mxu0 0
      %1651 = vmatpush1.bf16.xpose.msra.mxu0 0
      %1652 = vmatprep.subr.bf16.mxu0 0
      %1653 = vmatpush1.bf16.xpose.msra.mxu0 0
      %1654 = vmatprep.subr.bf16.mxu0 0
      %1655 = vmatpush1.bf16.xpose.msra.mxu0 0
      %1656 = vmatprep.subr.bf16.mxu0 0
      %1657 = vmatpush1.bf16.xpose.msra.mxu0 0
      %1658 = vmatprep.subr.bf16.mxu0 0
      %1659 = vmatpush1.bf16.xpose.msra.mxu0 0
      %1660 = vmatprep.subr.bf16.mxu0 0
      %1661 = vmatpush1.bf16.xpose.msra.mxu0 0
      %1662 = vmatprep.subr.bf16.mxu0 0
      %1663 = vmatpush1.bf16.xpose.msra.mxu0 0
      %1664 = vmatprep.subr.bf16.mxu0 0
      %1665 = vmatpush1.bf16.xpose.msra.mxu0 0
      %1666 = vmatprep.subr.bf16.mxu0 0
      %1667 = vmatpush1.bf16.xpose.msra.mxu0 0
      %1668 = vmatprep.subr.bf16.mxu0 0
      %1669 = vmatpush1.bf16.xpose.msra.mxu0 0
      %1670 = vmatprep.subr.bf16.mxu0 0
      %1671 = vmatpush1.bf16.xpose.msra.mxu0 0
      %1672 = vmatprep.subr.bf16.mxu0 0
      %1673 = vmatpush1.bf16.xpose.msra.mxu0 0
      %1674 = vmatprep.subr.bf16.mxu0 0
      %1675 = vmatpush1.bf16.xpose.msra.mxu0 0
      %1676 = vmatprep.mubr.bf16.mxu0 0
      %1677 = vmatmul.mubr.bf16.gmra.mrb[0].mxu0 %v1639
      %v1678 = vpop.f32.mrb[0].mxu0
      %v1679 = vadd.f32 0.0, %v1678
      %v1680 = vpop.f32.mrb[0].mxu0
      %v1681 = vpop.f32.mrb[0].mxu0
      %v1682 = vpop.f32.mrb[0].mxu0
      %1683 = vdwg.mxu0
      %1684 = vrot.lane.b32.xlu0 %v743, 112
      %v1685 = vpop.permute.xlu0 %1684
      %1686 = vrot.lane.b32.xlu0 %v743, 80
      %v1687 = vpop.permute.xlu0 %1686
      %v1689 = vsel %vm749, %v1685, 0
      %v1692 = vsel %vm749, %v1687, 0
      %1694 = vmatprep.subr.bf16.mxu0 0
      %1695 = vmatpush1.bf16.xpose.msra.mxu0 %v1692
      %1696 = vmatprep.subr.bf16.mxu0 0
      %1697 = vmatpush1.bf16.xpose.msra.mxu0 0
      %1698 = vmatprep.subr.bf16.mxu0 0
      %1699 = vmatpush1.bf16.xpose.msra.mxu0 0
      %1700 = vmatprep.subr.bf16.mxu0 0
      %1701 = vmatpush1.bf16.xpose.msra.mxu0 0
      %1702 = vmatprep.subr.bf16.mxu0 0
      %1703 = vmatpush1.bf16.xpose.msra.mxu0 0
      %1704 = vmatprep.subr.bf16.mxu0 0
      %1705 = vmatpush1.bf16.xpose.msra.mxu0 0
      %1706 = vmatprep.subr.bf16.mxu0 0
      %1707 = vmatpush1.bf16.xpose.msra.mxu0 0
      %1708 = vmatprep.subr.bf16.mxu0 0
      %1709 = vmatpush1.bf16.xpose.msra.mxu0 0
      %1710 = vmatprep.subr.bf16.mxu0 0
      %1711 = vmatpush1.bf16.xpose.msra.mxu0 0
      %1712 = vmatprep.subr.bf16.mxu0 0
      %1713 = vmatpush1.bf16.xpose.msra.mxu0 0
      %1714 = vmatprep.subr.bf16.mxu0 0
      %1715 = vmatpush1.bf16.xpose.msra.mxu0 0
      %1716 = vmatprep.subr.bf16.mxu0 0
      %1717 = vmatpush1.bf16.xpose.msra.mxu0 0
      %1718 = vmatprep.subr.bf16.mxu0 0
      %1719 = vmatpush1.bf16.xpose.msra.mxu0 0
      %1720 = vmatprep.subr.bf16.mxu0 0
      %1721 = vmatpush1.bf16.xpose.msra.mxu0 0
      %1722 = vmatprep.subr.bf16.mxu0 0
      %1723 = vmatpush1.bf16.xpose.msra.mxu0 0
      %1724 = vmatprep.subr.bf16.mxu0 0
      %1725 = vmatpush1.bf16.xpose.msra.mxu0 0
      %1726 = vmatprep.mubr.bf16.mxu0 0
      %1727 = vmatmul.mubr.bf16.gmra.mrb[0].mxu0 %v1689
      %v1728 = vpop.f32.mrb[0].mxu0
      %v1729 = vadd.f32 0.0, %v1728
      %v1730 = vpop.f32.mrb[0].mxu0
      %v1731 = vpop.f32.mrb[0].mxu0
      %v1732 = vpop.f32.mrb[0].mxu0
      %1733 = vdwg.mxu0
      %1734 = vrot.lane.b32.xlu0 %v744, 112
      %v1735 = vpop.permute.xlu0 %1734
      %1736 = vrot.lane.b32.xlu0 %v744, 80
      %v1737 = vpop.permute.xlu0 %1736
      %v1739 = vsel %vm749, %v1735, 0
      %v1742 = vsel %vm749, %v1737, 0
      %1744 = vmatprep.subr.bf16.mxu0 0
      %1745 = vmatpush1.bf16.xpose.msra.mxu0 %v1742
      %1746 = vmatprep.subr.bf16.mxu0 0
      %1747 = vmatpush1.bf16.xpose.msra.mxu0 0
      %1748 = vmatprep.subr.bf16.mxu0 0
      %1749 = vmatpush1.bf16.xpose.msra.mxu0 0
      %1750 = vmatprep.subr.bf16.mxu0 0
      %1751 = vmatpush1.bf16.xpose.msra.mxu0 0
      %1752 = vmatprep.subr.bf16.mxu0 0
      %1753 = vmatpush1.bf16.xpose.msra.mxu0 0
      %1754 = vmatprep.subr.bf16.mxu0 0
      %1755 = vmatpush1.bf16.xpose.msra.mxu0 0
      %1756 = vmatprep.subr.bf16.mxu0 0
      %1757 = vmatpush1.bf16.xpose.msra.mxu0 0
      %1758 = vmatprep.subr.bf16.mxu0 0
      %1759 = vmatpush1.bf16.xpose.msra.mxu0 0
      %1760 = vmatprep.subr.bf16.mxu0 0
      %1761 = vmatpush1.bf16.xpose.msra.mxu0 0
      %1762 = vmatprep.subr.bf16.mxu0 0
      %1763 = vmatpush1.bf16.xpose.msra.mxu0 0
      %1764 = vmatprep.subr.bf16.mxu0 0
      %1765 = vmatpush1.bf16.xpose.msra.mxu0 0
      %1766 = vmatprep.subr.bf16.mxu0 0
      %1767 = vmatpush1.bf16.xpose.msra.mxu0 0
      %1768 = vmatprep.subr.bf16.mxu0 0
      %1769 = vmatpush1.bf16.xpose.msra.mxu0 0
      %1770 = vmatprep.subr.bf16.mxu0 0
      %1771 = vmatpush1.bf16.xpose.msra.mxu0 0
      %1772 = vmatprep.subr.bf16.mxu0 0
      %1773 = vmatpush1.bf16.xpose.msra.mxu0 0
      %1774 = vmatprep.subr.bf16.mxu0 0
      %1775 = vmatpush1.bf16.xpose.msra.mxu0 0
      %1776 = vmatprep.mubr.bf16.mxu0 0
      %1777 = vmatmul.mubr.bf16.gmra.mrb[0].mxu0 %v1739
      %v1778 = vpop.f32.mrb[0].mxu0
      %v1779 = vadd.f32 0.0, %v1778
      %v1780 = vpop.f32.mrb[0].mxu0
      %v1781 = vpop.f32.mrb[0].mxu0
      %v1782 = vpop.f32.mrb[0].mxu0
      %1783 = vdwg.mxu0
      %1784 = vrot.lane.b32.xlu0 %v745, 112
      %v1785 = vpop.permute.xlu0 %1784
      %1786 = vrot.lane.b32.xlu0 %v745, 80
      %v1787 = vpop.permute.xlu0 %1786
      %v1789 = vsel %vm749, %v1785, 0
      %v1792 = vsel %vm749, %v1787, 0
      %1794 = vmatprep.subr.bf16.mxu0 0
      %1795 = vmatpush1.bf16.xpose.msra.mxu0 %v1792
      %1796 = vmatprep.subr.bf16.mxu0 0
      %1797 = vmatpush1.bf16.xpose.msra.mxu0 0
      %1798 = vmatprep.subr.bf16.mxu0 0
      %1799 = vmatpush1.bf16.xpose.msra.mxu0 0
      %1800 = vmatprep.subr.bf16.mxu0 0
      %1801 = vmatpush1.bf16.xpose.msra.mxu0 0
      %1802 = vmatprep.subr.bf16.mxu0 0
      %1803 = vmatpush1.bf16.xpose.msra.mxu0 0
      %1804 = vmatprep.subr.bf16.mxu0 0
      %1805 = vmatpush1.bf16.xpose.msra.mxu0 0
      %1806 = vmatprep.subr.bf16.mxu0 0
      %1807 = vmatpush1.bf16.xpose.msra.mxu0 0
      %1808 = vmatprep.subr.bf16.mxu0 0
      %1809 = vmatpush1.bf16.xpose.msra.mxu0 0
      %1810 = vmatprep.subr.bf16.mxu0 0
      %1811 = vmatpush1.bf16.xpose.msra.mxu0 0
      %1812 = vmatprep.subr.bf16.mxu0 0
      %1813 = vmatpush1.bf16.xpose.msra.mxu0 0
      %1814 = vmatprep.subr.bf16.mxu0 0
      %1815 = vmatpush1.bf16.xpose.msra.mxu0 0
      %1816 = vmatprep.subr.bf16.mxu0 0
      %1817 = vmatpush1.bf16.xpose.msra.mxu0 0
      %1818 = vmatprep.subr.bf16.mxu0 0
      %1819 = vmatpush1.bf16.xpose.msra.mxu0 0
      %1820 = vmatprep.subr.bf16.mxu0 0
      %1821 = vmatpush1.bf16.xpose.msra.mxu0 0
      %1822 = vmatprep.subr.bf16.mxu0 0
      %1823 = vmatpush1.bf16.xpose.msra.mxu0 0
      %1824 = vmatprep.subr.bf16.mxu0 0
      %1825 = vmatpush1.bf16.xpose.msra.mxu0 0
      %1826 = vmatprep.mubr.bf16.mxu0 0
      %1827 = vmatmul.mubr.bf16.gmra.mrb[0].mxu0 %v1789
      %v1828 = vpop.f32.mrb[0].mxu0
      %v1829 = vadd.f32 0.0, %v1828
      %v1830 = vpop.f32.mrb[0].mxu0
      %v1831 = vpop.f32.mrb[0].mxu0
      %v1832 = vpop.f32.mrb[0].mxu0
      %1833 = vdwg.mxu0
      %v1834 = vmul.f32 %v1679, 0.35355338
      %v1835 = vmul.f32 %v1729, 0.35355338
      %v1836 = vmul.f32 %v1779, 0.35355338
      %v1837 = vmul.f32 %v1829, 0.35355338
      %v1838 = vsel %vm947, %v1834, -inf
      %1839 = vmax.xlane.f32.xlu0 %v1838
      %v1840 = vpop.xlane.xlu0 %1839
      %v1841 = vsel %vm947, %v1835, -inf
      %1842 = vmax.xlane.f32.xlu0 %v1841
      %v1843 = vpop.xlane.xlu0 %1842
      %v1844 = vsel %vm947, %v1836, -inf
      %1845 = vmax.xlane.f32.xlu0 %v1844
      %v1846 = vpop.xlane.xlu0 %1845
      %v1847 = vsel %vm947, %v1837, -inf
      %1848 = vmax.xlane.f32.xlu0 %v1847
      %v1849 = vpop.xlane.xlu0 %1848
      %v1850 = vsub.f32 %v1834, %v1840
      %v1851 = vsub.f32 %v1835, %v1843
      %v1852 = vsub.f32 %v1836, %v1846
      %v1853 = vsub.f32 %v1837, %v1849
      %v1854 = vmul.f32 %v1850, 1.442695
      %v1855 = vpow.pop %v1854
      %v1856 = vmul.f32 %v1851, 1.442695
      %v1857 = vpow.pop %v1856
      %v1858 = vmul.f32 %v1852, 1.442695
      %v1859 = vpow.pop %v1858
      %v1860 = vmul.f32 %v1853, 1.442695
      %v1861 = vpow.pop %v1860
      %v1862 = vsel %vm947, %v1855, 0.0
      %1863 = vadd.xlane.f32.xlu0 %v1862
      %v1864 = vpop.xlane.xlu0 %1863
      %v1865 = vsel %vm947, %v1857, 0.0
      %1866 = vadd.xlane.f32.xlu0 %v1865
      %v1867 = vpop.xlane.xlu0 %1866
      %v1868 = vsel %vm947, %v1859, 0.0
      %1869 = vadd.xlane.f32.xlu0 %v1868
      %v1870 = vpop.xlane.xlu0 %1869
      %v1871 = vsel %vm947, %v1861, 0.0
      %1872 = vadd.xlane.f32.xlu0 %v1871
      %v1873 = vpop.xlane.xlu0 %1872
      %v1874 = vrcp.pop %v1864
      %v1875 = vrcp.pop %v1867
      %v1876 = vrcp.pop %v1870
      %v1877 = vrcp.pop %v1873
      %v1878 = vmul.f32 %v1855, %v1874
      %v1879 = vmul.f32 %v1857, %v1875
      %v1880 = vmul.f32 %v1859, %v1876
      %v1881 = vmul.f32 %v1861, %v1877
      %v1882 = vpack.c.bf16 %v1878, %v1878
      %v1883 = vpack.c.bf16 %v1879, %v1879
      %v1884 = vpack.c.bf16 %v1880, %v1880
      %v1885 = vpack.c.bf16 %v1881, %v1881
      %1886 = vrot.lane.b32.xlu0 %v742, 48
      %v1887 = vpop.permute.xlu0 %1886
      %v1889 = vsel %vm998, %v1882, 0
      %v1892 = vsel %vm1002, %v1887, 0
      %1894 = vmatprep.subr.bf16.mxu0 0
      %1895 = vmatpush1.bf16.msra.mxu0 %v1892
      %1896 = vmatprep.subr.bf16.mxu0 0
      %1897 = vmatpush1.bf16.msra.mxu0 0
      %1898 = vmatprep.subr.bf16.mxu0 0
      %1899 = vmatpush1.bf16.msra.mxu0 0
      %1900 = vmatprep.subr.bf16.mxu0 0
      %1901 = vmatpush1.bf16.msra.mxu0 0
      %1902 = vmatprep.subr.bf16.mxu0 0
      %1903 = vmatpush1.bf16.msra.mxu0 0
      %1904 = vmatprep.subr.bf16.mxu0 0
      %1905 = vmatpush1.bf16.msra.mxu0 0
      %1906 = vmatprep.subr.bf16.mxu0 0
      %1907 = vmatpush1.bf16.msra.mxu0 0
      %1908 = vmatprep.subr.bf16.mxu0 0
      %1909 = vmatpush1.bf16.msra.mxu0 0
      %1910 = vmatprep.subr.bf16.mxu0 0
      %1911 = vmatpush1.bf16.msra.mxu0 0
      %1912 = vmatprep.subr.bf16.mxu0 0
      %1913 = vmatpush1.bf16.msra.mxu0 0
      %1914 = vmatprep.subr.bf16.mxu0 0
      %1915 = vmatpush1.bf16.msra.mxu0 0
      %1916 = vmatprep.subr.bf16.mxu0 0
      %1917 = vmatpush1.bf16.msra.mxu0 0
      %1918 = vmatprep.subr.bf16.mxu0 0
      %1919 = vmatpush1.bf16.msra.mxu0 0
      %1920 = vmatprep.subr.bf16.mxu0 0
      %1921 = vmatpush1.bf16.msra.mxu0 0
      %1922 = vmatprep.subr.bf16.mxu0 0
      %1923 = vmatpush1.bf16.msra.mxu0 0
      %1924 = vmatprep.subr.bf16.mxu0 0
      %1925 = vmatpush1.bf16.msra.mxu0 0
      %1926 = vmatprep.mubr.bf16.mxu0 0
      %1927 = vmatmul.mubr.bf16.gmra.mrb[0].mxu0 %v1889
      %v1928 = vpop.f32.mrb[0].mxu0
      %v1929 = vadd.f32 0.0, %v1928
      %v1930 = vpop.f32.mrb[0].mxu0
      %v1931 = vpop.f32.mrb[0].mxu0
      %v1932 = vpop.f32.mrb[0].mxu0
      %1933 = vdwg.mxu0
      %1934 = vrot.lane.b32.xlu0 %v743, 48
      %v1935 = vpop.permute.xlu0 %1934
      %v1937 = vsel %vm998, %v1883, 0
      %v1940 = vsel %vm1002, %v1935, 0
      %1942 = vmatprep.subr.bf16.mxu0 0
      %1943 = vmatpush1.bf16.msra.mxu0 %v1940
      %1944 = vmatprep.subr.bf16.mxu0 0
      %1945 = vmatpush1.bf16.msra.mxu0 0
      %1946 = vmatprep.subr.bf16.mxu0 0
      %1947 = vmatpush1.bf16.msra.mxu0 0
      %1948 = vmatprep.subr.bf16.mxu0 0
      %1949 = vmatpush1.bf16.msra.mxu0 0
      %1950 = vmatprep.subr.bf16.mxu0 0
      %1951 = vmatpush1.bf16.msra.mxu0 0
      %1952 = vmatprep.subr.bf16.mxu0 0
      %1953 = vmatpush1.bf16.msra.mxu0 0
      %1954 = vmatprep.subr.bf16.mxu0 0
      %1955 = vmatpush1.bf16.msra.mxu0 0
      %1956 = vmatprep.subr.bf16.mxu0 0
      %1957 = vmatpush1.bf16.msra.mxu0 0
      %1958 = vmatprep.subr.bf16.mxu0 0
      %1959 = vmatpush1.bf16.msra.mxu0 0
      %1960 = vmatprep.subr.bf16.mxu0 0
      %1961 = vmatpush1.bf16.msra.mxu0 0
      %1962 = vmatprep.subr.bf16.mxu0 0
      %1963 = vmatpush1.bf16.msra.mxu0 0
      %1964 = vmatprep.subr.bf16.mxu0 0
      %1965 = vmatpush1.bf16.msra.mxu0 0
      %1966 = vmatprep.subr.bf16.mxu0 0
      %1967 = vmatpush1.bf16.msra.mxu0 0
      %1968 = vmatprep.subr.bf16.mxu0 0
      %1969 = vmatpush1.bf16.msra.mxu0 0
      %1970 = vmatprep.subr.bf16.mxu0 0
      %1971 = vmatpush1.bf16.msra.mxu0 0
      %1972 = vmatprep.subr.bf16.mxu0 0
      %1973 = vmatpush1.bf16.msra.mxu0 0
      %1974 = vmatprep.mubr.bf16.mxu0 0
      %1975 = vmatmul.mubr.bf16.gmra.mrb[0].mxu0 %v1937
      %v1976 = vpop.f32.mrb[0].mxu0
      %v1977 = vadd.f32 0.0, %v1976
      %v1978 = vpop.f32.mrb[0].mxu0
      %v1979 = vpop.f32.mrb[0].mxu0
      %v1980 = vpop.f32.mrb[0].mxu0
      %1981 = vdwg.mxu0
      %1982 = vrot.lane.b32.xlu0 %v744, 48
      %v1983 = vpop.permute.xlu0 %1982
      %v1985 = vsel %vm998, %v1884, 0
      %v1988 = vsel %vm1002, %v1983, 0
      %1990 = vmatprep.subr.bf16.mxu0 0
      %1991 = vmatpush1.bf16.msra.mxu0 %v1988
      %1992 = vmatprep.subr.bf16.mxu0 0
      %1993 = vmatpush1.bf16.msra.mxu0 0
      %1994 = vmatprep.subr.bf16.mxu0 0
      %1995 = vmatpush1.bf16.msra.mxu0 0
      %1996 = vmatprep.subr.bf16.mxu0 0
      %1997 = vmatpush1.bf16.msra.mxu0 0
      %1998 = vmatprep.subr.bf16.mxu0 0
      %1999 = vmatpush1.bf16.msra.mxu0 0
      %2000 = vmatprep.subr.bf16.mxu0 0
      %2001 = vmatpush1.bf16.msra.mxu0 0
      %2002 = vmatprep.subr.bf16.mxu0 0
      %2003 = vmatpush1.bf16.msra.mxu0 0
      %2004 = vmatprep.subr.bf16.mxu0 0
      %2005 = vmatpush1.bf16.msra.mxu0 0
      %2006 = vmatprep.subr.bf16.mxu0 0
      %2007 = vmatpush1.bf16.msra.mxu0 0
      %2008 = vmatprep.subr.bf16.mxu0 0
      %2009 = vmatpush1.bf16.msra.mxu0 0
      %2010 = vmatprep.subr.bf16.mxu0 0
      %2011 = vmatpush1.bf16.msra.mxu0 0
      %2012 = vmatprep.subr.bf16.mxu0 0
      %2013 = vmatpush1.bf16.msra.mxu0 0
      %2014 = vmatprep.subr.bf16.mxu0 0
      %2015 = vmatpush1.bf16.msra.mxu0 0
      %2016 = vmatprep.subr.bf16.mxu0 0
      %2017 = vmatpush1.bf16.msra.mxu0 0
      %2018 = vmatprep.subr.bf16.mxu0 0
      %2019 = vmatpush1.bf16.msra.mxu0 0
      %2020 = vmatprep.subr.bf16.mxu0 0
      %2021 = vmatpush1.bf16.msra.mxu0 0
      %2022 = vmatprep.mubr.bf16.mxu0 0
      %2023 = vmatmul.mubr.bf16.gmra.mrb[0].mxu0 %v1985
      %v2024 = vpop.f32.mrb[0].mxu0
      %v2025 = vadd.f32 0.0, %v2024
      %v2026 = vpop.f32.mrb[0].mxu0
      %v2027 = vpop.f32.mrb[0].mxu0
      %v2028 = vpop.f32.mrb[0].mxu0
      %2029 = vdwg.mxu0
      %2030 = vrot.lane.b32.xlu0 %v745, 48
      %v2031 = vpop.permute.xlu0 %2030
      %v2033 = vsel %vm998, %v1885, 0
      %v2036 = vsel %vm1002, %v2031, 0
      %2038 = vmatprep.subr.bf16.mxu0 0
      %2039 = vmatpush1.bf16.msra.mxu0 %v2036
      %2040 = vmatprep.subr.bf16.mxu0 0
      %2041 = vmatpush1.bf16.msra.mxu0 0
      %2042 = vmatprep.subr.bf16.mxu0 0
      %2043 = vmatpush1.bf16.msra.mxu0 0
      %2044 = vmatprep.subr.bf16.mxu0 0
      %2045 = vmatpush1.bf16.msra.mxu0 0
      %2046 = vmatprep.subr.bf16.mxu0 0
      %2047 = vmatpush1.bf16.msra.mxu0 0
      %2048 = vmatprep.subr.bf16.mxu0 0
      %2049 = vmatpush1.bf16.msra.mxu0 0
      %2050 = vmatprep.subr.bf16.mxu0 0
      %2051 = vmatpush1.bf16.msra.mxu0 0
      %2052 = vmatprep.subr.bf16.mxu0 0
      %2053 = vmatpush1.bf16.msra.mxu0 0
      %2054 = vmatprep.subr.bf16.mxu0 0
      %2055 = vmatpush1.bf16.msra.mxu0 0
      %2056 = vmatprep.subr.bf16.mxu0 0
      %2057 = vmatpush1.bf16.msra.mxu0 0
      %2058 = vmatprep.subr.bf16.mxu0 0
      %2059 = vmatpush1.bf16.msra.mxu0 0
      %2060 = vmatprep.subr.bf16.mxu0 0
      %2061 = vmatpush1.bf16.msra.mxu0 0
      %2062 = vmatprep.subr.bf16.mxu0 0
      %2063 = vmatpush1.bf16.msra.mxu0 0
      %2064 = vmatprep.subr.bf16.mxu0 0
      %2065 = vmatpush1.bf16.msra.mxu0 0
      %2066 = vmatprep.subr.bf16.mxu0 0
      %2067 = vmatpush1.bf16.msra.mxu0 0
      %2068 = vmatprep.subr.bf16.mxu0 0
      %2069 = vmatpush1.bf16.msra.mxu0 0
      %2070 = vmatprep.mubr.bf16.mxu0 0
      %2071 = vmatmul.mubr.bf16.gmra.mrb[0].mxu0 %v2033
      %v2072 = vpop.f32.mrb[0].mxu0
      %v2073 = vadd.f32 0.0, %v2072
      %v2074 = vpop.f32.mrb[0].mxu0
      %v2075 = vpop.f32.mrb[0].mxu0
      %v2076 = vpop.f32.mrb[0].mxu0
      %2077 = vdwg.mxu0
      %2078 = vrot.lane.b32.xlu0 %v742, 104
      %v2079 = vpop.permute.xlu0 %2078
      %2080 = vrot.lane.b32.xlu0 %v742, 72
      %v2081 = vpop.permute.xlu0 %2080
      %v2083 = vsel %vm749, %v2079, 0
      %v2086 = vsel %vm749, %v2081, 0
      %2088 = vmatprep.subr.bf16.mxu0 0
      %2089 = vmatpush1.bf16.xpose.msra.mxu0 %v2086
      %2090 = vmatprep.subr.bf16.mxu0 0
      %2091 = vmatpush1.bf16.xpose.msra.mxu0 0
      %2092 = vmatprep.subr.bf16.mxu0 0
      %2093 = vmatpush1.bf16.xpose.msra.mxu0 0
      %2094 = vmatprep.subr.bf16.mxu0 0
      %2095 = vmatpush1.bf16.xpose.msra.mxu0 0
      %2096 = vmatprep.subr.bf16.mxu0 0
      %2097 = vmatpush1.bf16.xpose.msra.mxu0 0
      %2098 = vmatprep.subr.bf16.mxu0 0
      %2099 = vmatpush1.bf16.xpose.msra.mxu0 0
      %2100 = vmatprep.subr.bf16.mxu0 0
      %2101 = vmatpush1.bf16.xpose.msra.mxu0 0
      %2102 = vmatprep.subr.bf16.mxu0 0
      %2103 = vmatpush1.bf16.xpose.msra.mxu0 0
      %2104 = vmatprep.subr.bf16.mxu0 0
      %2105 = vmatpush1.bf16.xpose.msra.mxu0 0
      %2106 = vmatprep.subr.bf16.mxu0 0
      %2107 = vmatpush1.bf16.xpose.msra.mxu0 0
      %2108 = vmatprep.subr.bf16.mxu0 0
      %2109 = vmatpush1.bf16.xpose.msra.mxu0 0
      %2110 = vmatprep.subr.bf16.mxu0 0
      %2111 = vmatpush1.bf16.xpose.msra.mxu0 0
      %2112 = vmatprep.subr.bf16.mxu0 0
      %2113 = vmatpush1.bf16.xpose.msra.mxu0 0
      %2114 = vmatprep.subr.bf16.mxu0 0
      %2115 = vmatpush1.bf16.xpose.msra.mxu0 0
      %2116 = vmatprep.subr.bf16.mxu0 0
      %2117 = vmatpush1.bf16.xpose.msra.mxu0 0
      %2118 = vmatprep.subr.bf16.mxu0 0
      %2119 = vmatpush1.bf16.xpose.msra.mxu0 0
      %2120 = vmatprep.mubr.bf16.mxu0 0
      %2121 = vmatmul.mubr.bf16.gmra.mrb[0].mxu0 %v2083
      %v2122 = vpop.f32.mrb[0].mxu0
      %v2123 = vadd.f32 0.0, %v2122
      %v2124 = vpop.f32.mrb[0].mxu0
      %v2125 = vpop.f32.mrb[0].mxu0
      %v2126 = vpop.f32.mrb[0].mxu0
      %2127 = vdwg.mxu0
      %2128 = vrot.lane.b32.xlu0 %v743, 104
      %v2129 = vpop.permute.xlu0 %2128
      %2130 = vrot.lane.b32.xlu0 %v743, 72
      %v2131 = vpop.permute.xlu0 %2130
      %v2133 = vsel %vm749, %v2129, 0
      %v2136 = vsel %vm749, %v2131, 0
      %2138 = vmatprep.subr.bf16.mxu0 0
      %2139 = vmatpush1.bf16.xpose.msra.mxu0 %v2136
      %2140 = vmatprep.subr.bf16.mxu0 0
      %2141 = vmatpush1.bf16.xpose.msra.mxu0 0
      %2142 = vmatprep.subr.bf16.mxu0 0
      %2143 = vmatpush1.bf16.xpose.msra.mxu0 0
      %2144 = vmatprep.subr.bf16.mxu0 0
      %2145 = vmatpush1.bf16.xpose.msra.mxu0 0
      %2146 = vmatprep.subr.bf16.mxu0 0
      %2147 = vmatpush1.bf16.xpose.msra.mxu0 0
      %2148 = vmatprep.subr.bf16.mxu0 0
      %2149 = vmatpush1.bf16.xpose.msra.mxu0 0
      %2150 = vmatprep.subr.bf16.mxu0 0
      %2151 = vmatpush1.bf16.xpose.msra.mxu0 0
      %2152 = vmatprep.subr.bf16.mxu0 0
      %2153 = vmatpush1.bf16.xpose.msra.mxu0 0
      %2154 = vmatprep.subr.bf16.mxu0 0
      %2155 = vmatpush1.bf16.xpose.msra.mxu0 0
      %2156 = vmatprep.subr.bf16.mxu0 0
      %2157 = vmatpush1.bf16.xpose.msra.mxu0 0
      %2158 = vmatprep.subr.bf16.mxu0 0
      %2159 = vmatpush1.bf16.xpose.msra.mxu0 0
      %2160 = vmatprep.subr.bf16.mxu0 0
      %2161 = vmatpush1.bf16.xpose.msra.mxu0 0
      %2162 = vmatprep.subr.bf16.mxu0 0
      %2163 = vmatpush1.bf16.xpose.msra.mxu0 0
      %2164 = vmatprep.subr.bf16.mxu0 0
      %2165 = vmatpush1.bf16.xpose.msra.mxu0 0
      %2166 = vmatprep.subr.bf16.mxu0 0
      %2167 = vmatpush1.bf16.xpose.msra.mxu0 0
      %2168 = vmatprep.subr.bf16.mxu0 0
      %2169 = vmatpush1.bf16.xpose.msra.mxu0 0
      %2170 = vmatprep.mubr.bf16.mxu0 0
      %2171 = vmatmul.mubr.bf16.gmra.mrb[0].mxu0 %v2133
      %v2172 = vpop.f32.mrb[0].mxu0
      %v2173 = vadd.f32 0.0, %v2172
      %v2174 = vpop.f32.mrb[0].mxu0
      %v2175 = vpop.f32.mrb[0].mxu0
      %v2176 = vpop.f32.mrb[0].mxu0
      %2177 = vdwg.mxu0
      %2178 = vrot.lane.b32.xlu0 %v744, 104
      %v2179 = vpop.permute.xlu0 %2178
      %2180 = vrot.lane.b32.xlu0 %v744, 72
      %v2181 = vpop.permute.xlu0 %2180
      %v2183 = vsel %vm749, %v2179, 0
      %v2186 = vsel %vm749, %v2181, 0
      %2188 = vmatprep.subr.bf16.mxu0 0
      %2189 = vmatpush1.bf16.xpose.msra.mxu0 %v2186
      %2190 = vmatprep.subr.bf16.mxu0 0
      %2191 = vmatpush1.bf16.xpose.msra.mxu0 0
      %2192 = vmatprep.subr.bf16.mxu0 0
      %2193 = vmatpush1.bf16.xpose.msra.mxu0 0
      %2194 = vmatprep.subr.bf16.mxu0 0
      %2195 = vmatpush1.bf16.xpose.msra.mxu0 0
      %2196 = vmatprep.subr.bf16.mxu0 0
      %2197 = vmatpush1.bf16.xpose.msra.mxu0 0
      %2198 = vmatprep.subr.bf16.mxu0 0
      %2199 = vmatpush1.bf16.xpose.msra.mxu0 0
      %2200 = vmatprep.subr.bf16.mxu0 0
      %2201 = vmatpush1.bf16.xpose.msra.mxu0 0
      %2202 = vmatprep.subr.bf16.mxu0 0
      %2203 = vmatpush1.bf16.xpose.msra.mxu0 0
      %2204 = vmatprep.subr.bf16.mxu0 0
      %2205 = vmatpush1.bf16.xpose.msra.mxu0 0
      %2206 = vmatprep.subr.bf16.mxu0 0
      %2207 = vmatpush1.bf16.xpose.msra.mxu0 0
      %2208 = vmatprep.subr.bf16.mxu0 0
      %2209 = vmatpush1.bf16.xpose.msra.mxu0 0
      %2210 = vmatprep.subr.bf16.mxu0 0
      %2211 = vmatpush1.bf16.xpose.msra.mxu0 0
      %2212 = vmatprep.subr.bf16.mxu0 0
      %2213 = vmatpush1.bf16.xpose.msra.mxu0 0
      %2214 = vmatprep.subr.bf16.mxu0 0
      %2215 = vmatpush1.bf16.xpose.msra.mxu0 0
      %2216 = vmatprep.subr.bf16.mxu0 0
      %2217 = vmatpush1.bf16.xpose.msra.mxu0 0
      %2218 = vmatprep.subr.bf16.mxu0 0
      %2219 = vmatpush1.bf16.xpose.msra.mxu0 0
      %2220 = vmatprep.mubr.bf16.mxu0 0
      %2221 = vmatmul.mubr.bf16.gmra.mrb[0].mxu0 %v2183
      %v2222 = vpop.f32.mrb[0].mxu0
      %v2223 = vadd.f32 0.0, %v2222
      %v2224 = vpop.f32.mrb[0].mxu0
      %v2225 = vpop.f32.mrb[0].mxu0
      %v2226 = vpop.f32.mrb[0].mxu0
      %2227 = vdwg.mxu0
      %2228 = vrot.lane.b32.xlu0 %v745, 104
      %v2229 = vpop.permute.xlu0 %2228
      %2230 = vrot.lane.b32.xlu0 %v745, 72
      %v2231 = vpop.permute.xlu0 %2230
      %v2233 = vsel %vm749, %v2229, 0
      %v2236 = vsel %vm749, %v2231, 0
      %2238 = vmatprep.subr.bf16.mxu0 0
      %2239 = vmatpush1.bf16.xpose.msra.mxu0 %v2236
      %2240 = vmatprep.subr.bf16.mxu0 0
      %2241 = vmatpush1.bf16.xpose.msra.mxu0 0
      %2242 = vmatprep.subr.bf16.mxu0 0
      %2243 = vmatpush1.bf16.xpose.msra.mxu0 0
      %2244 = vmatprep.subr.bf16.mxu0 0
      %2245 = vmatpush1.bf16.xpose.msra.mxu0 0
      %2246 = vmatprep.subr.bf16.mxu0 0
      %2247 = vmatpush1.bf16.xpose.msra.mxu0 0
      %2248 = vmatprep.subr.bf16.mxu0 0
      %2249 = vmatpush1.bf16.xpose.msra.mxu0 0
      %2250 = vmatprep.subr.bf16.mxu0 0
      %2251 = vmatpush1.bf16.xpose.msra.mxu0 0
      %2252 = vmatprep.subr.bf16.mxu0 0
      %2253 = vmatpush1.bf16.xpose.msra.mxu0 0
      %2254 = vmatprep.subr.bf16.mxu0 0
      %2255 = vmatpush1.bf16.xpose.msra.mxu0 0
      %2256 = vmatprep.subr.bf16.mxu0 0
      %2257 = vmatpush1.bf16.xpose.msra.mxu0 0
      %2258 = vmatprep.subr.bf16.mxu0 0
      %2259 = vmatpush1.bf16.xpose.msra.mxu0 0
      %2260 = vmatprep.subr.bf16.mxu0 0
      %2261 = vmatpush1.bf16.xpose.msra.mxu0 0
      %2262 = vmatprep.subr.bf16.mxu0 0
      %2263 = vmatpush1.bf16.xpose.msra.mxu0 0
      %2264 = vmatprep.subr.bf16.mxu0 0
      %2265 = vmatpush1.bf16.xpose.msra.mxu0 0
      %2266 = vmatprep.subr.bf16.mxu0 0
      %2267 = vmatpush1.bf16.xpose.msra.mxu0 0
      %2268 = vmatprep.subr.bf16.mxu0 0
      %2269 = vmatpush1.bf16.xpose.msra.mxu0 0
      %2270 = vmatprep.mubr.bf16.mxu0 0
      %2271 = vmatmul.mubr.bf16.gmra.mrb[0].mxu0 %v2233
      %v2272 = vpop.f32.mrb[0].mxu0
      %v2273 = vadd.f32 0.0, %v2272
      %v2274 = vpop.f32.mrb[0].mxu0
      %v2275 = vpop.f32.mrb[0].mxu0
      %v2276 = vpop.f32.mrb[0].mxu0
      %2277 = vdwg.mxu0
      %v2278 = vmul.f32 %v2123, 0.35355338
      %v2279 = vmul.f32 %v2173, 0.35355338
      %v2280 = vmul.f32 %v2223, 0.35355338
      %v2281 = vmul.f32 %v2273, 0.35355338
      %v2282 = vsel %vm947, %v2278, -inf
      %2283 = vmax.xlane.f32.xlu0 %v2282
      %v2284 = vpop.xlane.xlu0 %2283
      %v2285 = vsel %vm947, %v2279, -inf
      %2286 = vmax.xlane.f32.xlu0 %v2285
      %v2287 = vpop.xlane.xlu0 %2286
      %v2288 = vsel %vm947, %v2280, -inf
      %2289 = vmax.xlane.f32.xlu0 %v2288
      %v2290 = vpop.xlane.xlu0 %2289
      %v2291 = vsel %vm947, %v2281, -inf
      %2292 = vmax.xlane.f32.xlu0 %v2291
      %v2293 = vpop.xlane.xlu0 %2292
      %v2294 = vsub.f32 %v2278, %v2284
      %v2295 = vsub.f32 %v2279, %v2287
      %v2296 = vsub.f32 %v2280, %v2290
      %v2297 = vsub.f32 %v2281, %v2293
      %v2298 = vmul.f32 %v2294, 1.442695
      %v2299 = vpow.pop %v2298
      %v2300 = vmul.f32 %v2295, 1.442695
      %v2301 = vpow.pop %v2300
      %v2302 = vmul.f32 %v2296, 1.442695
      %v2303 = vpow.pop %v2302
      %v2304 = vmul.f32 %v2297, 1.442695
      %v2305 = vpow.pop %v2304
      %v2306 = vsel %vm947, %v2299, 0.0
      %2307 = vadd.xlane.f32.xlu0 %v2306
      %v2308 = vpop.xlane.xlu0 %2307
      %v2309 = vsel %vm947, %v2301, 0.0
      %2310 = vadd.xlane.f32.xlu0 %v2309
      %v2311 = vpop.xlane.xlu0 %2310
      %v2312 = vsel %vm947, %v2303, 0.0
      %2313 = vadd.xlane.f32.xlu0 %v2312
      %v2314 = vpop.xlane.xlu0 %2313
      %v2315 = vsel %vm947, %v2305, 0.0
      %2316 = vadd.xlane.f32.xlu0 %v2315
      %v2317 = vpop.xlane.xlu0 %2316
      %v2318 = vrcp.pop %v2308
      %v2319 = vrcp.pop %v2311
      %v2320 = vrcp.pop %v2314
      %v2321 = vrcp.pop %v2317
      %v2322 = vmul.f32 %v2299, %v2318
      %v2323 = vmul.f32 %v2301, %v2319
      %v2324 = vmul.f32 %v2303, %v2320
      %v2325 = vmul.f32 %v2305, %v2321
      %v2326 = vpack.c.bf16 %v2322, %v2322
      %v2327 = vpack.c.bf16 %v2323, %v2323
      %v2328 = vpack.c.bf16 %v2324, %v2324
      %v2329 = vpack.c.bf16 %v2325, %v2325
      %2330 = vrot.lane.b32.xlu0 %v742, 40
      %v2331 = vpop.permute.xlu0 %2330
      %v2333 = vsel %vm998, %v2326, 0
      %v2336 = vsel %vm1002, %v2331, 0
      %2338 = vmatprep.subr.bf16.mxu0 0
      %2339 = vmatpush1.bf16.msra.mxu0 %v2336
      %2340 = vmatprep.subr.bf16.mxu0 0
      %2341 = vmatpush1.bf16.msra.mxu0 0
      %2342 = vmatprep.subr.bf16.mxu0 0
      %2343 = vmatpush1.bf16.msra.mxu0 0
      %2344 = vmatprep.subr.bf16.mxu0 0
      %2345 = vmatpush1.bf16.msra.mxu0 0
      %2346 = vmatprep.subr.bf16.mxu0 0
      %2347 = vmatpush1.bf16.msra.mxu0 0
      %2348 = vmatprep.subr.bf16.mxu0 0
      %2349 = vmatpush1.bf16.msra.mxu0 0
      %2350 = vmatprep.subr.bf16.mxu0 0
      %2351 = vmatpush1.bf16.msra.mxu0 0
      %2352 = vmatprep.subr.bf16.mxu0 0
      %2353 = vmatpush1.bf16.msra.mxu0 0
      %2354 = vmatprep.subr.bf16.mxu0 0
      %2355 = vmatpush1.bf16.msra.mxu0 0
      %2356 = vmatprep.subr.bf16.mxu0 0
      %2357 = vmatpush1.bf16.msra.mxu0 0
      %2358 = vmatprep.subr.bf16.mxu0 0
      %2359 = vmatpush1.bf16.msra.mxu0 0
      %2360 = vmatprep.subr.bf16.mxu0 0
      %2361 = vmatpush1.bf16.msra.mxu0 0
      %2362 = vmatprep.subr.bf16.mxu0 0
      %2363 = vmatpush1.bf16.msra.mxu0 0
      %2364 = vmatprep.subr.bf16.mxu0 0
      %2365 = vmatpush1.bf16.msra.mxu0 0
      %2366 = vmatprep.subr.bf16.mxu0 0
      %2367 = vmatpush1.bf16.msra.mxu0 0
      %2368 = vmatprep.subr.bf16.mxu0 0
      %2369 = vmatpush1.bf16.msra.mxu0 0
      %2370 = vmatprep.mubr.bf16.mxu0 0
      %2371 = vmatmul.mubr.bf16.gmra.mrb[0].mxu0 %v2333
      %v2372 = vpop.f32.mrb[0].mxu0
      %v2373 = vadd.f32 0.0, %v2372
      %v2374 = vpop.f32.mrb[0].mxu0
      %v2375 = vpop.f32.mrb[0].mxu0
      %v2376 = vpop.f32.mrb[0].mxu0
      %2377 = vdwg.mxu0
      %2378 = vrot.lane.b32.xlu0 %v743, 40
      %v2379 = vpop.permute.xlu0 %2378
      %v2381 = vsel %vm998, %v2327, 0
      %v2384 = vsel %vm1002, %v2379, 0
      %2386 = vmatprep.subr.bf16.mxu0 0
      %2387 = vmatpush1.bf16.msra.mxu0 %v2384
      %2388 = vmatprep.subr.bf16.mxu0 0
      %2389 = vmatpush1.bf16.msra.mxu0 0
      %2390 = vmatprep.subr.bf16.mxu0 0
      %2391 = vmatpush1.bf16.msra.mxu0 0
      %2392 = vmatprep.subr.bf16.mxu0 0
      %2393 = vmatpush1.bf16.msra.mxu0 0
      %2394 = vmatprep.subr.bf16.mxu0 0
      %2395 = vmatpush1.bf16.msra.mxu0 0
      %2396 = vmatprep.subr.bf16.mxu0 0
      %2397 = vmatpush1.bf16.msra.mxu0 0
      %2398 = vmatprep.subr.bf16.mxu0 0
      %2399 = vmatpush1.bf16.msra.mxu0 0
      %2400 = vmatprep.subr.bf16.mxu0 0
      %2401 = vmatpush1.bf16.msra.mxu0 0
      %2402 = vmatprep.subr.bf16.mxu0 0
      %2403 = vmatpush1.bf16.msra.mxu0 0
      %2404 = vmatprep.subr.bf16.mxu0 0
      %2405 = vmatpush1.bf16.msra.mxu0 0
      %2406 = vmatprep.subr.bf16.mxu0 0
      %2407 = vmatpush1.bf16.msra.mxu0 0
      %2408 = vmatprep.subr.bf16.mxu0 0
      %2409 = vmatpush1.bf16.msra.mxu0 0
      %2410 = vmatprep.subr.bf16.mxu0 0
      %2411 = vmatpush1.bf16.msra.mxu0 0
      %2412 = vmatprep.subr.bf16.mxu0 0
      %2413 = vmatpush1.bf16.msra.mxu0 0
      %2414 = vmatprep.subr.bf16.mxu0 0
      %2415 = vmatpush1.bf16.msra.mxu0 0
      %2416 = vmatprep.subr.bf16.mxu0 0
      %2417 = vmatpush1.bf16.msra.mxu0 0
      %2418 = vmatprep.mubr.bf16.mxu0 0
      %2419 = vmatmul.mubr.bf16.gmra.mrb[0].mxu0 %v2381
      %v2420 = vpop.f32.mrb[0].mxu0
      %v2421 = vadd.f32 0.0, %v2420
      %v2422 = vpop.f32.mrb[0].mxu0
      %v2423 = vpop.f32.mrb[0].mxu0
      %v2424 = vpop.f32.mrb[0].mxu0
      %2425 = vdwg.mxu0
      %2426 = vrot.lane.b32.xlu0 %v744, 40
      %v2427 = vpop.permute.xlu0 %2426
      %v2429 = vsel %vm998, %v2328, 0
      %v2432 = vsel %vm1002, %v2427, 0
      %2434 = vmatprep.subr.bf16.mxu0 0
      %2435 = vmatpush1.bf16.msra.mxu0 %v2432
      %2436 = vmatprep.subr.bf16.mxu0 0
      %2437 = vmatpush1.bf16.msra.mxu0 0
      %2438 = vmatprep.subr.bf16.mxu0 0
      %2439 = vmatpush1.bf16.msra.mxu0 0
      %2440 = vmatprep.subr.bf16.mxu0 0
      %2441 = vmatpush1.bf16.msra.mxu0 0
      %2442 = vmatprep.subr.bf16.mxu0 0
      %2443 = vmatpush1.bf16.msra.mxu0 0
      %2444 = vmatprep.subr.bf16.mxu0 0
      %2445 = vmatpush1.bf16.msra.mxu0 0
      %2446 = vmatprep.subr.bf16.mxu0 0
      %2447 = vmatpush1.bf16.msra.mxu0 0
      %2448 = vmatprep.subr.bf16.mxu0 0
      %2449 = vmatpush1.bf16.msra.mxu0 0
      %2450 = vmatprep.subr.bf16.mxu0 0
      %2451 = vmatpush1.bf16.msra.mxu0 0
      %2452 = vmatprep.subr.bf16.mxu0 0
      %2453 = vmatpush1.bf16.msra.mxu0 0
      %2454 = vmatprep.subr.bf16.mxu0 0
      %2455 = vmatpush1.bf16.msra.mxu0 0
      %2456 = vmatprep.subr.bf16.mxu0 0
      %2457 = vmatpush1.bf16.msra.mxu0 0
      %2458 = vmatprep.subr.bf16.mxu0 0
      %2459 = vmatpush1.bf16.msra.mxu0 0
      %2460 = vmatprep.subr.bf16.mxu0 0
      %2461 = vmatpush1.bf16.msra.mxu0 0
      %2462 = vmatprep.subr.bf16.mxu0 0
      %2463 = vmatpush1.bf16.msra.mxu0 0
      %2464 = vmatprep.subr.bf16.mxu0 0
      %2465 = vmatpush1.bf16.msra.mxu0 0
      %2466 = vmatprep.mubr.bf16.mxu0 0
      %2467 = vmatmul.mubr.bf16.gmra.mrb[0].mxu0 %v2429
      %v2468 = vpop.f32.mrb[0].mxu0
      %v2469 = vadd.f32 0.0, %v2468
      %v2470 = vpop.f32.mrb[0].mxu0
      %v2471 = vpop.f32.mrb[0].mxu0
      %v2472 = vpop.f32.mrb[0].mxu0
      %2473 = vdwg.mxu0
      %2474 = vrot.lane.b32.xlu0 %v745, 40
      %v2475 = vpop.permute.xlu0 %2474
      %v2477 = vsel %vm998, %v2329, 0
      %v2480 = vsel %vm1002, %v2475, 0
      %2482 = vmatprep.subr.bf16.mxu0 0
      %2483 = vmatpush1.bf16.msra.mxu0 %v2480
      %2484 = vmatprep.subr.bf16.mxu0 0
      %2485 = vmatpush1.bf16.msra.mxu0 0
      %2486 = vmatprep.subr.bf16.mxu0 0
      %2487 = vmatpush1.bf16.msra.mxu0 0
      %2488 = vmatprep.subr.bf16.mxu0 0
      %2489 = vmatpush1.bf16.msra.mxu0 0
      %2490 = vmatprep.subr.bf16.mxu0 0
      %2491 = vmatpush1.bf16.msra.mxu0 0
      %2492 = vmatprep.subr.bf16.mxu0 0
      %2493 = vmatpush1.bf16.msra.mxu0 0
      %2494 = vmatprep.subr.bf16.mxu0 0
      %2495 = vmatpush1.bf16.msra.mxu0 0
      %2496 = vmatprep.subr.bf16.mxu0 0
      %2497 = vmatpush1.bf16.msra.mxu0 0
      %2498 = vmatprep.subr.bf16.mxu0 0
      %2499 = vmatpush1.bf16.msra.mxu0 0
      %2500 = vmatprep.subr.bf16.mxu0 0
      %2501 = vmatpush1.bf16.msra.mxu0 0
      %2502 = vmatprep.subr.bf16.mxu0 0
      %2503 = vmatpush1.bf16.msra.mxu0 0
      %2504 = vmatprep.subr.bf16.mxu0 0
      %2505 = vmatpush1.bf16.msra.mxu0 0
      %2506 = vmatprep.subr.bf16.mxu0 0
      %2507 = vmatpush1.bf16.msra.mxu0 0
      %2508 = vmatprep.subr.bf16.mxu0 0
      %2509 = vmatpush1.bf16.msra.mxu0 0
      %2510 = vmatprep.subr.bf16.mxu0 0
      %2511 = vmatpush1.bf16.msra.mxu0 0
      %2512 = vmatprep.subr.bf16.mxu0 0
      %2513 = vmatpush1.bf16.msra.mxu0 0
      %2514 = vmatprep.mubr.bf16.mxu0 0
      %2515 = vmatmul.mubr.bf16.gmra.mrb[0].mxu0 %v2477
      %v2516 = vpop.f32.mrb[0].mxu0
      %v2517 = vadd.f32 0.0, %v2516
      %v2518 = vpop.f32.mrb[0].mxu0
      %v2519 = vpop.f32.mrb[0].mxu0
      %v2520 = vpop.f32.mrb[0].mxu0
      %2521 = vdwg.mxu0
      %v2526 = vcombine.low %v1041, %v1089
      %v2527 = vcombine.low %v1137, %v1185
      %v2534 = vcombine.low %v1485, %v1533
      %v2535 = vcombine.low %v1581, %v1629
      %2536 = vrot.lane.b32.xlu0 %v2534, 8
      %v2537 = vpop.permute.xlu0 %2536
      %2538 = vrot.lane.b32.xlu0 %v2535, 8
      %v2539 = vpop.permute.xlu0 %2538
      %v2546 = vcombine.low %v1929, %v1977
      %v2547 = vcombine.low %v2025, %v2073
      %2548 = vrot.lane.b32.xlu0 %v2546, 16
      %v2549 = vpop.permute.xlu0 %2548
      %2550 = vrot.lane.b32.xlu0 %v2547, 16
      %v2551 = vpop.permute.xlu0 %2550
      %v2558 = vcombine.low %v2373, %v2421
      %v2559 = vcombine.low %v2469, %v2517
      %2560 = vrot.lane.b32.xlu0 %v2558, 24
      %v2561 = vpop.permute.xlu0 %2560
      %2562 = vrot.lane.b32.xlu0 %v2559, 24
      %v2563 = vpop.permute.xlu0 %2562
      %v2566 = vsel %vm749, %v2526, %v2537
      %v2567 = vsel %vm749, %v2527, %v2539
      %vm2568 = vcmask 130048
      %v2569 = vsel %vm2568, %v2566, %v2549
      %v2570 = vsel %vm2568, %v2567, %v2551
      %vm2571 = vcmask 195584
      %v2572 = vsel %vm2571, %v2569, %v2561
      %v2573 = vsel %vm2571, %v2570, %v2563
      %v2574 = vpack.c.bf16 %v2573, %v2572
      %v2575 = vld [vmem:[%s7] sm:$0xf]
      %v2576 = vld [vmem:[%s7 + $0x4] sm:$0xf]
      %v2577 = vld [vmem:[%s7 + $0x8] sm:$0xf]
      %v2578 = vld [vmem:[%s7 + $0xc] sm:$0xf]
      %v2579 = vld [vmem:[%s8] sm:$0x1]
      %v2581 = vlaneseq
      %v2582 = vshrl.u32 %v2581, 7
      %v2583 = vsub.s32 0, %v2582
      %v2584 = vrot.slane %v2579, %v2583
      %v2590 = vunpack.c.l.b16 %v2575
      %v2591 = vunpack.c.l.b16 %v2576
      %v2592 = vunpack.c.l.b16 %v2577
      %v2593 = vunpack.c.l.b16 %v2578
      %v2594 = vpack.c.b16 %v2591, %v2590
      %v2595 = vpack.c.b16 %v2593, %v2592
      %v2599 = vsel %vm622, %v2574, 0
      %2601 = vmatprep.subr.bf16.mxu0 0
      %2602 = vmatpush1.bf16.msra.mxu0 %v2594
      %2603 = vmatprep.subr.bf16.mxu0 0
      %2604 = vmatpush1.bf16.msra.mxu0 %v2595
      %2605 = vmatprep.subr.bf16.mxu0 0
      %2606 = vmatpush1.bf16.msra.mxu0 0
      %2607 = vmatprep.subr.bf16.mxu0 0
      %2608 = vmatpush1.bf16.msra.mxu0 0
      %2609 = vmatprep.subr.bf16.mxu0 0
      %2610 = vmatpush1.bf16.msra.mxu0 0
      %2611 = vmatprep.subr.bf16.mxu0 0
      %2612 = vmatpush1.bf16.msra.mxu0 0
      %2613 = vmatprep.subr.bf16.mxu0 0
      %2614 = vmatpush1.bf16.msra.mxu0 0
      %2615 = vmatprep.subr.bf16.mxu0 0
      %2616 = vmatpush1.bf16.msra.mxu0 0
      %2617 = vmatprep.subr.bf16.mxu0 0
      %2618 = vmatpush1.bf16.msra.mxu0 0
      %2619 = vmatprep.subr.bf16.mxu0 0
      %2620 = vmatpush1.bf16.msra.mxu0 0
      %2621 = vmatprep.subr.bf16.mxu0 0
      %2622 = vmatpush1.bf16.msra.mxu0 0
      %2623 = vmatprep.subr.bf16.mxu0 0
      %2624 = vmatpush1.bf16.msra.mxu0 0
      %2625 = vmatprep.subr.bf16.mxu0 0
      %2626 = vmatpush1.bf16.msra.mxu0 0
      %2627 = vmatprep.subr.bf16.mxu0 0
      %2628 = vmatpush1.bf16.msra.mxu0 0
      %2629 = vmatprep.subr.bf16.mxu0 0
      %2630 = vmatpush1.bf16.msra.mxu0 0
      %2631 = vmatprep.subr.bf16.mxu0 0
      %2632 = vmatpush1.bf16.msra.mxu0 0
      %2633 = vmatprep.mubr.bf16.mxu0 0
      %2634 = vmatmul.mubr.bf16.gmra.mrb[0].mxu0 %v2599
      %v2635 = vpop.f32.mrb[0].mxu0
      %v2636 = vadd.f32 %v2584, %v2635
      %v2637 = vpop.f32.mrb[0].mxu0
      %v2638 = vpop.f32.mrb[0].mxu0
      %v2639 = vadd.f32 %v2584, %v2638
      %v2640 = vpop.f32.mrb[0].mxu0
      %2641 = vdwg.mxu0
      %v2642 = vadd.f32 %v616, %v2636
      %v2643 = vadd.f32 %v619, %v2639
      %v2644 = vsel %vm622, %v2642, 0.0
      %2645 = vadd.xlane.f32.xlu0 %v2644
      %v2646 = vpop.xlane.xlu0 %2645
      %v2647 = vsel %vm622, %v2643, 0.0
      %2648 = vadd.xlane.f32.xlu0 %v2647
      %v2649 = vpop.xlane.xlu0 %2648
      %v2650 = vmul.f32 %v2646, %v629
      %v2651 = vmul.f32 %v2649, %v629
      %v2652 = vsub.f32 %v2642, %v2650
      %v2653 = vsub.f32 %v2643, %v2651
      %v2654 = vmul.f32 %v2652, %v2652
      %v2655 = vmul.f32 %v2653, %v2653
      %v2656 = vsel %vm622, %v2654, 0.0
      %2657 = vadd.xlane.f32.xlu0 %v2656
      %v2658 = vpop.xlane.xlu0 %2657
      %v2659 = vsel %vm622, %v2655, 0.0
      %2660 = vadd.xlane.f32.xlu0 %v2659
      %v2661 = vpop.xlane.xlu0 %2660
      %v2662 = vmul.f32 %v2658, %v629
      %v2663 = vmul.f32 %v2661, %v629
      %v2664 = vadd.f32 %v2662, 1e-05
      %v2665 = vadd.f32 %v2663, 1e-05
      %v2666 = vrsqrt.pop %v2664
      %v2667 = vrsqrt.pop %v2665
      %v2668 = vmul.f32 %v2652, %v2666
      %v2669 = vmul.f32 %v2653, %v2667
      %v2670 = vld [vmem:[%s9] sm:$0x1]
      %v2672 = vlaneseq
      %v2673 = vshrl.u32 %v2672, 7
      %v2674 = vsub.s32 0, %v2673
      %v2675 = vrot.slane %v2670, %v2674
      %v2677 = vmul.f32 %v2668, %v2675
      %v2678 = vmul.f32 %v2669, %v2675
      %v2679 = vld [vmem:[%s10] sm:$0x1]
      %v2681 = vlaneseq
      %v2682 = vshrl.u32 %v2681, 7
      %v2683 = vsub.s32 0, %v2682
      %v2684 = vrot.slane %v2679, %v2683
      %v2686 = vadd.f32 %v2677, %v2684
      %v2687 = vadd.f32 %v2678, %v2684
      %v2688 = vpack.c.bf16 %v2687, %v2686
      %v2689 = vld [vmem:[%s11] sm:$0xf]
      %v2690 = vld [vmem:[%s11 + $0x4] sm:$0xf]
      %v2691 = vld [vmem:[%s11 + $0x8] sm:$0xf]
      %v2692 = vld [vmem:[%s11 + $0xc] sm:$0xf]
      %v2693 = vld [vmem:[%s12] sm:$0x1]
      %v2695 = vlaneseq
      %v2696 = vshrl.u32 %v2695, 7
      %v2697 = vsub.s32 0, %v2696
      %v2698 = vrot.slane %v2693, %v2697
      %v2704 = vunpack.c.l.b16 %v2689
      %v2705 = vunpack.c.l.b16 %v2690
      %v2706 = vunpack.c.l.b16 %v2691
      %v2707 = vunpack.c.l.b16 %v2692
      %v2708 = vpack.c.b16 %v2705, %v2704
      %v2709 = vpack.c.b16 %v2707, %v2706
      %v2713 = vsel %vm622, %v2688, 0
      %2715 = vmatprep.subr.bf16.mxu0 0
      %2716 = vmatpush1.bf16.msra.mxu0 %v2708
      %2717 = vmatprep.subr.bf16.mxu0 0
      %2718 = vmatpush1.bf16.msra.mxu0 %v2709
      %2719 = vmatprep.subr.bf16.mxu0 0
      %2720 = vmatpush1.bf16.msra.mxu0 0
      %2721 = vmatprep.subr.bf16.mxu0 0
      %2722 = vmatpush1.bf16.msra.mxu0 0
      %2723 = vmatprep.subr.bf16.mxu0 0
      %2724 = vmatpush1.bf16.msra.mxu0 0
      %2725 = vmatprep.subr.bf16.mxu0 0
      %2726 = vmatpush1.bf16.msra.mxu0 0
      %2727 = vmatprep.subr.bf16.mxu0 0
      %2728 = vmatpush1.bf16.msra.mxu0 0
      %2729 = vmatprep.subr.bf16.mxu0 0
      %2730 = vmatpush1.bf16.msra.mxu0 0
      %2731 = vmatprep.subr.bf16.mxu0 0
      %2732 = vmatpush1.bf16.msra.mxu0 0
      %2733 = vmatprep.subr.bf16.mxu0 0
      %2734 = vmatpush1.bf16.msra.mxu0 0
      %2735 = vmatprep.subr.bf16.mxu0 0
      %2736 = vmatpush1.bf16.msra.mxu0 0
      %2737 = vmatprep.subr.bf16.mxu0 0
      %2738 = vmatpush1.bf16.msra.mxu0 0
      %2739 = vmatprep.subr.bf16.mxu0 0
      %2740 = vmatpush1.bf16.msra.mxu0 0
      %2741 = vmatprep.subr.bf16.mxu0 0
      %2742 = vmatpush1.bf16.msra.mxu0 0
      %2743 = vmatprep.subr.bf16.mxu0 0
      %2744 = vmatpush1.bf16.msra.mxu0 0
      %2745 = vmatprep.subr.bf16.mxu0 0
      %2746 = vmatpush1.bf16.msra.mxu0 0
      %2747 = vmatprep.mubr.bf16.mxu0 0
      %2748 = vmatmul.mubr.bf16.gmra.mrb[0].mxu0 %v2713
      %v2749 = vpop.f32.mrb[0].mxu0
      %v2750 = vadd.f32 %v2698, %v2749
      %v2751 = vpop.f32.mrb[0].mxu0
      %v2752 = vpop.f32.mrb[0].mxu0
      %v2753 = vadd.f32 %v2698, %v2752
      %v2754 = vpop.f32.mrb[0].mxu0
      %2755 = vdwg.mxu0
      %v2756 = vmul.f32 %v2750, %v2750
      %v2757 = vmul.f32 %v2753, %v2753
      %v2758 = vmul.f32 %v2750, %v2756
      %v2759 = vmul.f32 %v2753, %v2757
      %v2760 = vmul.f32 %v2758, 0.044715
      %v2761 = vmul.f32 %v2759, 0.044715
      %v2762 = vadd.f32 %v2750, %v2760
      %v2763 = vadd.f32 %v2753, %v2761
      %v2764 = vmul.f32 %v2762, 0.7978846
      %v2765 = vmul.f32 %v2763, 0.7978846
      %v2766 = vtanh.pop %v2764
      %v2767 = vtanh.pop %v2765
      %v2768 = vadd.f32 %v2766, 1.0
      %v2769 = vadd.f32 %v2767, 1.0
      %v2770 = vmul.f32 %v2768, 0.5
      %v2771 = vmul.f32 %v2769, 0.5
      %v2772 = vmul.f32 %v2750, %v2770
      %v2773 = vmul.f32 %v2753, %v2771
      %v2774 = vpack.c.bf16 %v2773, %v2772
      %v2775 = vld [vmem:[%s13] sm:$0xf]
      %v2776 = vld [vmem:[%s13 + $0x4] sm:$0xf]
      %v2777 = vld [vmem:[%s13 + $0x8] sm:$0xf]
      %v2778 = vld [vmem:[%s13 + $0xc] sm:$0xf]
      %v2779 = vld [vmem:[%s13 + $0x10] sm:$0xf]
      %v2780 = vld [vmem:[%s13 + $0x14] sm:$0xf]
      %v2781 = vld [vmem:[%s13 + $0x18] sm:$0xf]
      %v2782 = vld [vmem:[%s13 + $0x1c] sm:$0xf]
      %v2783 = vld [vmem:[%s14] sm:$0x1]
      %v2785 = vlaneseq
      %v2786 = vshrl.u32 %v2785, 7
      %v2787 = vsub.s32 0, %v2786
      %v2788 = vrot.slane %v2783, %v2787
      %v2798 = vunpack.c.l.b16 %v2775
      %v2799 = vunpack.c.l.b16 %v2776
      %v2800 = vunpack.c.l.b16 %v2777
      %v2801 = vunpack.c.l.b16 %v2778
      %v2802 = vunpack.c.l.b16 %v2779
      %v2803 = vunpack.c.l.b16 %v2780
      %v2804 = vunpack.c.l.b16 %v2781
      %v2805 = vunpack.c.l.b16 %v2782
      %v2806 = vpack.c.b16 %v2799, %v2798
      %v2807 = vpack.c.b16 %v2801, %v2800
      %v2808 = vpack.c.b16 %v2803, %v2802
      %v2809 = vpack.c.b16 %v2805, %v2804
      %vm2814 = vcmask 523264
      %v2816 = vsel %vm2814, %v2774, 0
      %2818 = vmatprep.subr.bf16.mxu0 0
      %2819 = vmatpush1.bf16.msra.mxu0 %v2806
      %2820 = vmatprep.subr.bf16.mxu0 0
      %2821 = vmatpush1.bf16.msra.mxu0 %v2807
      %2822 = vmatprep.subr.bf16.mxu0 0
      %2823 = vmatpush1.bf16.msra.mxu0 %v2808
      %2824 = vmatprep.subr.bf16.mxu0 0
      %2825 = vmatpush1.bf16.msra.mxu0 %v2809
      %2826 = vmatprep.subr.bf16.mxu0 0
      %2827 = vmatpush1.bf16.msra.mxu0 0
      %2828 = vmatprep.subr.bf16.mxu0 0
      %2829 = vmatpush1.bf16.msra.mxu0 0
      %2830 = vmatprep.subr.bf16.mxu0 0
      %2831 = vmatpush1.bf16.msra.mxu0 0
      %2832 = vmatprep.subr.bf16.mxu0 0
      %2833 = vmatpush1.bf16.msra.mxu0 0
      %2834 = vmatprep.subr.bf16.mxu0 0
      %2835 = vmatpush1.bf16.msra.mxu0 0
      %2836 = vmatprep.subr.bf16.mxu0 0
      %2837 = vmatpush1.bf16.msra.mxu0 0
      %2838 = vmatprep.subr.bf16.mxu0 0
      %2839 = vmatpush1.bf16.msra.mxu0 0
      %2840 = vmatprep.subr.bf16.mxu0 0
      %2841 = vmatpush1.bf16.msra.mxu0 0
      %2842 = vmatprep.subr.bf16.mxu0 0
      %2843 = vmatpush1.bf16.msra.mxu0 0
      %2844 = vmatprep.subr.bf16.mxu0 0
      %2845 = vmatpush1.bf16.msra.mxu0 0
      %2846 = vmatprep.subr.bf16.mxu0 0
      %2847 = vmatpush1.bf16.msra.mxu0 0
      %2848 = vmatprep.subr.bf16.mxu0 0
      %2849 = vmatpush1.bf16.msra.mxu0 0
      %2850 = vmatprep.mubr.bf16.mxu0 0
      %2851 = vmatmul.mubr.bf16.gmra.mrb[0].mxu0 %v2816
      %v2852 = vpop.f32.mrb[0].mxu0
      %v2853 = vadd.f32 %v2788, %v2852
      %v2854 = vpop.f32.mrb[0].mxu0
      %v2855 = vpop.f32.mrb[0].mxu0
      %v2856 = vadd.f32 %v2788, %v2855
      %v2857 = vpop.f32.mrb[0].mxu0
      %2858 = vdwg.mxu0
      %v2859 = vadd.f32 %v2642, %v2853
      %v2860 = vadd.f32 %v2643, %v2856
      %v2861 = vpack.c.bf16 %v2860, %v2859
      %v2862 = vld [vmem:[%s15] sm:$0xf]
      %v2863 = vld [vmem:[%s15 + $0x4] sm:$0xf]
      %v2864 = vld [vmem:[%s15 + $0x8] sm:$0xf]
      %v2865 = vld [vmem:[%s15 + $0xc] sm:$0xf]
      %v2866 = vld [vmem:[%s16] sm:$0x1]
      %v2868 = vlaneseq
      %v2869 = vshrl.u32 %v2868, 7
      %v2870 = vsub.s32 0, %v2869
      %v2871 = vrot.slane %v2866, %v2870
      %v2877 = vunpack.c.l.b16 %v2862
      %v2878 = vunpack.c.l.b16 %v2863
      %v2879 = vunpack.c.l.b16 %v2864
      %v2880 = vunpack.c.l.b16 %v2865
      %v2881 = vpack.c.b16 %v2878, %v2877
      %v2882 = vpack.c.b16 %v2880, %v2879
      %v2886 = vsel %vm622, %v2861, 0
      %2888 = vmatprep.subr.bf16.mxu0 0
      %2889 = vmatpush1.bf16.msra.mxu0 %v2881
      %2890 = vmatprep.subr.bf16.mxu0 0
      %2891 = vmatpush1.bf16.msra.mxu0 %v2882
      %2892 = vmatprep.subr.bf16.mxu0 0
      %2893 = vmatpush1.bf16.msra.mxu0 0
      %2894 = vmatprep.subr.bf16.mxu0 0
      %2895 = vmatpush1.bf16.msra.mxu0 0
      %2896 = vmatprep.subr.bf16.mxu0 0
      %2897 = vmatpush1.bf16.msra.mxu0 0
      %2898 = vmatprep.subr.bf16.mxu0 0
      %2899 = vmatpush1.bf16.msra.mxu0 0
      %2900 = vmatprep.subr.bf16.mxu0 0
      %2901 = vmatpush1.bf16.msra.mxu0 0
      %2902 = vmatprep.subr.bf16.mxu0 0
      %2903 = vmatpush1.bf16.msra.mxu0 0
      %2904 = vmatprep.subr.bf16.mxu0 0
      %2905 = vmatpush1.bf16.msra.mxu0 0
      %2906 = vmatprep.subr.bf16.mxu0 0
      %2907 = vmatpush1.bf16.msra.mxu0 0
      %2908 = vmatprep.subr.bf16.mxu0 0
      %2909 = vmatpush1.bf16.msra.mxu0 0
      %2910 = vmatprep.subr.bf16.mxu0 0
      %2911 = vmatpush1.bf16.msra.mxu0 0
      %2912 = vmatprep.subr.bf16.mxu0 0
      %2913 = vmatpush1.bf16.msra.mxu0 0
      %2914 = vmatprep.subr.bf16.mxu0 0
      %2915 = vmatpush1.bf16.msra.mxu0 0
      %2916 = vmatprep.subr.bf16.mxu0 0
      %2917 = vmatpush1.bf16.msra.mxu0 0
      %2918 = vmatprep.subr.bf16.mxu0 0
      %2919 = vmatpush1.bf16.msra.mxu0 0
      %2920 = vmatprep.mubr.bf16.mxu0 0
      %2921 = vmatmul.mubr.bf16.gmra.mrb[0].mxu0 %v2886
      %v2922 = vpop.f32.mrb[0].mxu0
      %v2923 = vadd.f32 %v2871, %v2922
      %v2924 = vpop.f32.mrb[0].mxu0
      %v2925 = vpop.f32.mrb[0].mxu0
      %v2926 = vadd.f32 %v2871, %v2925
      %v2927 = vpop.f32.mrb[0].mxu0
      %2928 = vdwg.mxu0
      %2929 = vst.msk [vmem:[%s550] sm:$0xff] %vm570, %v2923
      %2930 = vst.msk [vmem:[%s550 + $0x8] sm:$0xff] %vm570, %v2926
      %s2931 = smul.u32 2, %s28
      %p2932 = scmp.lt.s32.totalorder %s2931, 3
      %s2933 = scalar_select %p2932, %s2931, 3
      %s2934 = smul.addr %s2933, 8
      %s2935 = scalar_lea.vmem %s17, %s2934
      // Predicated region
      $region89: #{spectnt_forward.4} parent=87 // pred_check
        %p2936 = pneg %p408
      $region90: #{spectnt_forward.4} parent=87 // pred_check_branch
        %2938 = sbr.rel (%p2936) target = $region92
      $region91: #{spectnt_forward.4} parent=87 // pred_region
        %s2939 = smul.u32 2, %s28
      $region92: #{spectnt_forward.4} parent=87 // pred_fallthru
        _
    $region88: #{spectnt_forward.4} parent=5 // pred_fallthru
      _
    %p2940 = scmp.le.s32.totalorder 2, %s23
    // Predicated region
    $region93: #{spectnt_forward.4} parent=5 // pred_check
      %p2941 = pneg %p2940
    $region94: #{spectnt_forward.4} parent=5 // pred_check_branch
      %2943 = sbr.rel (%p2941) target = $region96
    $region95: #{spectnt_forward.4} parent=5 // pred_region
      %s2944 = ssub.s32 %s23, 2
      // Predicated region
      $region97: #{spectnt_forward.4} parent=95 // pred_check
        %p2945 = pneg %p414
      $region98: #{spectnt_forward.4} parent=95 // pred_check_branch
        %2947 = sbr.rel (%p2945) target = $region100
      $region99: #{spectnt_forward.4} parent=95 // pred_region
        %s2948 = smul.u32 2, %s29
        %p2949 = scmp.lt.s32.totalorder %s2948, 3
        %s2950 = scalar_select %p2949, %s2948, 3
        %s2951 = smul.addr %s2950, 8
        %s2952 = scalar_lea.vmem %s17, %s2951
      $region100: #{spectnt_forward.4} parent=95 // pred_fallthru
        _
    $region96: #{spectnt_forward.4} parent=5 // pred_fallthru
      _
  $region6: #{spectnt_forward.4} parent=0 // loop_footer
    %s27 = sadd.s32 1, %s23
  $region7: #{spectnt_forward.4} parent=0 // loop_footer_branch
    %22 = sbr.rel target = $region3
  $region8: #{spectnt_forward.4} parent=0 // loop_exit
    _

</llo_original>
